<compile_context>
chip_gen: v6e
topology: v6e:2x2x1
jax: 0.10.0
libtpu: 0.0.40
codegen_flags: <defaults>
</compile_context>

<pallas_src>
import jax
import jax.numpy as jnp
from jax import lax
from jax.experimental import pallas as pl
from jax.experimental.pallas import tpu as pltpu

EXPANSION = 4
BN_EPS = 1e-5
PAD_LEFT = 8                      # sublane-aligned start of the conv2 interior columns
SCRATCH_DTYPE = jnp.bfloat16      # conv2 consumes bf16 operands anyway


def _round_up(x, m):
    return (x + m - 1) // m * m


def _vmem_cap_bytes():
    """Generation-aware budget: ~3/4 of physical VMEM (96 MiB v5e/v6e, 48 MiB v7x)."""
    try:
        cap = int(pltpu.get_tpu_info().vmem_capacity_bytes)
    except Exception:
        cap = 64 << 20
    return max(cap * 3 // 4, 32 << 20)


def _vmem_need(th, W, Cin, Cp, wp):
    """VMEM bytes per grid step, accounting for (8,128) sublane/lane padding."""
    lane = lambda c: _round_up(c, 128)
    f32, bf16 = 4, 2
    x_blk = th * _round_up(W, 8) * lane(Cin) * f32
    halo_blk = 2 * _round_up(W, 8) * lane(Cin) * f32
    out_blk = x_blk
    io = 2 * (x_blk + halo_blk + out_blk)                       # double-buffered I/O blocks
    scratch = (th + 2) * wp * lane(Cp) * bf16                   # bf16 pad scratch
    consts = (_round_up(Cin, 16) * lane(Cp) + _round_up(9 * Cp, 16) * lane(Cp)
              + _round_up(Cp, 16) * lane(Cin)) * bf16
    consts += (2 * 8 * lane(Cp) + 8 * lane(Cin)) * f32
    m1, m2 = (th + 2) * W, th * W
    interm = (m1 * Cin * bf16 + m1 * Cp * f32                   # xa, y1
              + m2 * 9 * Cp * bf16 + m2 * Cp * f32              # im2col slab, y2
              + 2 * m2 * Cin * f32)                             # y3, out
    return io + scratch + consts + interm * 3 // 2 + (4 << 20)


def _pick_row_tile(H, W, Cin, Cp, wp, cap):
    """H-tile: th*W targets ~512 MXU rows, prefers >=2 tiles (megacore), must fit VMEM."""
    divs = [d for d in range(1, H + 1) if H % d == 0]
    mcap = max(1, 1024 // max(W, 1))
    cands = [d for d in divs if d <= mcap] or [min(divs)]
    proper = [d for d in cands if d < H]
    if proper and max(proper) * W >= 64:     # feed both v7x TensorCores even at N == 1
        cands = proper
    target = max(1, 512 // max(W, 1))
    for th in sorted(cands, key=lambda d: (abs(d - target), -d)):
        if _vmem_need(th, W, Cin, Cp, wp) <= cap:
            return th
    return min(cands)


def _build_row_halos(x, th):
    """(N,H,W,C) -> (N, H//th, 2, W, C): rows i*th-1 and (i+1)*th (zeros outside image)."""
    N, H, W, C = x.shape
    nt = H // th
    zero = jnp.zeros((N, 1, W, C), x.dtype)
    if nt > 1:
        top = jnp.concatenate([zero, x[:, th - 1:H - 1:th]], axis=1)   # row i*th - 1
        bot = jnp.concatenate([x[:, th:H:th], zero], axis=1)           # row (i+1)*th
    else:
        top, bot = zero, zero
    return jnp.stack([top, bot], axis=2)


def _bottleneck_kernel(x_ref, xh_ref, w1_ref, b1_ref, w2_ref, b2_ref,
                       w3_ref, b3_ref, out_ref, pad_ref):
    # x_ref:  (TH, W, Cin)   one row band of one image (N and H-tile squeezed), f32
    # xh_ref: (2, W, Cin)    rows TH0-1 and TH0+TH of x (zero rows at image edges), f32
    # w1_ref: (Cin, Cp)      conv1 1x1 weight * bn1 scale, bf16
    # w2_ref: (9*Cp, Cp)     conv2 3x3 weight (im2col layout) * bn2 scale, bf16
    # w3_ref: (Cp, Cin)      conv3 1x1 weight * bn3 scale, bf16
    # b*_ref: (1, C)         folded BN shifts, f32
    # pad_ref: VMEM scratch (TH+2, Wp, Cp) bf16; conv2 input with halo
    th, W, Cin = x_ref.shape
    Cp = w1_ref.shape[1]
    L = PAD_LEFT
    i = pl.program_id(1)
    nt = pl.num_programs(1)

    # Zero only the two halo columns the 3x3 taps read (cols L-1 and L+W); the
    # interior [L, L+W) is fully rewritten below, other columns are never read.
    zcol = jnp.zeros((th + 2, 1, Cp), SCRATCH_DTYPE)
    pad_ref[:, L - 1:L, :] = zcol
    pad_ref[:, L + W:L + W + 1, :] = zcol

    # ---- conv1 (1x1, bn1 scale folded) + shift + ReLU over TH+2 rows --------
    # The 1-row top/bottom halo is recomputed here so conv2 is self-contained.
    xh = xh_ref[...]
    xa = jnp.concatenate([xh[0:1].astype(jnp.bfloat16),
                          x_ref[...].astype(jnp.bfloat16),
                          xh[1:2].astype(jnp.bfloat16)], axis=0)
    y1 = jnp.dot(xa.reshape((th + 2) * W, Cin), w1_ref[...],
                 preferred_element_type=jnp.float32)
    y1 = jnp.maximum(y1 + b1_ref[...], 0.0)
    pad_ref[:, L:L + W, :] = y1.reshape(th + 2, W, Cp).astype(SCRATCH_DTYPE)

    # At the image top/bottom, conv2's zero padding lives in conv1-output space.
    zrow = jnp.zeros((1, W + 2, Cp), SCRATCH_DTYPE)

    @pl.when(i == 0)
    def _():
        pad_ref[0:1, L - 1:L + W + 1, :] = zrow

    @pl.when(i == nt - 1)
    def _():
        pad_ref[th + 1:th + 2, L - 1:L + W + 1, :] = zrow

    # ---- conv2: 3x3 as a single im2col matmul (K = 9*Cp), taps already bf16 --
    taps = []
    for dh in range(3):
        for dw in range(3):
            taps.append(pad_ref[dh:dh + th, L - 1 + dw:L - 1 + dw + W, :]
                        .reshape(th * W, Cp))
    slab = jnp.concatenate(taps, axis=-1)
    y2 = jnp.dot(slab, w2_ref[...], preferred_element_type=jnp.float32)
    y2 = jnp.maximum(y2 + b2_ref[...], 0.0)

    # ---- conv3 (1x1) + shift + residual + ReLU -------------------------------
    y3 = jnp.dot(y2.astype(jnp.bfloat16), w3_ref[...],
                 preferred_element_type=jnp.float32)
    y3 = y3 + b3_ref[...]
    out = jnp.maximum(y3 + x_ref[...].reshape(th * W, Cin), 0.0)
    out_ref[...] = out.reshape(th, W, Cin).astype(out_ref.dtype)


def bottleneck_pallas(x_nhwc, params):
    """x_nhwc: (N, H, W, Cin) float32. Returns (N, H, W, Cin) float32."""
    N, H, W, Cin = x_nhwc.shape
    w1f, b1, w2f, b2, w3f, b3 = params
    Cp = w1f.shape[1]
    assert Cin == Cp * EXPANSION, "identity bottleneck requires inplanes == 4*planes"

    wp = _round_up(W + PAD_LEFT + 1, 8)
    cap = _vmem_cap_bytes()
    th = _pick_row_tile(H, W, Cin, Cp, wp, cap)
    nt = H // th
    need = _vmem_need(th, W, Cin, Cp, wp)
    assert need <= cap, (
        f"VMEM estimate {need >> 20} MiB exceeds budget {cap >> 20} MiB "
        f"(H={H}, W={W}, Cin={Cin}); no feasible row tile")
    vmem_limit = int(min(max(need, 16 << 20), cap))

    x_halo = _build_row_halos(x_nhwc, th)

    def _call(single_buffer_consts):
        def cspec(shape):
            idx = lambda n, i: (0,) * len(shape)
            if single_buffer_consts:
                # constant index map -> never refetched; drop the second buffer.
                return pl.BlockSpec(shape, idx, pipeline_mode=pl.Buffered(1))
            return pl.BlockSpec(shape, idx)

        return pl.pallas_call(
            _bottleneck_kernel,
            out_shape=jax.ShapeDtypeStruct((N, H, W, Cin), x_nhwc.dtype),
            grid_spec=pltpu.PrefetchScalarGridSpec(
                num_scalar_prefetch=0,
                grid=(N, nt),
                in_specs=[
                    pl.BlockSpec((None, th, W, Cin), lambda n, i: (n, i, 0, 0)),      # x band
                    pl.BlockSpec((None, None, 2, W, Cin), lambda n, i: (n, i, 0, 0, 0)),  # halo rows
                    cspec((Cin, Cp)),        # w1 * s1 (bf16)
                    cspec((1, Cp)),          # b1
                    cspec((9 * Cp, Cp)),     # w2 * s2 (bf16, im2col layout)
                    cspec((1, Cp)),          # b2
                    cspec((Cp, Cin)),        # w3 * s3 (bf16)
                    cspec((1, Cin)),         # b3
                ],
                out_specs=pl.BlockSpec((None, th, W, Cin), lambda n, i: (n, i, 0, 0)),
                scratch_shapes=[pltpu.VMEM((th + 2, wp, Cp), SCRATCH_DTYPE)],
            ),
            compiler_params=pltpu.CompilerParams(
                dimension_semantics=("parallel", "parallel"),
                vmem_limit_bytes=vmem_limit),
        )(x_nhwc, x_halo, w1f, b1, w2f, b2, w3f, b3)

    try:
        out = _call(True)
        jax.block_until_ready(out)
        return out
    except Exception:
        # Fallback for jax versions that reject pl.Buffered(1) on constants.
        out = _call(False)
        jax.block_until_ready(out)
        return out


def _fold_bn(gamma, beta, mean, var):
    scale = gamma / jnp.sqrt(var + BN_EPS)
    shift = beta - mean * scale
    return scale[None, :].astype(jnp.float32), shift[None, :].astype(jnp.float32)


def make_params(key, inplanes, planes):
    """Deterministic synthetic params with the same shapes as the PyTorch module."""
    ks = jax.random.split(key, 6)
    cout = planes * EXPANSION

    # PyTorch conv weight layouts: (Cout, Cin, kH, kW).
    w1_t = jax.random.normal(ks[0], (planes, inplanes, 1, 1)) * 0.1
    w2_t = jax.random.normal(ks[1], (planes, planes, 3, 3)) * 0.1
    w3_t = jax.random.normal(ks[2], (cout, planes, 1, 1)) * 0.1

    def bn(k, c):
        k1, k2, k3, k4 = jax.random.split(k, 4)
        gamma = jax.random.uniform(k1, (c,), minval=0.5, maxval=1.5)
        beta = jax.random.normal(k2, (c,)) * 0.1
        mean = jax.random.normal(k3, (c,)) * 0.1
        var = jax.random.uniform(k4, (c,), minval=0.5, maxval=1.5)
        return _fold_bn(gamma, beta, mean, var)

    s1, b1 = bn(ks[3], planes)
    s2, b2 = bn(ks[4], planes)
    s3, b3 = bn(ks[5], cout)
    raw = (w1_t, w2_t, w3_t, (s1, b1), (s2, b2), (s3, b3))

    # Kernel params: BN scale folded into the weight output-channel columns.
    w1f = (w1_t[:, :, 0, 0].T * s1).astype(jnp.bfloat16)                     # (Cin, Cp)
    # (Cout,Cin,kH,kW) -> (kH,kW,Cin,Cout) -> (9*Cin, Cout); row = (kh*3+kw)*Cin + cin,
    # matching the kernel's im2col tap ordering.
    w2f = (jnp.transpose(w2_t, (2, 3, 1, 0)).reshape(9 * planes, planes)
           * s2).astype(jnp.bfloat16)                                        # (9*Cp, Cp)
    w3f = (w3_t[:, :, 0, 0].T * s3).astype(jnp.bfloat16)                     # (Cp, 4*Cp)
    kernel_params = (w1f, b1, w2f, b2, w3f, b3)
    return raw, kernel_params


def reference_nhwc(x_nhwc, raw):
    """Pure-JAX f32 reference (conv_general_dilated), NHWC, for correctness."""
    w1_t, w2_t, w3_t, (s1, b1), (s2, b2), (s3, b3) = raw

    def conv(x, w_torch, pad):
        w = jnp.transpose(w_torch, (2, 3, 1, 0))  # HWIO
        return lax.conv_general_dilated(
            x, w, window_strides=(1, 1), padding=[(pad, pad), (pad, pad)],
            dimension_numbers=("NHWC", "HWIO", "NHWC"))

    out = jnp.maximum(conv(x_nhwc, w1_t, 0) * s1 + b1, 0.0)
    out = jnp.maximum(conv(out, w2_t, 1) * s2 + b2, 0.0)
    out = conv(out, w3_t, 0) * s3 + b3
    return jnp.maximum(out + x_nhwc, 0.0)


if __name__ == "__main__":
    # Small but lane-friendly shapes: planes=32 -> inplanes=128 (one lane tile,
    # unmasked stores), spatial 16x16, batch 2.
    N, planes, H, W = 2, 32, 16, 16
    inplanes = planes * EXPANSION

    key = jax.random.PRNGKey(0)
    kx, kp = jax.random.split(key)
    x_nchw = jax.random.normal(kx, (N, inplanes, H, W), dtype=jnp.float32)

    raw, kernel_params = make_params(kp, inplanes, planes)

    # NCHW (PyTorch convention) -> NHWC for the kernel.
    x_nhwc = jnp.transpose(x_nchw, (0, 2, 3, 1))

    out_nhwc = bottleneck_pallas(x_nhwc, kernel_params)
    out_nchw = jnp.transpose(out_nhwc, (0, 3, 1, 2))
    jax.block_until_ready(out_nchw)

    # Correctness check against a pure-JAX f32 conv reference (bf16 MXU operands
    # in the kernel -> loosened tolerance).
    ref_nchw = jnp.transpose(reference_nhwc(x_nhwc, raw), (0, 3, 1, 2))
    assert out_nchw.shape == (N, inplanes, H, W)
    max_err = float(jnp.max(jnp.abs(out_nchw - ref_nchw)))
    scale = float(jnp.max(jnp.abs(ref_nchw))) + 1e-6
    assert max_err / scale < 3e-2, f"mismatch vs reference: {max_err} (scale {scale})"

    print("KERNEL_OK")
</pallas_src>

<mosaic_0001>
module attributes {stable_mosaic.version = 11 : i64} {
  func.func @_bottleneck_kernel(%arg0: i32, %arg1: i32, %arg2: memref<1x8x16x128xf32, #tpu.memory_space<vmem>>, %arg3: memref<1x1x2x16x128xf32, #tpu.memory_space<vmem>>, %arg4: memref<128x32xbf16, #tpu.memory_space<vmem>>, %arg5: memref<1x32xf32, #tpu.memory_space<vmem>>, %arg6: memref<288x32xbf16, #tpu.memory_space<vmem>>, %arg7: memref<1x32xf32, #tpu.memory_space<vmem>>, %arg8: memref<32x128xbf16, #tpu.memory_space<vmem>>, %arg9: memref<1x128xf32, #tpu.memory_space<vmem>>, %arg10: memref<1x8x16x128xf32, #tpu.memory_space<vmem>>, %arg11: memref<10x32x32xbf16, #tpu.memory_space<vmem>>) attributes {dimension_semantics = [#tpu.dimension_semantics<parallel>, #tpu.dimension_semantics<parallel>], iteration_bounds = array<i64: 2, 2>, scalar_prefetch = 0 : i64, scratch_operands = 1 : i64, tpu.core_type = #tpu.core_type<tc>, window_params = [{transform_indices = @transform_0, window_bounds = array<i64: 1, 8, 16, 128>}, {transform_indices = @transform_1, window_bounds = array<i64: 1, 1, 2, 16, 128>}, {pipeline_mode = #tpu.pipeline_mode<synchronous>, transform_indices = @transform_2, window_bounds = array<i64: 128, 32>}, {pipeline_mode = #tpu.pipeline_mode<synchronous>, transform_indices = @transform_3, window_bounds = array<i64: 1, 32>}, {pipeline_mode = #tpu.pipeline_mode<synchronous>, transform_indices = @transform_4, window_bounds = array<i64: 288, 32>}, {pipeline_mode = #tpu.pipeline_mode<synchronous>, transform_indices = @transform_5, window_bounds = array<i64: 1, 32>}, {pipeline_mode = #tpu.pipeline_mode<synchronous>, transform_indices = @transform_6, window_bounds = array<i64: 32, 128>}, {pipeline_mode = #tpu.pipeline_mode<synchronous>, transform_indices = @transform_7, window_bounds = array<i64: 1, 128>}, {transform_indices = @transform_8, window_bounds = array<i64: 1, 8, 16, 128>}]} {
    %cst = arith.constant 0.000000e+00 : bf16
    %0 = vector.broadcast %cst : bf16 to vector<10x1x32xbf16>
    %c0 = arith.constant 0 : index
    %c7 = arith.constant 7 : index
    %c0_0 = arith.constant 0 : index
    %1 = vector.load %arg11[%c0, %c7, %c0_0] : memref<10x32x32xbf16, #tpu.memory_space<vmem>>, vector<10x1x32xbf16>
    tpu.vector_store %arg11[%c0, %c7, %c0_0], %0 {strides = array<i32>} : memref<10x32x32xbf16, #tpu.memory_space<vmem>>, vector<10x1x32xbf16>,
    %c0_1 = arith.constant 0 : index
    %c24 = arith.constant 24 : index
    %c0_2 = arith.constant 0 : index
    %2 = vector.load %arg11[%c0_1, %c24, %c0_2] : memref<10x32x32xbf16, #tpu.memory_space<vmem>>, vector<10x1x32xbf16>
    tpu.vector_store %arg11[%c0_1, %c24, %c0_2], %0 {strides = array<i32>} : memref<10x32x32xbf16, #tpu.memory_space<vmem>>, vector<10x1x32xbf16>,
    %c0_3 = arith.constant 0 : index
    %c0_4 = arith.constant 0 : index
    %c0_5 = arith.constant 0 : index
    %c0_6 = arith.constant 0 : index
    %c0_7 = arith.constant 0 : index
    %3 = vector.load %arg3[%c0_3, %c0_4, %c0_5, %c0_6, %c0_7] : memref<1x1x2x16x128xf32, #tpu.memory_space<vmem>>, vector<1x1x2x16x128xf32>
    %4 = vector.shape_cast %3 : vector<1x1x2x16x128xf32> to vector<2x16x128xf32>
    %5 = vector.extract_strided_slice %4 {offsets = [0, 0, 0], sizes = [1, 16, 128], strides = [1, 1, 1]} : vector<2x16x128xf32> to vector<1x16x128xf32>
    %6 = arith.truncf %5 : vector<1x16x128xf32> to vector<1x16x128xbf16>
    %c0_8 = arith.constant 0 : index
    %c0_9 = arith.constant 0 : index
    %c0_10 = arith.constant 0 : index
    %c0_11 = arith.constant 0 : index
    %7 = vector.load %arg2[%c0_8, %c0_9, %c0_10, %c0_11] : memref<1x8x16x128xf32, #tpu.memory_space<vmem>>, vector<1x8x16x128xf32>
    %8 = vector.shape_cast %7 : vector<1x8x16x128xf32> to vector<8x16x128xf32>
    %9 = arith.truncf %8 : vector<8x16x128xf32> to vector<8x16x128xbf16>
    %10 = vector.extract_strided_slice %4 {offsets = [1, 0, 0], sizes = [1, 16, 128], strides = [1, 1, 1]} : vector<2x16x128xf32> to vector<1x16x128xf32>
    %11 = arith.truncf %10 : vector<1x16x128xf32> to vector<1x16x128xbf16>
    %12 = tpu.concatenate %6, %9, %11 in 0 : vector<1x16x128xbf16>, vector<8x16x128xbf16>, vector<1x16x128xbf16> -> vector<10x16x128xbf16>
    %13 = vector.shape_cast %12 : vector<10x16x128xbf16> to vector<160x128xbf16>
    %c0_12 = arith.constant 0 : index
    %c0_13 = arith.constant 0 : index
    %14 = vector.load %arg4[%c0_12, %c0_13] : memref<128x32xbf16, #tpu.memory_space<vmem>>, vector<128x32xbf16>
    %cst_14 = arith.constant dense<0.000000e+00> : vector<160x32xf32>
    %15 = tpu.matmul %13, %14, %cst_14 {dimension_numbers = #tpu.dot_dimension_numbers<[1], [0], [0], [1], [0, 0, 1, 1], [], []>} : vector<160x128xbf16>, vector<128x32xbf16>, vector<160x32xf32> -> vector<160x32xf32>
    %c0_15 = arith.constant 0 : index
    %c0_16 = arith.constant 0 : index
    %16 = vector.load %arg5[%c0_15, %c0_16] : memref<1x32xf32, #tpu.memory_space<vmem>>, vector<1x32xf32>
    %17 = vector.broadcast %16 : vector<1x32xf32> to vector<160x32xf32>
    %18 = arith.addf %15, %17 : vector<160x32xf32>
    %cst_17 = arith.constant 0.000000e+00 : f32
    %19 = vector.broadcast %cst_17 : f32 to vector<160x32xf32>
    %20 = arith.maximumf %18, %19 : vector<160x32xf32>
    %21 = vector.shape_cast %20 : vector<160x32xf32> to vector<10x16x32xf32>
    %22 = arith.truncf %21 : vector<10x16x32xf32> to vector<10x16x32xbf16>
    %c0_18 = arith.constant 0 : index
    %c8 = arith.constant 8 : index
    %c0_19 = arith.constant 0 : index
    %23 = vector.load %arg11[%c0_18, %c8, %c0_19] : memref<10x32x32xbf16, #tpu.memory_space<vmem>>, vector<10x16x32xbf16>
    tpu.vector_store %arg11[%c0_18, %c8, %c0_19], %22 {strides = array<i32>} : memref<10x32x32xbf16, #tpu.memory_space<vmem>>, vector<10x16x32xbf16>,
    %cst_20 = arith.constant 0.000000e+00 : bf16
    %24 = vector.broadcast %cst_20 : bf16 to vector<1x18x32xbf16>
    %c0_i32 = arith.constant 0 : i32
    %25 = arith.cmpi eq, %arg1, %c0_i32 : i32
    %26 = arith.extui %25 : i1 to i32
    %c0_i32_21 = arith.constant 0 : i32
    %27 = arith.cmpi ne, %26, %c0_i32_21 : i32
    scf.if %27 {
      %c0_67 = arith.constant 0 : index
      %c7_68 = arith.constant 7 : index
      %c0_69 = arith.constant 0 : index
      %73 = vector.load %arg11[%c0_67, %c7_68, %c0_69] : memref<10x32x32xbf16, #tpu.memory_space<vmem>>, vector<1x18x32xbf16>
      tpu.vector_store %arg11[%c0_67, %c7_68, %c0_69], %24 {strides = array<i32>} : memref<10x32x32xbf16, #tpu.memory_space<vmem>>, vector<1x18x32xbf16>,
    } else {
    }
    %c1_i32 = arith.constant 1 : i32
    %28 = arith.cmpi eq, %arg1, %c1_i32 : i32
    %29 = arith.extui %28 : i1 to i32
    %c0_i32_22 = arith.constant 0 : i32
    %30 = arith.cmpi ne, %29, %c0_i32_22 : i32
    scf.if %30 {
      %c9_67 = arith.constant 9 : index
      %c7_68 = arith.constant 7 : index
      %c0_69 = arith.constant 0 : index
      %73 = vector.load %arg11[%c9_67, %c7_68, %c0_69] : memref<10x32x32xbf16, #tpu.memory_space<vmem>>, vector<1x18x32xbf16>
      tpu.vector_store %arg11[%c9_67, %c7_68, %c0_69], %24 {strides = array<i32>} : memref<10x32x32xbf16, #tpu.memory_space<vmem>>, vector<1x18x32xbf16>,
    } else {
    }
    %c0_23 = arith.constant 0 : index
    %c7_24 = arith.constant 7 : index
    %c0_25 = arith.constant 0 : index
    %31 = vector.load %arg11[%c0_23, %c7_24, %c0_25] : memref<10x32x32xbf16, #tpu.memory_space<vmem>>, vector<8x16x32xbf16>
    %32 = vector.shape_cast %31 : vector<8x16x32xbf16> to vector<128x32xbf16>
    %c0_26 = arith.constant 0 : index
    %c8_27 = arith.constant 8 : index
    %c0_28 = arith.constant 0 : index
    %33 = vector.load %arg11[%c0_26, %c8_27, %c0_28] : memref<10x32x32xbf16, #tpu.memory_space<vmem>>, vector<8x16x32xbf16>
    %34 = vector.shape_cast %33 : vector<8x16x32xbf16> to vector<128x32xbf16>
    %c0_29 = arith.constant 0 : index
    %c9 = arith.constant 9 : index
    %c0_30 = arith.constant 0 : index
    %35 = vector.load %arg11[%c0_29, %c9, %c0_30] : memref<10x32x32xbf16, #tpu.memory_space<vmem>>, vector<8x16x32xbf16>
    %36 = vector.shape_cast %35 : vector<8x16x32xbf16> to vector<128x32xbf16>
    %c1 = arith.constant 1 : index
    %c7_31 = arith.constant 7 : index
    %c0_32 = arith.constant 0 : index
    %37 = vector.load %arg11[%c1, %c7_31, %c0_32] : memref<10x32x32xbf16, #tpu.memory_space<vmem>>, vector<8x16x32xbf16>
    %38 = vector.shape_cast %37 : vector<8x16x32xbf16> to vector<128x32xbf16>
    %c1_33 = arith.constant 1 : index
    %c8_34 = arith.constant 8 : index
    %c0_35 = arith.constant 0 : index
    %39 = vector.load %arg11[%c1_33, %c8_34, %c0_35] : memref<10x32x32xbf16, #tpu.memory_space<vmem>>, vector<8x16x32xbf16>
    %40 = vector.shape_cast %39 : vector<8x16x32xbf16> to vector<128x32xbf16>
    %c1_36 = arith.constant 1 : index
    %c9_37 = arith.constant 9 : index
    %c0_38 = arith.constant 0 : index
    %41 = vector.load %arg11[%c1_36, %c9_37, %c0_38] : memref<10x32x32xbf16, #tpu.memory_space<vmem>>, vector<8x16x32xbf16>
    %42 = vector.shape_cast %41 : vector<8x16x32xbf16> to vector<128x32xbf16>
    %c2 = arith.constant 2 : index
    %c7_39 = arith.constant 7 : index
    %c0_40 = arith.constant 0 : index
    %43 = vector.load %arg11[%c2, %c7_39, %c0_40] : memref<10x32x32xbf16, #tpu.memory_space<vmem>>, vector<8x16x32xbf16>
    %44 = vector.shape_cast %43 : vector<8x16x32xbf16> to vector<128x32xbf16>
    %c2_41 = arith.constant 2 : index
    %c8_42 = arith.constant 8 : index
    %c0_43 = arith.constant 0 : index
    %45 = vector.load %arg11[%c2_41, %c8_42, %c0_43] : memref<10x32x32xbf16, #tpu.memory_space<vmem>>, vector<8x16x32xbf16>
    %46 = vector.shape_cast %45 : vector<8x16x32xbf16> to vector<128x32xbf16>
    %c2_44 = arith.constant 2 : index
    %c9_45 = arith.constant 9 : index
    %c0_46 = arith.constant 0 : index
    %47 = vector.load %arg11[%c2_44, %c9_45, %c0_46] : memref<10x32x32xbf16, #tpu.memory_space<vmem>>, vector<8x16x32xbf16>
    %48 = vector.shape_cast %47 : vector<8x16x32xbf16> to vector<128x32xbf16>
    %49 = tpu.concatenate %32, %34, %36, %38, %40, %42, %44, %46, %48 in 1 : vector<128x32xbf16>, vector<128x32xbf16>, vector<128x32xbf16>, vector<128x32xbf16>, vector<128x32xbf16>, vector<128x32xbf16>, vector<128x32xbf16>, vector<128x32xbf16>, vector<128x32xbf16> -> vector<128x288xbf16>
    %c0_47 = arith.constant 0 : index
    %c0_48 = arith.constant 0 : index
    %50 = vector.load %arg6[%c0_47, %c0_48] : memref<288x32xbf16, #tpu.memory_space<vmem>>, vector<288x32xbf16>
    %cst_49 = arith.constant dense<0.000000e+00> : vector<128x32xf32>
    %51 = tpu.matmul %49, %50, %cst_49 {dimension_numbers = #tpu.dot_dimension_numbers<[1], [0], [0], [1], [0, 0, 1, 1], [], []>} : vector<128x288xbf16>, vector<288x32xbf16>, vector<128x32xf32> -> vector<128x32xf32>
    %c0_50 = arith.constant 0 : index
    %c0_51 = arith.constant 0 : index
    %52 = vector.load %arg7[%c0_50, %c0_51] : memref<1x32xf32, #tpu.memory_space<vmem>>, vector<1x32xf32>
    %53 = vector.broadcast %52 : vector<1x32xf32> to vector<128x32xf32>
    %54 = arith.addf %51, %53 : vector<128x32xf32>
    %cst_52 = arith.constant 0.000000e+00 : f32
    %55 = vector.broadcast %cst_52 : f32 to vector<128x32xf32>
    %56 = arith.maximumf %54, %55 : vector<128x32xf32>
    %57 = arith.truncf %56 : vector<128x32xf32> to vector<128x32xbf16>
    %c0_53 = arith.constant 0 : index
    %c0_54 = arith.constant 0 : index
    %58 = vector.load %arg8[%c0_53, %c0_54] : memref<32x128xbf16, #tpu.memory_space<vmem>>, vector<32x128xbf16>
    %cst_55 = arith.constant dense<0.000000e+00> : vector<128x128xf32>
    %59 = tpu.matmul %57, %58, %cst_55 {dimension_numbers = #tpu.dot_dimension_numbers<[1], [0], [0], [1], [0, 0, 1, 1], [], []>} : vector<128x32xbf16>, vector<32x128xbf16>, vector<128x128xf32> -> vector<128x128xf32>
    %c0_56 = arith.constant 0 : index
    %c0_57 = arith.constant 0 : index
    %60 = vector.load %arg9[%c0_56, %c0_57] : memref<1x128xf32, #tpu.memory_space<vmem>>, vector<1x128xf32>
    %61 = vector.broadcast %60 : vector<1x128xf32> to vector<128x128xf32>
    %62 = arith.addf %59, %61 : vector<128x128xf32>
    %c0_58 = arith.constant 0 : index
    %c0_59 = arith.constant 0 : index
    %c0_60 = arith.constant 0 : index
    %c0_61 = arith.constant 0 : index
    %63 = vector.load %arg2[%c0_58, %c0_59, %c0_60, %c0_61] : memref<1x8x16x128xf32, #tpu.memory_space<vmem>>, vector<1x8x16x128xf32>
    %64 = vector.shape_cast %63 : vector<1x8x16x128xf32> to vector<8x16x128xf32>
    %65 = vector.shape_cast %64 : vector<8x16x128xf32> to vector<128x128xf32>
    %66 = arith.addf %62, %65 : vector<128x128xf32>
    %cst_62 = arith.constant 0.000000e+00 : f32
    %67 = vector.broadcast %cst_62 : f32 to vector<128x128xf32>
    %68 = arith.maximumf %66, %67 : vector<128x128xf32>
    %69 = vector.shape_cast %68 : vector<128x128xf32> to vector<8x16x128xf32>
    %c0_63 = arith.constant 0 : index
    %c0_64 = arith.constant 0 : index
    %c0_65 = arith.constant 0 : index
    %c0_66 = arith.constant 0 : index
    %70 = vector.load %arg10[%c0_63, %c0_64, %c0_65, %c0_66] : memref<1x8x16x128xf32, #tpu.memory_space<vmem>>, vector<1x8x16x128xf32>
    %71 = vector.shape_cast %70 : vector<1x8x16x128xf32> to vector<8x16x128xf32>
    %72 = vector.shape_cast %69 : vector<8x16x128xf32> to vector<1x8x16x128xf32>
    tpu.vector_store %arg10[%c0_63, %c0_64, %c0_65, %c0_66], %72 {strides = array<i32>} : memref<1x8x16x128xf32, #tpu.memory_space<vmem>>, vector<1x8x16x128xf32>,
    return
  }
  func.func @transform_0(%arg0: i32, %arg1: i32) -> (i32, i32, i32, i32) {
    %c0_i32 = arith.constant 0 : i32
    %c0_i32_0 = arith.constant 0 : i32
    %c0_i32_1 = arith.constant 0 : i32
    return %arg0, %arg1, %c0_i32, %c0_i32_0 : i32, i32, i32, i32
  }
  func.func @transform_1(%arg0: i32, %arg1: i32) -> (i32, i32, i32, i32, i32) {
    %c0_i32 = arith.constant 0 : i32
    %c0_i32_0 = arith.constant 0 : i32
    %c0_i32_1 = arith.constant 0 : i32
    %c0_i32_2 = arith.constant 0 : i32
    return %arg0, %arg1, %c0_i32, %c0_i32_0, %c0_i32_1 : i32, i32, i32, i32, i32
  }
  func.func @transform_2(%arg0: i32, %arg1: i32) -> (i32, i32) {
    %c0_i32 = arith.constant 0 : i32
    %c0_i32_0 = arith.constant 0 : i32
    %c0_i32_1 = arith.constant 0 : i32
    return %c0_i32, %c0_i32_0 : i32, i32
  }
  func.func @transform_3(%arg0: i32, %arg1: i32) -> (i32, i32) {
    %c0_i32 = arith.constant 0 : i32
    %c0_i32_0 = arith.constant 0 : i32
    %c0_i32_1 = arith.constant 0 : i32
    return %c0_i32, %c0_i32_0 : i32, i32
  }
  func.func @transform_4(%arg0: i32, %arg1: i32) -> (i32, i32) {
    %c0_i32 = arith.constant 0 : i32
    %c0_i32_0 = arith.constant 0 : i32
    %c0_i32_1 = arith.constant 0 : i32
    return %c0_i32, %c0_i32_0 : i32, i32
  }
  func.func @transform_5(%arg0: i32, %arg1: i32) -> (i32, i32) {
    %c0_i32 = arith.constant 0 : i32
    %c0_i32_0 = arith.constant 0 : i32
    %c0_i32_1 = arith.constant 0 : i32
    return %c0_i32, %c0_i32_0 : i32, i32
  }
  func.func @transform_6(%arg0: i32, %arg1: i32) -> (i32, i32) {
    %c0_i32 = arith.constant 0 : i32
    %c0_i32_0 = arith.constant 0 : i32
    %c0_i32_1 = arith.constant 0 : i32
    return %c0_i32, %c0_i32_0 : i32, i32
  }
  func.func @transform_7(%arg0: i32, %arg1: i32) -> (i32, i32) {
    %c0_i32 = arith.constant 0 : i32
    %c0_i32_0 = arith.constant 0 : i32
    %c0_i32_1 = arith.constant 0 : i32
    return %c0_i32, %c0_i32_0 : i32, i32
  }
  func.func @transform_8(%arg0: i32, %arg1: i32) -> (i32, i32, i32, i32) {
    %c0_i32 = arith.constant 0 : i32
    %c0_i32_0 = arith.constant 0 : i32
    %c0_i32_1 = arith.constant 0 : i32
    return %arg0, %arg1, %c0_i32, %c0_i32_0 : i32, i32, i32, i32
  }
}

module attributes {stable_mosaic.version = 11 : i64} {
  func.func @_bottleneck_kernel(%arg0: i32, %arg1: i32, %arg2: memref<1x8x16x128xf32, #tpu.memory_space<vmem>>, %arg3: memref<1x1x2x16x128xf32, #tpu.memory_space<vmem>>, %arg4: memref<128x32xbf16, #tpu.memory_space<vmem>>, %arg5: memref<1x32xf32, #tpu.memory_space<vmem>>, %arg6: memref<288x32xbf16, #tpu.memory_space<vmem>>, %arg7: memref<1x32xf32, #tpu.memory_space<vmem>>, %arg8: memref<32x128xbf16, #tpu.memory_space<vmem>>, %arg9: memref<1x128xf32, #tpu.memory_space<vmem>>, %arg10: memref<1x8x16x128xf32, #tpu.memory_space<vmem>>, %arg11: memref<10x32x32xbf16, #tpu.memory_space<vmem>>) attributes {dimension_semantics = [#tpu.dimension_semantics<parallel>, #tpu.dimension_semantics<parallel>], iteration_bounds = array<i64: 2, 2>, scalar_prefetch = 0 : i64, scratch_operands = 1 : i64, tpu.core_type = #tpu.core_type<tc>, window_params = [{transform_indices = @transform_0, window_bounds = array<i64: 1, 8, 16, 128>}, {transform_indices = @transform_1, window_bounds = array<i64: 1, 1, 2, 16, 128>}, {pipeline_mode = #tpu.pipeline_mode<synchronous>, transform_indices = @transform_2, window_bounds = array<i64: 128, 32>}, {pipeline_mode = #tpu.pipeline_mode<synchronous>, transform_indices = @transform_3, window_bounds = array<i64: 1, 32>}, {pipeline_mode = #tpu.pipeline_mode<synchronous>, transform_indices = @transform_4, window_bounds = array<i64: 288, 32>}, {pipeline_mode = #tpu.pipeline_mode<synchronous>, transform_indices = @transform_5, window_bounds = array<i64: 1, 32>}, {pipeline_mode = #tpu.pipeline_mode<synchronous>, transform_indices = @transform_6, window_bounds = array<i64: 32, 128>}, {pipeline_mode = #tpu.pipeline_mode<synchronous>, transform_indices = @transform_7, window_bounds = array<i64: 1, 128>}, {transform_indices = @transform_8, window_bounds = array<i64: 1, 8, 16, 128>}]} {
    %cst = arith.constant 0.000000e+00 : bf16
    %0 = vector.broadcast %cst : bf16 to vector<10x1x32xbf16>
    %c0 = arith.constant 0 : index
    %c7 = arith.constant 7 : index
    %c0_0 = arith.constant 0 : index
    %1 = vector.load %arg11[%c0, %c7, %c0_0] : memref<10x32x32xbf16, #tpu.memory_space<vmem>>, vector<10x1x32xbf16>
    tpu.vector_store %arg11[%c0, %c7, %c0_0], %0 {strides = array<i32>} : memref<10x32x32xbf16, #tpu.memory_space<vmem>>, vector<10x1x32xbf16>,
    %c0_1 = arith.constant 0 : index
    %c24 = arith.constant 24 : index
    %c0_2 = arith.constant 0 : index
    %2 = vector.load %arg11[%c0_1, %c24, %c0_2] : memref<10x32x32xbf16, #tpu.memory_space<vmem>>, vector<10x1x32xbf16>
    tpu.vector_store %arg11[%c0_1, %c24, %c0_2], %0 {strides = array<i32>} : memref<10x32x32xbf16, #tpu.memory_space<vmem>>, vector<10x1x32xbf16>,
    %c0_3 = arith.constant 0 : index
    %c0_4 = arith.constant 0 : index
    %c0_5 = arith.constant 0 : index
    %c0_6 = arith.constant 0 : index
    %c0_7 = arith.constant 0 : index
    %3 = vector.load %arg3[%c0_3, %c0_4, %c0_5, %c0_6, %c0_7] : memref<1x1x2x16x128xf32, #tpu.memory_space<vmem>>, vector<1x1x2x16x128xf32>
    %4 = vector.shape_cast %3 : vector<1x1x2x16x128xf32> to vector<2x16x128xf32>
    %5 = vector.extract_strided_slice %4 {offsets = [0, 0, 0], sizes = [1, 16, 128], strides = [1, 1, 1]} : vector<2x16x128xf32> to vector<1x16x128xf32>
    %6 = arith.truncf %5 : vector<1x16x128xf32> to vector<1x16x128xbf16>
    %c0_8 = arith.constant 0 : index
    %c0_9 = arith.constant 0 : index
    %c0_10 = arith.constant 0 : index
    %c0_11 = arith.constant 0 : index
    %7 = vector.load %arg2[%c0_8, %c0_9, %c0_10, %c0_11] : memref<1x8x16x128xf32, #tpu.memory_space<vmem>>, vector<1x8x16x128xf32>
    %8 = vector.shape_cast %7 : vector<1x8x16x128xf32> to vector<8x16x128xf32>
    %9 = arith.truncf %8 : vector<8x16x128xf32> to vector<8x16x128xbf16>
    %10 = vector.extract_strided_slice %4 {offsets = [1, 0, 0], sizes = [1, 16, 128], strides = [1, 1, 1]} : vector<2x16x128xf32> to vector<1x16x128xf32>
    %11 = arith.truncf %10 : vector<1x16x128xf32> to vector<1x16x128xbf16>
    %12 = tpu.concatenate %6, %9, %11 in 0 : vector<1x16x128xbf16>, vector<8x16x128xbf16>, vector<1x16x128xbf16> -> vector<10x16x128xbf16>
    %13 = vector.shape_cast %12 : vector<10x16x128xbf16> to vector<160x128xbf16>
    %c0_12 = arith.constant 0 : index
    %c0_13 = arith.constant 0 : index
    %14 = vector.load %arg4[%c0_12, %c0_13] : memref<128x32xbf16, #tpu.memory_space<vmem>>, vector<128x32xbf16>
    %cst_14 = arith.constant dense<0.000000e+00> : vector<160x32xf32>
    %15 = tpu.matmul %13, %14, %cst_14 {dimension_numbers = #tpu.dot_dimension_numbers<[1], [0], [0], [1], [0, 0, 1, 1], [], []>} : vector<160x128xbf16>, vector<128x32xbf16>, vector<160x32xf32> -> vector<160x32xf32>
    %c0_15 = arith.constant 0 : index
    %c0_16 = arith.constant 0 : index
    %16 = vector.load %arg5[%c0_15, %c0_16] : memref<1x32xf32, #tpu.memory_space<vmem>>, vector<1x32xf32>
    %17 = vector.broadcast %16 : vector<1x32xf32> to vector<160x32xf32>
    %18 = arith.addf %15, %17 : vector<160x32xf32>
    %cst_17 = arith.constant 0.000000e+00 : f32
    %19 = vector.broadcast %cst_17 : f32 to vector<160x32xf32>
    %20 = arith.maximumf %18, %19 : vector<160x32xf32>
    %21 = vector.shape_cast %20 : vector<160x32xf32> to vector<10x16x32xf32>
    %22 = arith.truncf %21 : vector<10x16x32xf32> to vector<10x16x32xbf16>
    %c0_18 = arith.constant 0 : index
    %c8 = arith.constant 8 : index
    %c0_19 = arith.constant 0 : index
    %23 = vector.load %arg11[%c0_18, %c8, %c0_19] : memref<10x32x32xbf16, #tpu.memory_space<vmem>>, vector<10x16x32xbf16>
    tpu.vector_store %arg11[%c0_18, %c8, %c0_19], %22 {strides = array<i32>} : memref<10x32x32xbf16, #tpu.memory_space<vmem>>, vector<10x16x32xbf16>,
    %cst_20 = arith.constant 0.000000e+00 : bf16
    %24 = vector.broadcast %cst_20 : bf16 to vector<1x18x32xbf16>
    %c0_i32 = arith.constant 0 : i32
    %25 = arith.cmpi eq, %arg1, %c0_i32 : i32
    %26 = arith.extui %25 : i1 to i32
    %c0_i32_21 = arith.constant 0 : i32
    %27 = arith.cmpi ne, %26, %c0_i32_21 : i32
    scf.if %27 {
      %c0_67 = arith.constant 0 : index
      %c7_68 = arith.constant 7 : index
      %c0_69 = arith.constant 0 : index
      %73 = vector.load %arg11[%c0_67, %c7_68, %c0_69] : memref<10x32x32xbf16, #tpu.memory_space<vmem>>, vector<1x18x32xbf16>
      tpu.vector_store %arg11[%c0_67, %c7_68, %c0_69], %24 {strides = array<i32>} : memref<10x32x32xbf16, #tpu.memory_space<vmem>>, vector<1x18x32xbf16>,
    } else {
    }
    %c1_i32 = arith.constant 1 : i32
    %28 = arith.cmpi eq, %arg1, %c1_i32 : i32
    %29 = arith.extui %28 : i1 to i32
    %c0_i32_22 = arith.constant 0 : i32
    %30 = arith.cmpi ne, %29, %c0_i32_22 : i32
    scf.if %30 {
      %c9_67 = arith.constant 9 : index
      %c7_68 = arith.constant 7 : index
      %c0_69 = arith.constant 0 : index
      %73 = vector.load %arg11[%c9_67, %c7_68, %c0_69] : memref<10x32x32xbf16, #tpu.memory_space<vmem>>, vector<1x18x32xbf16>
      tpu.vector_store %arg11[%c9_67, %c7_68, %c0_69], %24 {strides = array<i32>} : memref<10x32x32xbf16, #tpu.memory_space<vmem>>, vector<1x18x32xbf16>,
    } else {
    }
    %c0_23 = arith.constant 0 : index
    %c7_24 = arith.constant 7 : index
    %c0_25 = arith.constant 0 : index
    %31 = vector.load %arg11[%c0_23, %c7_24, %c0_25] : memref<10x32x32xbf16, #tpu.memory_space<vmem>>, vector<8x16x32xbf16>
    %32 = vector.shape_cast %31 : vector<8x16x32xbf16> to vector<128x32xbf16>
    %c0_26 = arith.constant 0 : index
    %c8_27 = arith.constant 8 : index
    %c0_28 = arith.constant 0 : index
    %33 = vector.load %arg11[%c0_26, %c8_27, %c0_28] : memref<10x32x32xbf16, #tpu.memory_space<vmem>>, vector<8x16x32xbf16>
    %34 = vector.shape_cast %33 : vector<8x16x32xbf16> to vector<128x32xbf16>
    %c0_29 = arith.constant 0 : index
    %c9 = arith.constant 9 : index
    %c0_30 = arith.constant 0 : index
    %35 = vector.load %arg11[%c0_29, %c9, %c0_30] : memref<10x32x32xbf16, #tpu.memory_space<vmem>>, vector<8x16x32xbf16>
    %36 = vector.shape_cast %35 : vector<8x16x32xbf16> to vector<128x32xbf16>
    %c1 = arith.constant 1 : index
    %c7_31 = arith.constant 7 : index
    %c0_32 = arith.constant 0 : index
    %37 = vector.load %arg11[%c1, %c7_31, %c0_32] : memref<10x32x32xbf16, #tpu.memory_space<vmem>>, vector<8x16x32xbf16>
    %38 = vector.shape_cast %37 : vector<8x16x32xbf16> to vector<128x32xbf16>
    %c1_33 = arith.constant 1 : index
    %c8_34 = arith.constant 8 : index
    %c0_35 = arith.constant 0 : index
    %39 = vector.load %arg11[%c1_33, %c8_34, %c0_35] : memref<10x32x32xbf16, #tpu.memory_space<vmem>>, vector<8x16x32xbf16>
    %40 = vector.shape_cast %39 : vector<8x16x32xbf16> to vector<128x32xbf16>
    %c1_36 = arith.constant 1 : index
    %c9_37 = arith.constant 9 : index
    %c0_38 = arith.constant 0 : index
    %41 = vector.load %arg11[%c1_36, %c9_37, %c0_38] : memref<10x32x32xbf16, #tpu.memory_space<vmem>>, vector<8x16x32xbf16>
    %42 = vector.shape_cast %41 : vector<8x16x32xbf16> to vector<128x32xbf16>
    %c2 = arith.constant 2 : index
    %c7_39 = arith.constant 7 : index
    %c0_40 = arith.constant 0 : index
    %43 = vector.load %arg11[%c2, %c7_39, %c0_40] : memref<10x32x32xbf16, #tpu.memory_space<vmem>>, vector<8x16x32xbf16>
    %44 = vector.shape_cast %43 : vector<8x16x32xbf16> to vector<128x32xbf16>
    %c2_41 = arith.constant 2 : index
    %c8_42 = arith.constant 8 : index
    %c0_43 = arith.constant 0 : index
    %45 = vector.load %arg11[%c2_41, %c8_42, %c0_43] : memref<10x32x32xbf16, #tpu.memory_space<vmem>>, vector<8x16x32xbf16>
    %46 = vector.shape_cast %45 : vector<8x16x32xbf16> to vector<128x32xbf16>
    %c2_44 = arith.constant 2 : index
    %c9_45 = arith.constant 9 : index
    %c0_46 = arith.constant 0 : index
    %47 = vector.load %arg11[%c2_44, %c9_45, %c0_46] : memref<10x32x32xbf16, #tpu.memory_space<vmem>>, vector<8x16x32xbf16>
    %48 = vector.shape_cast %47 : vector<8x16x32xbf16> to vector<128x32xbf16>
    %49 = tpu.concatenate %32, %34, %36, %38, %40, %42, %44, %46, %48 in 1 : vector<128x32xbf16>, vector<128x32xbf16>, vector<128x32xbf16>, vector<128x32xbf16>, vector<128x32xbf16>, vector<128x32xbf16>, vector<128x32xbf16>, vector<128x32xbf16>, vector<128x32xbf16> -> vector<128x288xbf16>
    %c0_47 = arith.constant 0 : index
    %c0_48 = arith.constant 0 : index
    %50 = vector.load %arg6[%c0_47, %c0_48] : memref<288x32xbf16, #tpu.memory_space<vmem>>, vector<288x32xbf16>
    %cst_49 = arith.constant dense<0.000000e+00> : vector<128x32xf32>
    %51 = tpu.matmul %49, %50, %cst_49 {dimension_numbers = #tpu.dot_dimension_numbers<[1], [0], [0], [1], [0, 0, 1, 1], [], []>} : vector<128x288xbf16>, vector<288x32xbf16>, vector<128x32xf32> -> vector<128x32xf32>
    %c0_50 = arith.constant 0 : index
    %c0_51 = arith.constant 0 : index
    %52 = vector.load %arg7[%c0_50, %c0_51] : memref<1x32xf32, #tpu.memory_space<vmem>>, vector<1x32xf32>
    %53 = vector.broadcast %52 : vector<1x32xf32> to vector<128x32xf32>
    %54 = arith.addf %51, %53 : vector<128x32xf32>
    %cst_52 = arith.constant 0.000000e+00 : f32
    %55 = vector.broadcast %cst_52 : f32 to vector<128x32xf32>
    %56 = arith.maximumf %54, %55 : vector<128x32xf32>
    %57 = arith.truncf %56 : vector<128x32xf32> to vector<128x32xbf16>
    %c0_53 = arith.constant 0 : index
    %c0_54 = arith.constant 0 : index
    %58 = vector.load %arg8[%c0_53, %c0_54] : memref<32x128xbf16, #tpu.memory_space<vmem>>, vector<32x128xbf16>
    %cst_55 = arith.constant dense<0.000000e+00> : vector<128x128xf32>
    %59 = tpu.matmul %57, %58, %cst_55 {dimension_numbers = #tpu.dot_dimension_numbers<[1], [0], [0], [1], [0, 0, 1, 1], [], []>} : vector<128x32xbf16>, vector<32x128xbf16>, vector<128x128xf32> -> vector<128x128xf32>
    %c0_56 = arith.constant 0 : index
    %c0_57 = arith.constant 0 : index
    %60 = vector.load %arg9[%c0_56, %c0_57] : memref<1x128xf32, #tpu.memory_space<vmem>>, vector<1x128xf32>
    %61 = vector.broadcast %60 : vector<1x128xf32> to vector<128x128xf32>
    %62 = arith.addf %59, %61 : vector<128x128xf32>
    %c0_58 = arith.constant 0 : index
    %c0_59 = arith.constant 0 : index
    %c0_60 = arith.constant 0 : index
    %c0_61 = arith.constant 0 : index
    %63 = vector.load %arg2[%c0_58, %c0_59, %c0_60, %c0_61] : memref<1x8x16x128xf32, #tpu.memory_space<vmem>>, vector<1x8x16x128xf32>
    %64 = vector.shape_cast %63 : vector<1x8x16x128xf32> to vector<8x16x128xf32>
    %65 = vector.shape_cast %64 : vector<8x16x128xf32> to vector<128x128xf32>
    %66 = arith.addf %62, %65 : vector<128x128xf32>
    %cst_62 = arith.constant 0.000000e+00 : f32
    %67 = vector.broadcast %cst_62 : f32 to vector<128x128xf32>
    %68 = arith.maximumf %66, %67 : vector<128x128xf32>
    %69 = vector.shape_cast %68 : vector<128x128xf32> to vector<8x16x128xf32>
    %c0_63 = arith.constant 0 : index
    %c0_64 = arith.constant 0 : index
    %c0_65 = arith.constant 0 : index
    %c0_66 = arith.constant 0 : index
    %70 = vector.load %arg10[%c0_63, %c0_64, %c0_65, %c0_66] : memref<1x8x16x128xf32, #tpu.memory_space<vmem>>, vector<1x8x16x128xf32>
    %71 = vector.shape_cast %70 : vector<1x8x16x128xf32> to vector<8x16x128xf32>
    %72 = vector.shape_cast %69 : vector<8x16x128xf32> to vector<1x8x16x128xf32>
    tpu.vector_store %arg10[%c0_63, %c0_64, %c0_65, %c0_66], %72 {strides = array<i32>} : memref<1x8x16x128xf32, #tpu.memory_space<vmem>>, vector<1x8x16x128xf32>,
    return
  }
  func.func @transform_0(%arg0: i32, %arg1: i32) -> (i32, i32, i32, i32) {
    %c0_i32 = arith.constant 0 : i32
    %c0_i32_0 = arith.constant 0 : i32
    %c0_i32_1 = arith.constant 0 : i32
    return %arg0, %arg1, %c0_i32, %c0_i32_0 : i32, i32, i32, i32
  }
  func.func @transform_1(%arg0: i32, %arg1: i32) -> (i32, i32, i32, i32, i32) {
    %c0_i32 = arith.constant 0 : i32
    %c0_i32_0 = arith.constant 0 : i32
    %c0_i32_1 = arith.constant 0 : i32
    %c0_i32_2 = arith.constant 0 : i32
    return %arg0, %arg1, %c0_i32, %c0_i32_0, %c0_i32_1 : i32, i32, i32, i32, i32
  }
  func.func @transform_2(%arg0: i32, %arg1: i32) -> (i32, i32) {
    %c0_i32 = arith.constant 0 : i32
    %c0_i32_0 = arith.constant 0 : i32
    %c0_i32_1 = arith.constant 0 : i32
    return %c0_i32, %c0_i32_0 : i32, i32
  }
  func.func @transform_3(%arg0: i32, %arg1: i32) -> (i32, i32) {
    %c0_i32 = arith.constant 0 : i32
    %c0_i32_0 = arith.constant 0 : i32
    %c0_i32_1 = arith.constant 0 : i32
    return %c0_i32, %c0_i32_0 : i32, i32
  }
  func.func @transform_4(%arg0: i32, %arg1: i32) -> (i32, i32) {
    %c0_i32 = arith.constant 0 : i32
    %c0_i32_0 = arith.constant 0 : i32
    %c0_i32_1 = arith.constant 0 : i32
    return %c0_i32, %c0_i32_0 : i32, i32
  }
  func.func @transform_5(%arg0: i32, %arg1: i32) -> (i32, i32) {
    %c0_i32 = arith.constant 0 : i32
    %c0_i32_0 = arith.constant 0 : i32
    %c0_i32_1 = arith.constant 0 : i32
    return %c0_i32, %c0_i32_0 : i32, i32
  }
  func.func @transform_6(%arg0: i32, %arg1: i32) -> (i32, i32) {
    %c0_i32 = arith.constant 0 : i32
    %c0_i32_0 = arith.constant 0 : i32
    %c0_i32_1 = arith.constant 0 : i32
    return %c0_i32, %c0_i32_0 : i32, i32
  }
  func.func @transform_7(%arg0: i32, %arg1: i32) -> (i32, i32) {
    %c0_i32 = arith.constant 0 : i32
    %c0_i32_0 = arith.constant 0 : i32
    %c0_i32_1 = arith.constant 0 : i32
    return %c0_i32, %c0_i32_0 : i32, i32
  }
  func.func @transform_8(%arg0: i32, %arg1: i32) -> (i32, i32, i32, i32) {
    %c0_i32 = arith.constant 0 : i32
    %c0_i32_0 = arith.constant 0 : i32
    %c0_i32_1 = arith.constant 0 : i32
    return %arg0, %arg1, %c0_i32, %c0_i32_0 : i32, i32, i32, i32
  }
}

</mosaic_0001>

<llo_original>
// kernel: tpu_custom_call.1
$region0: #{tpu_custom_call.1}
  #allocation0 [shape = 'u32[]', space=smem, size = 0x4, offset = 0x4, fixed_abs, tag = 'smem constant byte address 0x4 - core index']
  #allocation1 [shape = 'u32[144,128]{1,0:T(1,128)}', space=vmem, size = 0x12000, scoped, tag = 'internal scratch']
  #allocation2 [shape = 'bf16[10,32,32]{2,1,0:T(8,128)(2,1)}', space=vmem, size = 0x14000, scoped, tag = 'scratch operand']
  %s0 = inlined_call_operand.hbm [shape: f32[2,16,16,128], index: 0, kind: input, shape index: {}]
  %s1 = inlined_call_operand.vmem [shape: f32[2,2,2,16,128], index: 1, kind: input, shape index: {}]
  %s2 = inlined_call_operand.vmem [shape: bf16[128,32], index: 2, kind: input, shape index: {}]
  %s3 = inlined_call_operand.vmem [shape: f32[1,32], index: 3, kind: input, shape index: {}]
  %s4 = inlined_call_operand.vmem [shape: bf16[288,32], index: 4, kind: input, shape index: {}]
  %s5 = inlined_call_operand.vmem [shape: f32[1,32], index: 5, kind: input, shape index: {}]
  %s6 = inlined_call_operand.vmem [shape: bf16[32,128], index: 6, kind: input, shape index: {}]
  %s7 = inlined_call_operand.vmem [shape: f32[1,128], index: 7, kind: input, shape index: {}]
  %s8 = inlined_call_operand.hbm [shape: f32[2,16,16,128], index: 8, kind: output, shape index: {}]
  %s9 = sld [smem:[#allocation0]]
  $region77: #{tpu_custom_call.1} parent=0
    _
  %s11 = ssub.s32 1, %s9
  %s12 = scalar_select 0, %s11, %s9
  $region1: #{tpu_custom_call.1} parent=0
    #allocation3 [shape = 'u8[131072]{0}', space=vmem, size = 0x20000, scoped, tag = 'input window, operand 0']
    #allocation4 [shape = 's32[2]{0}', space=sflag, size = 0x8, scoped, tag = 'scoped memory for tpu_custom_call.1']
    #allocation5 [shape = 's32[2]{0}', space=sflag, size = 0x8, scoped, tag = 'scoped memory for tpu_custom_call.1']
    #allocation6 [shape = 'u8[131072]{0}', space=vmem, size = 0x20000, scoped, tag = 'output window, operand 0']
    %13 = vsyncpa [#allocation4], 0
    %s14 = scalar_lea.sflag [#allocation4], 1
    %15 = vsyncpa %s14, 0
    %16 = vsyncpa [#allocation5], 0
    %s17 = scalar_lea.sflag [#allocation5], 1
    %18 = vsyncpa %s17, 0
    loop: start=0, step=1, limit=6
    $region2: #{tpu_custom_call.1} parent=1 // loop_pre_header
      _
    $region3: #{tpu_custom_call.1} parent=1 // loop_header
      %s20 = sphi 0, %s24
      %p21 = scmp.ge.s32.totalorder %s20, 6
      %s27 = sphi 0, %s39
      %s28 = sphi 0, %s35
      %s29 = sphi 0, %s27
      %s30 = sphi 0, %s28
      %s31 = sphi 0, %s29
      %s32 = sphi 0, %s30
      %s44 = sphi 0, %s46
      %s47 = sphi 0, %s44
      %s48 = sphi 0, %s47
      %s64 = sphi 0, %s48
      %s72 = sphi 0, %s74
      %s75 = sphi 0, %s72
      %s76 = sphi 0, %s75
      %s92 = sphi 0, %s76
      %s96 = sphi 0, %s96
      %s98 = sphi 0, %s96
      %s99 = sphi 0, %s98
      %s113 = sphi 0, %s99
      %s117 = sphi 0, %s117
      %s119 = sphi 0, %s117
      %s120 = sphi 0, %s119
      %s134 = sphi 0, %s120
      %s138 = sphi 0, %s138
      %s140 = sphi 0, %s138
      %s141 = sphi 0, %s140
      %s155 = sphi 0, %s141
      %s159 = sphi 0, %s159
      %s161 = sphi 0, %s159
      %s162 = sphi 0, %s161
      %s176 = sphi 0, %s162
      %s180 = sphi 0, %s180
      %s182 = sphi 0, %s180
      %s183 = sphi 0, %s182
      %s197 = sphi 0, %s183
      %s201 = sphi 0, %s201
      %s203 = sphi 0, %s201
      %s204 = sphi 0, %s203
      %s218 = sphi 0, %s204
      %s226 = sphi 0, %s228
      %s229 = sphi 0, %s226
      %s230 = sphi 0, %s229
      %s246 = sphi 0, %s230
    $region4: #{tpu_custom_call.1} parent=1 // loop_header_branch
      %23 = sbr.rel (%p21) target = $region8
    $region5: #{tpu_custom_call.1} parent=1 // loop_body
      %s25 = ssub.s32 %s20, 1
      %s26 = ssub.s32 %s20, 2
      %s33 = sadd.s32 1, %s28
      %p34 = scmp.ge.s32.totalorder %s33, 2
      %s35 = scalar_select %p34, 0, %s33
      %s36 = sadd.s32 1, %s27
      %s37 = scalar_select %p34, %s36, %s27
      %p38 = scmp.ge.s32.totalorder %s37, 2
      %s39 = scalar_select %p38, 0, %s37
      %s40 = ssub.s32 %s27, %s39
      %s41 = ssub.s32 %s28, %s35
      %s42 = sor.u32 %s40, %s41
      %p43 = scmp.eq.s32.totalorder %s42, 0
      %s45 = sadd.s32 %s44, 1
      %s46 = scalar_select %p43, %s44, %s45
      %p49 = pneg %p43
      %p50 = scmp.eq.s32.totalorder %s20, 3
      %p51 = por %p49, %p50
      %p52 = scmp.ne.s32.totalorder %s44, %s47
      %p53 = scmp.eq.s32.totalorder %s20, 0
      %p54 = por %p52, %p53
      %p55 = scmp.ne.s32.totalorder %s44, %s47
      %p56 = scmp.eq.s32.totalorder %s25, 3
      %p57 = por %p55, %p56
      %p58 = scmp.ne.s32.totalorder %s47, %s48
      %p59 = scmp.eq.s32.totalorder %s25, 0
      %p60 = por %p58, %p59
      %p61 = scmp.ne.s32.totalorder %s47, %s48
      %p62 = scmp.eq.s32.totalorder %s26, 3
      %p63 = por %p61, %p62
      %p65 = scmp.ne.s32.totalorder %s48, %s64
      %p66 = scmp.eq.s32.totalorder %s26, 0
      %p67 = por %p65, %p66
      %s68 = ssub.s32 %s27, %s39
      %s69 = ssub.s32 %s28, %s35
      %s70 = sor.u32 %s68, %s69
      %p71 = scmp.eq.s32.totalorder %s70, 0
      %s73 = sadd.s32 %s72, 1
      %s74 = scalar_select %p71, %s72, %s73
      %p77 = pneg %p71
      %p78 = scmp.eq.s32.totalorder %s20, 3
      %p79 = por %p77, %p78
      %p80 = scmp.ne.s32.totalorder %s72, %s75
      %p81 = scmp.eq.s32.totalorder %s20, 0
      %p82 = por %p80, %p81
      %p83 = scmp.ne.s32.totalorder %s72, %s75
      %p84 = scmp.eq.s32.totalorder %s25, 3
      %p85 = por %p83, %p84
      %p86 = scmp.ne.s32.totalorder %s75, %s76
      %p87 = scmp.eq.s32.totalorder %s25, 0
      %p88 = por %p86, %p87
      %p89 = scmp.ne.s32.totalorder %s75, %s76
      %p90 = scmp.eq.s32.totalorder %s26, 3
      %p91 = por %p89, %p90
      %p93 = scmp.ne.s32.totalorder %s76, %s92
      %p94 = scmp.eq.s32.totalorder %s26, 0
      %p95 = por %p93, %p94
      %s97 = sadd.s32 %s96, 1
      %p100 = scmp.eq.s32.totalorder %s20, 3
      %p101 = scmp.ne.s32.totalorder %s96, %s98
      %p102 = scmp.eq.s32.totalorder %s20, 0
      %p103 = por %p101, %p102
      %p104 = scmp.ne.s32.totalorder %s96, %s98
      %p105 = scmp.eq.s32.totalorder %s25, 3
      %p106 = por %p104, %p105
      %p107 = scmp.ne.s32.totalorder %s98, %s99
      %p108 = scmp.eq.s32.totalorder %s25, 0
      %p109 = por %p107, %p108
      %p110 = scmp.ne.s32.totalorder %s98, %s99
      %p111 = scmp.eq.s32.totalorder %s26, 3
      %p112 = por %p110, %p111
      %p114 = scmp.ne.s32.totalorder %s99, %s113
      %p115 = scmp.eq.s32.totalorder %s26, 0
      %p116 = por %p114, %p115
      %s118 = sadd.s32 %s117, 1
      %p121 = scmp.eq.s32.totalorder %s20, 3
      %p122 = scmp.ne.s32.totalorder %s117, %s119
      %p123 = scmp.eq.s32.totalorder %s20, 0
      %p124 = por %p122, %p123
      %p125 = scmp.ne.s32.totalorder %s117, %s119
      %p126 = scmp.eq.s32.totalorder %s25, 3
      %p127 = por %p125, %p126
      %p128 = scmp.ne.s32.totalorder %s119, %s120
      %p129 = scmp.eq.s32.totalorder %s25, 0
      %p130 = por %p128, %p129
      %p131 = scmp.ne.s32.totalorder %s119, %s120
      %p132 = scmp.eq.s32.totalorder %s26, 3
      %p133 = por %p131, %p132
      %p135 = scmp.ne.s32.totalorder %s120, %s134
      %p136 = scmp.eq.s32.totalorder %s26, 0
      %p137 = por %p135, %p136
      %s139 = sadd.s32 %s138, 1
      %p142 = scmp.eq.s32.totalorder %s20, 3
      %p143 = scmp.ne.s32.totalorder %s138, %s140
      %p144 = scmp.eq.s32.totalorder %s20, 0
      %p145 = por %p143, %p144
      %p146 = scmp.ne.s32.totalorder %s138, %s140
      %p147 = scmp.eq.s32.totalorder %s25, 3
      %p148 = por %p146, %p147
      %p149 = scmp.ne.s32.totalorder %s140, %s141
      %p150 = scmp.eq.s32.totalorder %s25, 0
      %p151 = por %p149, %p150
      %p152 = scmp.ne.s32.totalorder %s140, %s141
      %p153 = scmp.eq.s32.totalorder %s26, 3
      %p154 = por %p152, %p153
      %p156 = scmp.ne.s32.totalorder %s141, %s155
      %p157 = scmp.eq.s32.totalorder %s26, 0
      %p158 = por %p156, %p157
      %s160 = sadd.s32 %s159, 1
      %p163 = scmp.eq.s32.totalorder %s20, 3
      %p164 = scmp.ne.s32.totalorder %s159, %s161
      %p165 = scmp.eq.s32.totalorder %s20, 0
      %p166 = por %p164, %p165
      %p167 = scmp.ne.s32.totalorder %s159, %s161
      %p168 = scmp.eq.s32.totalorder %s25, 3
      %p169 = por %p167, %p168
      %p170 = scmp.ne.s32.totalorder %s161, %s162
      %p171 = scmp.eq.s32.totalorder %s25, 0
      %p172 = por %p170, %p171
      %p173 = scmp.ne.s32.totalorder %s161, %s162
      %p174 = scmp.eq.s32.totalorder %s26, 3
      %p175 = por %p173, %p174
      %p177 = scmp.ne.s32.totalorder %s162, %s176
      %p178 = scmp.eq.s32.totalorder %s26, 0
      %p179 = por %p177, %p178
      %s181 = sadd.s32 %s180, 1
      %p184 = scmp.eq.s32.totalorder %s20, 3
      %p185 = scmp.ne.s32.totalorder %s180, %s182
      %p186 = scmp.eq.s32.totalorder %s20, 0
      %p187 = por %p185, %p186
      %p188 = scmp.ne.s32.totalorder %s180, %s182
      %p189 = scmp.eq.s32.totalorder %s25, 3
      %p190 = por %p188, %p189
      %p191 = scmp.ne.s32.totalorder %s182, %s183
      %p192 = scmp.eq.s32.totalorder %s25, 0
      %p193 = por %p191, %p192
      %p194 = scmp.ne.s32.totalorder %s182, %s183
      %p195 = scmp.eq.s32.totalorder %s26, 3
      %p196 = por %p194, %p195
      %p198 = scmp.ne.s32.totalorder %s183, %s197
      %p199 = scmp.eq.s32.totalorder %s26, 0
      %p200 = por %p198, %p199
      %s202 = sadd.s32 %s201, 1
      %p205 = scmp.eq.s32.totalorder %s20, 3
      %p206 = scmp.ne.s32.totalorder %s201, %s203
      %p207 = scmp.eq.s32.totalorder %s20, 0
      %p208 = por %p206, %p207
      %p209 = scmp.ne.s32.totalorder %s201, %s203
      %p210 = scmp.eq.s32.totalorder %s25, 3
      %p211 = por %p209, %p210
      %p212 = scmp.ne.s32.totalorder %s203, %s204
      %p213 = scmp.eq.s32.totalorder %s25, 0
      %p214 = por %p212, %p213
      %p215 = scmp.ne.s32.totalorder %s203, %s204
      %p216 = scmp.eq.s32.totalorder %s26, 3
      %p217 = por %p215, %p216
      %p219 = scmp.ne.s32.totalorder %s204, %s218
      %p220 = scmp.eq.s32.totalorder %s26, 0
      %p221 = por %p219, %p220
      %s222 = ssub.s32 %s27, %s39
      %s223 = ssub.s32 %s28, %s35
      %s224 = sor.u32 %s222, %s223
      %p225 = scmp.eq.s32.totalorder %s224, 0
      %s227 = sadd.s32 %s226, 1
      %s228 = scalar_select %p225, %s226, %s227
      %p231 = pneg %p225
      %p232 = scmp.eq.s32.totalorder %s20, 3
      %p233 = por %p231, %p232
      %p234 = scmp.ne.s32.totalorder %s226, %s229
      %p235 = scmp.eq.s32.totalorder %s20, 0
      %p236 = por %p234, %p235
      %p237 = scmp.ne.s32.totalorder %s226, %s229
      %p238 = scmp.eq.s32.totalorder %s25, 3
      %p239 = por %p237, %p238
      %p240 = scmp.ne.s32.totalorder %s229, %s230
      %p241 = scmp.eq.s32.totalorder %s25, 0
      %p242 = por %p240, %p241
      %p243 = scmp.ne.s32.totalorder %s229, %s230
      %p244 = scmp.eq.s32.totalorder %s26, 3
      %p245 = por %p243, %p244
      %p247 = scmp.ne.s32.totalorder %s230, %s246
      %p248 = scmp.eq.s32.totalorder %s26, 0
      %p249 = por %p247, %p248
      %p250 = scmp.le.s32.totalorder 1, %s20
      %p251 = scmp.lt.s32.totalorder %s20, 5
      %p252 = pnand %p250, %p251
      %p253 = pneg %p252
      // Predicated region
      $region9: #{tpu_custom_call.1} parent=5 // pred_check
        _
      $region10: #{tpu_custom_call.1} parent=5 // pred_check_branch
        %255 = sbr.rel (%p252) target = $region12
      $region11: #{tpu_custom_call.1} parent=5 // pred_region
        %s256 = ssub.s32 %s20, 1
        // Predicated region
        $region13: #{tpu_custom_call.1} parent=11 // pred_check
          %p257 = pneg %p109
        $region14: #{tpu_custom_call.1} parent=11 // pred_check_branch
          %259 = sbr.rel (%p257) target = $region16
        $region15: #{tpu_custom_call.1} parent=11 // pred_region
          _
        $region16: #{tpu_custom_call.1} parent=11 // pred_fallthru
          _
        // Predicated region
        $region17: #{tpu_custom_call.1} parent=11 // pred_check
          %p260 = pneg %p130
        $region18: #{tpu_custom_call.1} parent=11 // pred_check_branch
          %262 = sbr.rel (%p260) target = $region20
        $region19: #{tpu_custom_call.1} parent=11 // pred_region
          _
        $region20: #{tpu_custom_call.1} parent=11 // pred_fallthru
          _
        // Predicated region
        $region21: #{tpu_custom_call.1} parent=11 // pred_check
          %p263 = pneg %p151
        $region22: #{tpu_custom_call.1} parent=11 // pred_check_branch
          %265 = sbr.rel (%p263) target = $region24
        $region23: #{tpu_custom_call.1} parent=11 // pred_region
          _
        $region24: #{tpu_custom_call.1} parent=11 // pred_fallthru
          _
        // Predicated region
        $region25: #{tpu_custom_call.1} parent=11 // pred_check
          %p266 = pneg %p172
        $region26: #{tpu_custom_call.1} parent=11 // pred_check_branch
          %268 = sbr.rel (%p266) target = $region28
        $region27: #{tpu_custom_call.1} parent=11 // pred_region
          _
        $region28: #{tpu_custom_call.1} parent=11 // pred_fallthru
          _
        // Predicated region
        $region29: #{tpu_custom_call.1} parent=11 // pred_check
          %p269 = pneg %p193
        $region30: #{tpu_custom_call.1} parent=11 // pred_check_branch
          %271 = sbr.rel (%p269) target = $region32
        $region31: #{tpu_custom_call.1} parent=11 // pred_region
          _
        $region32: #{tpu_custom_call.1} parent=11 // pred_fallthru
          _
        // Predicated region
        $region33: #{tpu_custom_call.1} parent=11 // pred_check
          %p272 = pneg %p214
        $region34: #{tpu_custom_call.1} parent=11 // pred_check_branch
          %274 = sbr.rel (%p272) target = $region36
        $region35: #{tpu_custom_call.1} parent=11 // pred_region
          _
        $region36: #{tpu_custom_call.1} parent=11 // pred_fallthru
          _
      $region12: #{tpu_custom_call.1} parent=5 // pred_fallthru
        _
      %p275 = scmp.lt.s32.totalorder %s20, 4
      // Predicated region
      $region37: #{tpu_custom_call.1} parent=5 // pred_check
        %p276 = pneg %p275
      $region38: #{tpu_custom_call.1} parent=5 // pred_check_branch
        %278 = sbr.rel (%p276) target = $region40
      $region39: #{tpu_custom_call.1} parent=5 // pred_region
        // Predicated region
        $region41: #{tpu_custom_call.1} parent=39 // pred_check
          %p279 = pneg %p54
        $region42: #{tpu_custom_call.1} parent=39 // pred_check_branch
          %281 = sbr.rel (%p279) target = $region44
        $region43: #{tpu_custom_call.1} parent=39 // pred_region
          %s282 = sand.u32 %s44, 1
          %s283 = scalar_lea.sflag [#allocation4], %s282
          %s284 = sand.u32 %s44, 1
          %s285 = smul.addr %s284, 128
          %s286 = scalar_lea.vmem [#allocation3], %s285
          %s287 = smul.u32 8, %s28
          %s289 = ssub.s32 2048, 2048
          %290 = vsyncadd %s283, %s289
          %s291 = smul.addr %s287, 2
          %s292 = smul.addr %s27, 32
          %s293 = sadd.s32 %s291, %s292
          %s294 = smul.addr %s293, 128
          %s295 = scalar_lea.hbm %s0, %s294
          %s296 = sshll.u32 %s286, 4
          %s297 = int_to_ptr.vmem [resolvable:$true] %s296
          %302 = dma.hbm_to_vmem [thread:$0]  %s295, 2048, %s297, %s283, 128, 128, 8
        $region44: #{tpu_custom_call.1} parent=39 // pred_fallthru
          _
        // Predicated region
        $region45: #{tpu_custom_call.1} parent=39 // pred_check
          %p303 = pneg %p82
        $region46: #{tpu_custom_call.1} parent=39 // pred_check_branch
          %305 = sbr.rel (%p303) target = $region48
        $region47: #{tpu_custom_call.1} parent=39 // pred_region
          %p306 = scmp.lt.s32.totalorder %s27, 1
          %s307 = scalar_select %p306, %s27, 1
          %p308 = scmp.lt.s32.totalorder %s28, 1
          %s309 = scalar_select %p308, %s28, 1
          %s310 = smul.addr %s309, 4
          %s311 = smul.addr %s307, 8
          %s312 = sadd.s32 %s310, %s311
          %s313 = smul.addr %s312, 8
          %s314 = scalar_lea.vmem %s1, %s313
        $region48: #{tpu_custom_call.1} parent=39 // pred_fallthru
          _
      $region40: #{tpu_custom_call.1} parent=5 // pred_fallthru
        _
      %p315 = scmp.le.s32.totalorder 1, %s20
      %p316 = scmp.lt.s32.totalorder %s20, 5
      %p317 = pnand %p315, %p316
      %p318 = pneg %p317
      // Predicated region
      $region49: #{tpu_custom_call.1} parent=5 // pred_check
        _
      $region50: #{tpu_custom_call.1} parent=5 // pred_check_branch
        %320 = sbr.rel (%p317) target = $region52
      $region51: #{tpu_custom_call.1} parent=5 // pred_region
        %s321 = ssub.s32 %s20, 1
        %s322 = sand.u32 %s47, 1
        %s323 = scalar_lea.sflag [#allocation4], %s322
        %s324 = sand.u32 %s47, 1
        %s325 = smul.addr %s324, 128
        %s326 = scalar_lea.vmem [#allocation3], %s325
        // Predicated region
        $region53: #{tpu_custom_call.1} parent=51 // pred_check
          %p327 = pneg %p60
        $region54: #{tpu_custom_call.1} parent=51 // pred_check_branch
          %329 = sbr.rel (%p327) target = $region56
        $region55: #{tpu_custom_call.1} parent=51 // pred_region
          %330 = dma.done %s323, 2048
        $region56: #{tpu_custom_call.1} parent=51 // pred_fallthru
          _
        %s331 = sand.u32 %s47, 1
        %s332 = scalar_lea.sflag [#allocation4], %s331
        %s333 = sand.u32 %s47, 1
        %s334 = smul.addr %s333, 128
        %s335 = scalar_lea.vmem [#allocation3], %s334
        %p336 = pneg %p60
        %p337 = pneg %p57
        %p338 = scmp.lt.s32.totalorder %s29, 1
        %s339 = scalar_select %p338, %s29, 1
        %p340 = scmp.lt.s32.totalorder %s30, 1
        %s341 = scalar_select %p340, %s30, 1
        %s342 = smul.addr %s341, 4
        %s343 = smul.addr %s339, 8
        %s344 = sadd.s32 %s342, %s343
        %s345 = smul.addr %s344, 8
        %s346 = scalar_lea.vmem %s1, %s345
        %p347 = pneg %p88
        %p348 = pneg %p85
        %p349 = pneg %p109
        %p350 = pneg %p106
        %p351 = pneg %p130
        %p352 = pneg %p127
        %p353 = pneg %p151
        %p354 = pneg %p148
        %p355 = pneg %p172
        %p356 = pneg %p169
        %p357 = pneg %p193
        %p358 = pneg %p190
        %p359 = pneg %p214
        %p360 = pneg %p211
        %p361 = pneg %p242
        %p362 = pneg %p239
        %s363 = sand.u32 %s229, 1
        %s364 = scalar_lea.sflag [#allocation5], %s363
        %s365 = sand.u32 %s229, 1
        %s366 = smul.addr %s365, 128
        %s367 = scalar_lea.vmem [#allocation6], %s366
        %s368 = smul.u32 8, %s30
        %p369 = scmp.lt.s32.totalorder %s29, 1
        %s370 = scalar_select %p369, %s29, 1
        %p371 = scmp.lt.s32.totalorder %s30, 1
        %s372 = scalar_select %p371, %s30, 1
        %s373 = smul.addr %s372, 4
        %s374 = smul.addr %s370, 8
        %s375 = sadd.s32 %s373, %s374
        %s376 = smul.addr %s375, 8
        %s377 = scalar_lea.vmem %s1, %s376
        %s378 = smul.u32 8, %s30
        %vm380 = vcmask 257027
        %vm381 = vsmask.f32 7950
        %vm382 = vmand %vm380, %vm381
        %v383 = vld [vmem:[#allocation2] sm:$0x8]
        %v384 = vsel %vm382, 0, %v383
        %385 = vst [vmem:[#allocation2] sm:$0x8] %v384
        %v386 = vld [vmem:[#allocation2 + $0x10] sm:$0x8]
        %v387 = vsel %vm382, 0, %v386
        %388 = vst [vmem:[#allocation2 + $0x10] sm:$0x8] %v387
        %v389 = vld [vmem:[#allocation2 + $0x20] sm:$0x8]
        %v390 = vsel %vm382, 0, %v389
        %391 = vst [vmem:[#allocation2 + $0x20] sm:$0x8] %v390
        %v392 = vld [vmem:[#allocation2 + $0x30] sm:$0x8]
        %v393 = vsel %vm382, 0, %v392
        %394 = vst [vmem:[#allocation2 + $0x30] sm:$0x8] %v393
        %v395 = vld [vmem:[#allocation2 + $0x40] sm:$0x8]
        %v396 = vsel %vm382, 0, %v395
        %397 = vst [vmem:[#allocation2 + $0x40] sm:$0x8] %v396
        %v398 = vld [vmem:[#allocation2 + $0x50] sm:$0x8]
        %v399 = vsel %vm382, 0, %v398
        %400 = vst [vmem:[#allocation2 + $0x50] sm:$0x8] %v399
        %v401 = vld [vmem:[#allocation2 + $0x60] sm:$0x8]
        %v402 = vsel %vm382, 0, %v401
        %403 = vst [vmem:[#allocation2 + $0x60] sm:$0x8] %v402
        %v404 = vld [vmem:[#allocation2 + $0x70] sm:$0x8]
        %v405 = vsel %vm382, 0, %v404
        %406 = vst [vmem:[#allocation2 + $0x70] sm:$0x8] %v405
        %v407 = vld [vmem:[#allocation2 + $0x80] sm:$0x8]
        %v408 = vsel %vm382, 0, %v407
        %409 = vst [vmem:[#allocation2 + $0x80] sm:$0x8] %v408
        %v410 = vld [vmem:[#allocation2 + $0x90] sm:$0x8]
        %v411 = vsel %vm382, 0, %v410
        %412 = vst [vmem:[#allocation2 + $0x90] sm:$0x8] %v411
        %vm413 = vcmask 253952
        %vm414 = vsmask.f32 256
        %vm415 = vmand %vm413, %vm414
        %v416 = vld [vmem:[#allocation2 + $0xc] sm:$0x1]
        %v417 = vsel %vm415, 0, %v416
        %418 = vst [vmem:[#allocation2 + $0xc] sm:$0x1] %v417
        %v419 = vld [vmem:[#allocation2 + $0x1c] sm:$0x1]
        %v420 = vsel %vm415, 0, %v419
        %421 = vst [vmem:[#allocation2 + $0x1c] sm:$0x1] %v420
        %v422 = vld [vmem:[#allocation2 + $0x2c] sm:$0x1]
        %v423 = vsel %vm415, 0, %v422
        %424 = vst [vmem:[#allocation2 + $0x2c] sm:$0x1] %v423
        %v425 = vld [vmem:[#allocation2 + $0x3c] sm:$0x1]
        %v426 = vsel %vm415, 0, %v425
        %427 = vst [vmem:[#allocation2 + $0x3c] sm:$0x1] %v426
        %v428 = vld [vmem:[#allocation2 + $0x4c] sm:$0x1]
        %v429 = vsel %vm415, 0, %v428
        %430 = vst [vmem:[#allocation2 + $0x4c] sm:$0x1] %v429
        %v431 = vld [vmem:[#allocation2 + $0x5c] sm:$0x1]
        %v432 = vsel %vm415, 0, %v431
        %433 = vst [vmem:[#allocation2 + $0x5c] sm:$0x1] %v432
        %v434 = vld [vmem:[#allocation2 + $0x6c] sm:$0x1]
        %v435 = vsel %vm415, 0, %v434
        %436 = vst [vmem:[#allocation2 + $0x6c] sm:$0x1] %v435
        %v437 = vld [vmem:[#allocation2 + $0x7c] sm:$0x1]
        %v438 = vsel %vm415, 0, %v437
        %439 = vst [vmem:[#allocation2 + $0x7c] sm:$0x1] %v438
        %v440 = vld [vmem:[#allocation2 + $0x8c] sm:$0x1]
        %v441 = vsel %vm415, 0, %v440
        %442 = vst [vmem:[#allocation2 + $0x8c] sm:$0x1] %v441
        %v443 = vld [vmem:[#allocation2 + $0x9c] sm:$0x1]
        %v444 = vsel %vm415, 0, %v443
        %445 = vst [vmem:[#allocation2 + $0x9c] sm:$0x1] %v444
        %v446 = vld [vmem:[%s377] sm:$0xff]
        %v447 = vld [vmem:[%s377 + $0x8] sm:$0xff]
        %v448 = vld [vmem:[%s377 + $0x10] sm:$0xff]
        %v449 = vld [vmem:[%s377 + $0x18] sm:$0xff]
        %v450 = vpack.c.bf16 %v447, %v446
        %v451 = vld [vmem:[%s326] sm:$0xff]
        %v452 = vld [vmem:[%s326 + $0x8] sm:$0xff]
        %v453 = vld [vmem:[%s326 + $0x10] sm:$0xff]
        %v454 = vld [vmem:[%s326 + $0x18] sm:$0xff]
        %v455 = vld [vmem:[%s326 + $0x20] sm:$0xff]
        %v456 = vld [vmem:[%s326 + $0x28] sm:$0xff]
        %v457 = vld [vmem:[%s326 + $0x30] sm:$0xff]
        %v458 = vld [vmem:[%s326 + $0x38] sm:$0xff]
        %v459 = vld [vmem:[%s326 + $0x40] sm:$0xff]
        %v460 = vld [vmem:[%s326 + $0x48] sm:$0xff]
        %v461 = vld [vmem:[%s326 + $0x50] sm:$0xff]
        %v462 = vld [vmem:[%s326 + $0x58] sm:$0xff]
        %v463 = vld [vmem:[%s326 + $0x60] sm:$0xff]
        %v464 = vld [vmem:[%s326 + $0x68] sm:$0xff]
        %v465 = vld [vmem:[%s326 + $0x70] sm:$0xff]
        %v466 = vld [vmem:[%s326 + $0x78] sm:$0xff]
        %v467 = vpack.c.bf16 %v452, %v451
        %v468 = vpack.c.bf16 %v454, %v453
        %v469 = vpack.c.bf16 %v456, %v455
        %v470 = vpack.c.bf16 %v458, %v457
        %v471 = vpack.c.bf16 %v460, %v459
        %v472 = vpack.c.bf16 %v462, %v461
        %v473 = vpack.c.bf16 %v464, %v463
        %v474 = vpack.c.bf16 %v466, %v465
        %v475 = vpack.c.bf16 %v449, %v448
        %v476 = vld [vmem:[%s2] sm:$0xf]
        %v477 = vld [vmem:[%s2 + $0x4] sm:$0xf]
        %v478 = vld [vmem:[%s2 + $0x8] sm:$0xf]
        %v479 = vld [vmem:[%s2 + $0xc] sm:$0xf]
        %v480 = vld [vmem:[%s2 + $0x10] sm:$0xf]
        %v481 = vld [vmem:[%s2 + $0x14] sm:$0xf]
        %v482 = vld [vmem:[%s2 + $0x18] sm:$0xf]
        %v483 = vld [vmem:[%s2 + $0x1c] sm:$0xf]
        %v484 = vld [vmem:[%s2 + $0x20] sm:$0xf]
        %v485 = vld [vmem:[%s2 + $0x24] sm:$0xf]
        %v486 = vld [vmem:[%s2 + $0x28] sm:$0xf]
        %v487 = vld [vmem:[%s2 + $0x2c] sm:$0xf]
        %v488 = vld [vmem:[%s2 + $0x30] sm:$0xf]
        %v489 = vld [vmem:[%s2 + $0x34] sm:$0xf]
        %v490 = vld [vmem:[%s2 + $0x38] sm:$0xf]
        %v491 = vld [vmem:[%s2 + $0x3c] sm:$0xf]
        %v492 = vld [vmem:[%s3] sm:$0x1]
        %v494 = vlaneseq
        %v495 = vshrl.u32 %v494, 7
        %v496 = vsub.s32 0, %v495
        %v497 = vrot.slane %v492, %v496
        %v515 = vunpack.c.l.b16 %v476
        %v516 = vunpack.c.l.b16 %v477
        %v517 = vunpack.c.l.b16 %v478
        %v518 = vunpack.c.l.b16 %v479
        %v519 = vunpack.c.l.b16 %v480
        %v520 = vunpack.c.l.b16 %v481
        %v521 = vunpack.c.l.b16 %v482
        %v522 = vunpack.c.l.b16 %v483
        %v523 = vunpack.c.l.b16 %v484
        %v524 = vunpack.c.l.b16 %v485
        %v525 = vunpack.c.l.b16 %v486
        %v526 = vunpack.c.l.b16 %v487
        %v527 = vunpack.c.l.b16 %v488
        %v528 = vunpack.c.l.b16 %v489
        %v529 = vunpack.c.l.b16 %v490
        %v530 = vunpack.c.l.b16 %v491
        %v531 = vpack.c.b16 %v516, %v515
        %v532 = vpack.c.b16 %v518, %v517
        %v533 = vpack.c.b16 %v520, %v519
        %v534 = vpack.c.b16 %v522, %v521
        %v535 = vpack.c.b16 %v524, %v523
        %v536 = vpack.c.b16 %v526, %v525
        %v537 = vpack.c.b16 %v528, %v527
        %v538 = vpack.c.b16 %v530, %v529
        %547 = vmatprep.subr.bf16.mxu0 0
        %548 = vmatpush1.bf16.msra.mxu0 %v538
        %549 = vmatprep.subr.bf16.mxu0 0
        %550 = vmatpush1.bf16.msra.mxu0 %v537
        %551 = vmatprep.subr.bf16.mxu0 0
        %552 = vmatpush1.bf16.msra.mxu0 %v536
        %553 = vmatprep.subr.bf16.mxu0 0
        %554 = vmatpush1.bf16.msra.mxu0 %v535
        %555 = vmatprep.subr.bf16.mxu0 0
        %556 = vmatpush1.bf16.msra.mxu0 %v534
        %557 = vmatprep.subr.bf16.mxu0 0
        %558 = vmatpush1.bf16.msra.mxu0 %v533
        %559 = vmatprep.subr.bf16.mxu0 0
        %560 = vmatpush1.bf16.msra.mxu0 %v532
        %561 = vmatprep.subr.bf16.mxu0 0
        %562 = vmatpush1.bf16.msra.mxu0 %v531
        %563 = vmatprep.subr.bf16.mxu0 0
        %564 = vmatpush2.bf16.msra.mxu0 0
        %565 = vmatprep.subr.bf16.mxu0 0
        %566 = vmatpush2.bf16.msra.mxu0 0
        %567 = vmatprep.subr.bf16.mxu0 0
        %568 = vmatpush2.bf16.msra.mxu0 0
        %569 = vmatprep.subr.bf16.mxu0 0
        %570 = vmatpush2.bf16.msra.mxu0 0
        %571 = vmatprep.subr.bf16.mxu0 0
        %572 = vmatpush2.bf16.msra.mxu0 0
        %573 = vmatprep.subr.bf16.mxu0 0
        %574 = vmatpush2.bf16.msra.mxu0 0
        %575 = vmatprep.subr.bf16.mxu0 0
        %576 = vmatpush2.bf16.msra.mxu0 0
        %577 = vmatprep.subr.bf16.mxu0 0
        %578 = vmatpush2.bf16.msra.mxu0 0
        %579 = vmatprep.mubr.bf16.mxu0 0
        %580 = vmatmul.mubr.bf16.gmra.mxu0 %v450
        %v581 = vpop.f32.mrf.mxu0
        %v582 = vadd.f32 %v497, %v581
        %v583 = vpop.f32.mrf.mxu0
        %v584 = vpop.f32.mrf.mxu0
        %v585 = vadd.f32 %v497, %v584
        %v586 = vpop.f32.mrf.mxu0
        %587 = vmatprep.mubr.bf16.mxu0 0
        %588 = vmatmul.mubr.bf16.gmra.mxu0 %v467
        %v589 = vpop.f32.mrf.mxu0
        %v590 = vadd.f32 %v497, %v589
        %v591 = vpop.f32.mrf.mxu0
        %v592 = vpop.f32.mrf.mxu0
        %v593 = vadd.f32 %v497, %v592
        %v594 = vpop.f32.mrf.mxu0
        %595 = vmatprep.mubr.bf16.mxu0 0
        %596 = vmatmul.mubr.bf16.gmra.mxu0 %v468
        %v597 = vpop.f32.mrf.mxu0
        %v598 = vadd.f32 %v497, %v597
        %v599 = vpop.f32.mrf.mxu0
        %v600 = vpop.f32.mrf.mxu0
        %v601 = vadd.f32 %v497, %v600
        %v602 = vpop.f32.mrf.mxu0
        %603 = vmatprep.mubr.bf16.mxu0 0
        %604 = vmatmul.mubr.bf16.gmra.mxu0 %v469
        %v605 = vpop.f32.mrf.mxu0
        %v606 = vadd.f32 %v497, %v605
        %v607 = vpop.f32.mrf.mxu0
        %v608 = vpop.f32.mrf.mxu0
        %v609 = vadd.f32 %v497, %v608
        %v610 = vpop.f32.mrf.mxu0
        %611 = vmatprep.mubr.bf16.mxu0 0
        %612 = vmatmul.mubr.bf16.gmra.mxu0 %v470
        %v613 = vpop.f32.mrf.mxu0
        %v614 = vadd.f32 %v497, %v613
        %v615 = vpop.f32.mrf.mxu0
        %v616 = vpop.f32.mrf.mxu0
        %v617 = vadd.f32 %v497, %v616
        %v618 = vpop.f32.mrf.mxu0
        %619 = vmatprep.mubr.bf16.mxu0 0
        %620 = vmatmul.mubr.bf16.gmra.mxu0 %v471
        %v621 = vpop.f32.mrf.mxu0
        %v622 = vadd.f32 %v497, %v621
        %v623 = vpop.f32.mrf.mxu0
        %v624 = vpop.f32.mrf.mxu0
        %v625 = vadd.f32 %v497, %v624
        %v626 = vpop.f32.mrf.mxu0
        %627 = vmatprep.mubr.bf16.mxu0 0
        %628 = vmatmul.mubr.bf16.gmra.mxu0 %v472
        %v629 = vpop.f32.mrf.mxu0
        %v630 = vadd.f32 %v497, %v629
        %v631 = vpop.f32.mrf.mxu0
        %v632 = vpop.f32.mrf.mxu0
        %v633 = vadd.f32 %v497, %v632
        %v634 = vpop.f32.mrf.mxu0
        %635 = vmatprep.mubr.bf16.mxu0 0
        %636 = vmatmul.mubr.bf16.gmra.mxu0 %v473
        %v637 = vpop.f32.mrf.mxu0
        %v638 = vadd.f32 %v497, %v637
        %v639 = vpop.f32.mrf.mxu0
        %v640 = vpop.f32.mrf.mxu0
        %v641 = vadd.f32 %v497, %v640
        %v642 = vpop.f32.mrf.mxu0
        %643 = vmatprep.mubr.bf16.mxu0 0
        %644 = vmatmul.mubr.bf16.gmra.mxu0 %v474
        %v645 = vpop.f32.mrf.mxu0
        %v646 = vadd.f32 %v497, %v645
        %v647 = vpop.f32.mrf.mxu0
        %v648 = vpop.f32.mrf.mxu0
        %v649 = vadd.f32 %v497, %v648
        %v650 = vpop.f32.mrf.mxu0
        %651 = vmatprep.mubr.bf16.mxu0 0
        %652 = vmatmul.mubr.bf16.gmra.mxu0 %v475
        %v653 = vpop.f32.mrf.mxu0
        %v654 = vadd.f32 %v497, %v653
        %v655 = vpop.f32.mrf.mxu0
        %v656 = vpop.f32.mrf.mxu0
        %v657 = vadd.f32 %v497, %v656
        %v658 = vpop.f32.mrf.mxu0
        %659 = vdwg.mxu0
        %v660 = vmax.f32 %v582, 0.0
        %v661 = vmax.f32 %v585, 0.0
        %v662 = vmax.f32 %v590, 0.0
        %v663 = vmax.f32 %v593, 0.0
        %v664 = vmax.f32 %v598, 0.0
        %v665 = vmax.f32 %v601, 0.0
        %v666 = vmax.f32 %v606, 0.0
        %v667 = vmax.f32 %v609, 0.0
        %v668 = vmax.f32 %v614, 0.0
        %v669 = vmax.f32 %v617, 0.0
        %v670 = vmax.f32 %v622, 0.0
        %v671 = vmax.f32 %v625, 0.0
        %v672 = vmax.f32 %v630, 0.0
        %v673 = vmax.f32 %v633, 0.0
        %v674 = vmax.f32 %v638, 0.0
        %v675 = vmax.f32 %v641, 0.0
        %v676 = vmax.f32 %v646, 0.0
        %v677 = vmax.f32 %v649, 0.0
        %v678 = vmax.f32 %v654, 0.0
        %v679 = vmax.f32 %v657, 0.0
        %v680 = vpack.c.bf16 %v661, %v660
        %v681 = vpack.c.bf16 %v663, %v662
        %v682 = vpack.c.bf16 %v665, %v664
        %v683 = vpack.c.bf16 %v667, %v666
        %v684 = vpack.c.bf16 %v669, %v668
        %v685 = vpack.c.bf16 %v671, %v670
        %v686 = vpack.c.bf16 %v673, %v672
        %v687 = vpack.c.bf16 %v675, %v674
        %v688 = vpack.c.bf16 %v677, %v676
        %v689 = vpack.c.bf16 %v679, %v678
        %v700 = vunpack.c.l.b16 %v680
        %v701 = vunpack.c.h.b16 %v680
        %v702 = vunpack.c.l.b16 %v681
        %v703 = vunpack.c.h.b16 %v681
        %v704 = vunpack.c.l.b16 %v682
        %v705 = vunpack.c.h.b16 %v682
        %v706 = vunpack.c.l.b16 %v683
        %v707 = vunpack.c.h.b16 %v683
        %v708 = vunpack.c.l.b16 %v684
        %v709 = vunpack.c.h.b16 %v684
        %v710 = vunpack.c.l.b16 %v685
        %v711 = vunpack.c.h.b16 %v685
        %v712 = vunpack.c.l.b16 %v686
        %v713 = vunpack.c.h.b16 %v686
        %v714 = vunpack.c.l.b16 %v687
        %v715 = vunpack.c.h.b16 %v687
        %v716 = vunpack.c.l.b16 %v688
        %v717 = vunpack.c.h.b16 %v688
        %v718 = vunpack.c.l.b16 %v689
        %v719 = vunpack.c.h.b16 %v689
        %v720 = vpack.c.b16 %v700, %v700
        %v721 = vpack.c.b16 %v701, %v701
        %v722 = vpack.c.b16 %v702, %v702
        %v723 = vpack.c.b16 %v703, %v703
        %v724 = vpack.c.b16 %v704, %v704
        %v725 = vpack.c.b16 %v705, %v705
        %v726 = vpack.c.b16 %v706, %v706
        %v727 = vpack.c.b16 %v707, %v707
        %v728 = vpack.c.b16 %v708, %v708
        %v729 = vpack.c.b16 %v709, %v709
        %v730 = vpack.c.b16 %v710, %v710
        %v731 = vpack.c.b16 %v711, %v711
        %v732 = vpack.c.b16 %v712, %v712
        %v733 = vpack.c.b16 %v713, %v713
        %v734 = vpack.c.b16 %v714, %v714
        %v735 = vpack.c.b16 %v715, %v715
        %v736 = vpack.c.b16 %v716, %v716
        %v737 = vpack.c.b16 %v717, %v717
        %v738 = vpack.c.b16 %v718, %v718
        %v739 = vpack.c.b16 %v719, %v719
        %vm760 = vcmask 257024
        %761 = vst.msk [vmem:[#allocation2 + $0x4] sm:$0xf] %vm760, %v720
        %762 = vst.msk [vmem:[#allocation2 + $0x8] sm:$0xf] %vm760, %v721
        %763 = vst.msk [vmem:[#allocation2 + $0x14] sm:$0xf] %vm760, %v722
        %764 = vst.msk [vmem:[#allocation2 + $0x18] sm:$0xf] %vm760, %v723
        %765 = vst.msk [vmem:[#allocation2 + $0x24] sm:$0xf] %vm760, %v724
        %766 = vst.msk [vmem:[#allocation2 + $0x28] sm:$0xf] %vm760, %v725
        %767 = vst.msk [vmem:[#allocation2 + $0x34] sm:$0xf] %vm760, %v726
        %768 = vst.msk [vmem:[#allocation2 + $0x38] sm:$0xf] %vm760, %v727
        %769 = vst.msk [vmem:[#allocation2 + $0x44] sm:$0xf] %vm760, %v728
        %770 = vst.msk [vmem:[#allocation2 + $0x48] sm:$0xf] %vm760, %v729
        %771 = vst.msk [vmem:[#allocation2 + $0x54] sm:$0xf] %vm760, %v730
        %772 = vst.msk [vmem:[#allocation2 + $0x58] sm:$0xf] %vm760, %v731
        %773 = vst.msk [vmem:[#allocation2 + $0x64] sm:$0xf] %vm760, %v732
        %774 = vst.msk [vmem:[#allocation2 + $0x68] sm:$0xf] %vm760, %v733
        %775 = vst.msk [vmem:[#allocation2 + $0x74] sm:$0xf] %vm760, %v734
        %776 = vst.msk [vmem:[#allocation2 + $0x78] sm:$0xf] %vm760, %v735
        %777 = vst.msk [vmem:[#allocation2 + $0x84] sm:$0xf] %vm760, %v736
        %778 = vst.msk [vmem:[#allocation2 + $0x88] sm:$0xf] %vm760, %v737
        %779 = vst.msk [vmem:[#allocation2 + $0x94] sm:$0xf] %vm760, %v738
        %780 = vst.msk [vmem:[#allocation2 + $0x98] sm:$0xf] %vm760, %v739
        %p781 = scmp.eq.s32.totalorder %s30, 0
        // Predicated region
        $region57: #{tpu_custom_call.1} parent=51 // pred_check
          %p782 = pneg %p781
        $region58: #{tpu_custom_call.1} parent=51 // pred_check_branch
          %784 = sbr.rel (%p782) target = $region60
        $region59: #{tpu_custom_call.1} parent=51 // pred_region
          %v785 = vld [vmem:[#allocation2] sm:$0x8]
          %v786 = vsel %vm382, 0, %v785
          %787 = vst [vmem:[#allocation2] sm:$0x8] %v786
          %788 = vst.msk [vmem:[#allocation2 + $0x4] sm:$0xf] %vm760, 0
          %789 = vst.msk [vmem:[#allocation2 + $0x8] sm:$0xf] %vm760, 0
          %v790 = vld [vmem:[#allocation2 + $0xc] sm:$0x1]
          %v791 = vsel %vm415, 0, %v790
          %792 = vst [vmem:[#allocation2 + $0xc] sm:$0x1] %v791
        $region60: #{tpu_custom_call.1} parent=51 // pred_fallthru
          _
        %p793 = scmp.eq.s32.totalorder %s30, 1
        // Predicated region
        $region61: #{tpu_custom_call.1} parent=51 // pred_check
          %p794 = pneg %p793
        $region62: #{tpu_custom_call.1} parent=51 // pred_check_branch
          %796 = sbr.rel (%p794) target = $region64
        $region63: #{tpu_custom_call.1} parent=51 // pred_region
          %s797 = scalar_lea.vmem [#allocation2], 144
          %v798 = vld [vmem:[%s797] sm:$0x8]
          %v799 = vsel %vm382, 0, %v798
          %800 = vst [vmem:[%s797] sm:$0x8] %v799
          %801 = vst.msk [vmem:[%s797 + $0x4] sm:$0xf] %vm760, 0
          %802 = vst.msk [vmem:[%s797 + $0x8] sm:$0xf] %vm760, 0
          %v803 = vld [vmem:[%s797 + $0xc] sm:$0x1]
          %v804 = vsel %vm415, 0, %v803
          %805 = vst [vmem:[%s797 + $0xc] sm:$0x1] %v804
        $region64: #{tpu_custom_call.1} parent=51 // pred_fallthru
          _
        %v806 = vld [vmem:[#allocation2] sm:$0x8]
        %v807 = vld [vmem:[#allocation2 + $0x4] sm:$0xf]
        %v808 = vld [vmem:[#allocation2 + $0x8] sm:$0xf]
        %v809 = vld [vmem:[#allocation2 + $0x10] sm:$0x8]
        %v810 = vld [vmem:[#allocation2 + $0x14] sm:$0xf]
        %v811 = vld [vmem:[#allocation2 + $0x18] sm:$0xf]
        %v812 = vld [vmem:[#allocation2 + $0x20] sm:$0x8]
        %v813 = vld [vmem:[#allocation2 + $0x24] sm:$0xf]
        %v814 = vld [vmem:[#allocation2 + $0x28] sm:$0xf]
        %v815 = vld [vmem:[#allocation2 + $0x30] sm:$0x8]
        %v816 = vld [vmem:[#allocation2 + $0x34] sm:$0xf]
        %v817 = vld [vmem:[#allocation2 + $0x38] sm:$0xf]
        %v818 = vld [vmem:[#allocation2 + $0x40] sm:$0x8]
        %v819 = vld [vmem:[#allocation2 + $0x44] sm:$0xf]
        %v820 = vld [vmem:[#allocation2 + $0x48] sm:$0xf]
        %v821 = vld [vmem:[#allocation2 + $0x50] sm:$0x8]
        %v822 = vld [vmem:[#allocation2 + $0x54] sm:$0xf]
        %v823 = vld [vmem:[#allocation2 + $0x58] sm:$0xf]
        %v824 = vld [vmem:[#allocation2 + $0x60] sm:$0x8]
        %v825 = vld [vmem:[#allocation2 + $0x64] sm:$0xf]
        %v826 = vld [vmem:[#allocation2 + $0x68] sm:$0xf]
        %v827 = vld [vmem:[#allocation2 + $0x70] sm:$0x8]
        %v828 = vld [vmem:[#allocation2 + $0x74] sm:$0xf]
        %v829 = vld [vmem:[#allocation2 + $0x78] sm:$0xf]
        %vm830 = vsmask.f32 4368
        %vm831 = vmor %vm414, %vm830
        %v833 = vshrl.u32 %v806, 16
        %v835 = vrot.slane %v833, 7
        %v836 = vrot.slane %v835, 4
        %v838 = vshrl.u32 %v807, 16
        %v840 = vrot.slane %v838, 7
        %v841 = vshll.u32 %v807, 16
        %v843 = vor.u32 %v840, %v841
        %v844 = vsel %vm831, %v836, %v843
        %v845 = vrot.slane %v840, 4
        %v847 = vshrl.u32 %v808, 16
        %v849 = vrot.slane %v847, 7
        %v850 = vshll.u32 %v808, 16
        %v852 = vor.u32 %v849, %v850
        %v853 = vsel %vm831, %v845, %v852
        %v855 = vshrl.u32 %v809, 16
        %v857 = vrot.slane %v855, 7
        %v858 = vrot.slane %v857, 4
        %v860 = vshrl.u32 %v810, 16
        %v862 = vrot.slane %v860, 7
        %v863 = vshll.u32 %v810, 16
        %v865 = vor.u32 %v862, %v863
        %v866 = vsel %vm831, %v858, %v865
        %v867 = vrot.slane %v862, 4
        %v869 = vshrl.u32 %v811, 16
        %v871 = vrot.slane %v869, 7
        %v872 = vshll.u32 %v811, 16
        %v874 = vor.u32 %v871, %v872
        %v875 = vsel %vm831, %v867, %v874
        %v877 = vshrl.u32 %v812, 16
        %v879 = vrot.slane %v877, 7
        %v880 = vrot.slane %v879, 4
        %v882 = vshrl.u32 %v813, 16
        %v884 = vrot.slane %v882, 7
        %v885 = vshll.u32 %v813, 16
        %v887 = vor.u32 %v884, %v885
        %v888 = vsel %vm831, %v880, %v887
        %v889 = vrot.slane %v884, 4
        %v891 = vshrl.u32 %v814, 16
        %v893 = vrot.slane %v891, 7
        %v894 = vshll.u32 %v814, 16
        %v896 = vor.u32 %v893, %v894
        %v897 = vsel %vm831, %v889, %v896
        %v899 = vshrl.u32 %v815, 16
        %v901 = vrot.slane %v899, 7
        %v902 = vrot.slane %v901, 4
        %v904 = vshrl.u32 %v816, 16
        %v906 = vrot.slane %v904, 7
        %v907 = vshll.u32 %v816, 16
        %v909 = vor.u32 %v906, %v907
        %v910 = vsel %vm831, %v902, %v909
        %v911 = vrot.slane %v906, 4
        %v913 = vshrl.u32 %v817, 16
        %v915 = vrot.slane %v913, 7
        %v916 = vshll.u32 %v817, 16
        %v918 = vor.u32 %v915, %v916
        %v919 = vsel %vm831, %v911, %v918
        %v921 = vshrl.u32 %v818, 16
        %v923 = vrot.slane %v921, 7
        %v924 = vrot.slane %v923, 4
        %v926 = vshrl.u32 %v819, 16
        %v928 = vrot.slane %v926, 7
        %v929 = vshll.u32 %v819, 16
        %v931 = vor.u32 %v928, %v929
        %v932 = vsel %vm831, %v924, %v931
        %v933 = vrot.slane %v928, 4
        %v935 = vshrl.u32 %v820, 16
        %v937 = vrot.slane %v935, 7
        %v938 = vshll.u32 %v820, 16
        %v940 = vor.u32 %v937, %v938
        %v941 = vsel %vm831, %v933, %v940
        %v943 = vshrl.u32 %v821, 16
        %v945 = vrot.slane %v943, 7
        %v946 = vrot.slane %v945, 4
        %v948 = vshrl.u32 %v822, 16
        %v950 = vrot.slane %v948, 7
        %v951 = vshll.u32 %v822, 16
        %v953 = vor.u32 %v950, %v951
        %v954 = vsel %vm831, %v946, %v953
        %v955 = vrot.slane %v950, 4
        %v957 = vshrl.u32 %v823, 16
        %v959 = vrot.slane %v957, 7
        %v960 = vshll.u32 %v823, 16
        %v962 = vor.u32 %v959, %v960
        %v963 = vsel %vm831, %v955, %v962
        %v965 = vshrl.u32 %v824, 16
        %v967 = vrot.slane %v965, 7
        %v968 = vrot.slane %v967, 4
        %v970 = vshrl.u32 %v825, 16
        %v972 = vrot.slane %v970, 7
        %v973 = vshll.u32 %v825, 16
        %v975 = vor.u32 %v972, %v973
        %v976 = vsel %vm831, %v968, %v975
        %v977 = vrot.slane %v972, 4
        %v979 = vshrl.u32 %v826, 16
        %v981 = vrot.slane %v979, 7
        %v982 = vshll.u32 %v826, 16
        %v984 = vor.u32 %v981, %v982
        %v985 = vsel %vm831, %v977, %v984
        %v987 = vshrl.u32 %v827, 16
        %v989 = vrot.slane %v987, 7
        %v990 = vrot.slane %v989, 4
        %v992 = vshrl.u32 %v828, 16
        %v994 = vrot.slane %v992, 7
        %v995 = vshll.u32 %v828, 16
        %v997 = vor.u32 %v994, %v995
        %v998 = vsel %vm831, %v990, %v997
        %v999 = vrot.slane %v994, 4
        %v1001 = vshrl.u32 %v829, 16
        %v1003 = vrot.slane %v1001, 7
        %v1004 = vshll.u32 %v829, 16
        %v1006 = vor.u32 %v1003, %v1004
        %v1007 = vsel %vm831, %v999, %v1006
        %v1008 = vld [vmem:[#allocation2 + $0xc] sm:$0x1]
        %v1009 = vld [vmem:[#allocation2 + $0x1c] sm:$0x1]
        %v1010 = vld [vmem:[#allocation2 + $0x2c] sm:$0x1]
        %v1011 = vld [vmem:[#allocation2 + $0x3c] sm:$0x1]
        %v1012 = vld [vmem:[#allocation2 + $0x4c] sm:$0x1]
        %v1013 = vld [vmem:[#allocation2 + $0x5c] sm:$0x1]
        %v1014 = vld [vmem:[#allocation2 + $0x6c] sm:$0x1]
        %v1015 = vld [vmem:[#allocation2 + $0x7c] sm:$0x1]
        %vm1016 = vsmask.f32 3328
        %vm1017 = vsmask.f32 7440
        %vm1018 = vmor %vm1016, %vm1017
        %v1019 = vrot.slane %v838, 4
        %v1020 = vrot.slane %v841, 5
        %v1021 = vor.u32 %v1019, %v1020
        %v1022 = vrot.slane %v1021, 4
        %v1023 = vrot.slane %v850, 5
        %v1024 = vsel %vm1018, %v1022, %v1023
        %v1025 = vrot.slane %v847, 4
        %v1026 = vor.u32 %v1025, %v1023
        %v1027 = vrot.slane %v1026, 4
        %v1029 = vshll.u32 %v1008, 16
        %v1031 = vrot.slane %v1029, 5
        %v1032 = vsel %vm1018, %v1027, %v1031
        %v1033 = vrot.slane %v860, 4
        %v1034 = vrot.slane %v863, 5
        %v1035 = vor.u32 %v1033, %v1034
        %v1036 = vrot.slane %v1035, 4
        %v1037 = vrot.slane %v872, 5
        %v1038 = vsel %vm1018, %v1036, %v1037
        %v1039 = vrot.slane %v869, 4
        %v1040 = vor.u32 %v1039, %v1037
        %v1041 = vrot.slane %v1040, 4
        %v1043 = vshll.u32 %v1009, 16
        %v1045 = vrot.slane %v1043, 5
        %v1046 = vsel %vm1018, %v1041, %v1045
        %v1047 = vrot.slane %v882, 4
        %v1048 = vrot.slane %v885, 5
        %v1049 = vor.u32 %v1047, %v1048
        %v1050 = vrot.slane %v1049, 4
        %v1051 = vrot.slane %v894, 5
        %v1052 = vsel %vm1018, %v1050, %v1051
        %v1053 = vrot.slane %v891, 4
        %v1054 = vor.u32 %v1053, %v1051
        %v1055 = vrot.slane %v1054, 4
        %v1057 = vshll.u32 %v1010, 16
        %v1059 = vrot.slane %v1057, 5
        %v1060 = vsel %vm1018, %v1055, %v1059
        %v1061 = vrot.slane %v904, 4
        %v1062 = vrot.slane %v907, 5
        %v1063 = vor.u32 %v1061, %v1062
        %v1064 = vrot.slane %v1063, 4
        %v1065 = vrot.slane %v916, 5
        %v1066 = vsel %vm1018, %v1064, %v1065
        %v1067 = vrot.slane %v913, 4
        %v1068 = vor.u32 %v1067, %v1065
        %v1069 = vrot.slane %v1068, 4
        %v1071 = vshll.u32 %v1011, 16
        %v1073 = vrot.slane %v1071, 5
        %v1074 = vsel %vm1018, %v1069, %v1073
        %v1075 = vrot.slane %v926, 4
        %v1076 = vrot.slane %v929, 5
        %v1077 = vor.u32 %v1075, %v1076
        %v1078 = vrot.slane %v1077, 4
        %v1079 = vrot.slane %v938, 5
        %v1080 = vsel %vm1018, %v1078, %v1079
        %v1081 = vrot.slane %v935, 4
        %v1082 = vor.u32 %v1081, %v1079
        %v1083 = vrot.slane %v1082, 4
        %v1085 = vshll.u32 %v1012, 16
        %v1087 = vrot.slane %v1085, 5
        %v1088 = vsel %vm1018, %v1083, %v1087
        %v1089 = vrot.slane %v948, 4
        %v1090 = vrot.slane %v951, 5
        %v1091 = vor.u32 %v1089, %v1090
        %v1092 = vrot.slane %v1091, 4
        %v1093 = vrot.slane %v960, 5
        %v1094 = vsel %vm1018, %v1092, %v1093
        %v1095 = vrot.slane %v957, 4
        %v1096 = vor.u32 %v1095, %v1093
        %v1097 = vrot.slane %v1096, 4
        %v1099 = vshll.u32 %v1013, 16
        %v1101 = vrot.slane %v1099, 5
        %v1102 = vsel %vm1018, %v1097, %v1101
        %v1103 = vrot.slane %v970, 4
        %v1104 = vrot.slane %v973, 5
        %v1105 = vor.u32 %v1103, %v1104
        %v1106 = vrot.slane %v1105, 4
        %v1107 = vrot.slane %v982, 5
        %v1108 = vsel %vm1018, %v1106, %v1107
        %v1109 = vrot.slane %v979, 4
        %v1110 = vor.u32 %v1109, %v1107
        %v1111 = vrot.slane %v1110, 4
        %v1113 = vshll.u32 %v1014, 16
        %v1115 = vrot.slane %v1113, 5
        %v1116 = vsel %vm1018, %v1111, %v1115
        %v1117 = vrot.slane %v992, 4
        %v1118 = vrot.slane %v995, 5
        %v1119 = vor.u32 %v1117, %v1118
        %v1120 = vrot.slane %v1119, 4
        %v1121 = vrot.slane %v1004, 5
        %v1122 = vsel %vm1018, %v1120, %v1121
        %v1123 = vrot.slane %v1001, 4
        %v1124 = vor.u32 %v1123, %v1121
        %v1125 = vrot.slane %v1124, 4
        %v1127 = vshll.u32 %v1015, 16
        %v1129 = vrot.slane %v1127, 5
        %v1130 = vsel %vm1018, %v1125, %v1129
        %s1131 = scalar_lea.vmem [#allocation2], 16
        %v1132 = vld [vmem:[%s1131] sm:$0x8]
        %v1133 = vld [vmem:[%s1131 + $0x4] sm:$0xf]
        %v1134 = vld [vmem:[%s1131 + $0x8] sm:$0xf]
        %v1135 = vld [vmem:[%s1131 + $0x10] sm:$0x8]
        %v1136 = vld [vmem:[%s1131 + $0x14] sm:$0xf]
        %v1137 = vld [vmem:[%s1131 + $0x18] sm:$0xf]
        %v1138 = vld [vmem:[%s1131 + $0x20] sm:$0x8]
        %v1139 = vld [vmem:[%s1131 + $0x24] sm:$0xf]
        %v1140 = vld [vmem:[%s1131 + $0x28] sm:$0xf]
        %v1141 = vld [vmem:[%s1131 + $0x30] sm:$0x8]
        %v1142 = vld [vmem:[%s1131 + $0x34] sm:$0xf]
        %v1143 = vld [vmem:[%s1131 + $0x38] sm:$0xf]
        %v1144 = vld [vmem:[%s1131 + $0x40] sm:$0x8]
        %v1145 = vld [vmem:[%s1131 + $0x44] sm:$0xf]
        %v1146 = vld [vmem:[%s1131 + $0x48] sm:$0xf]
        %v1147 = vld [vmem:[%s1131 + $0x50] sm:$0x8]
        %v1148 = vld [vmem:[%s1131 + $0x54] sm:$0xf]
        %v1149 = vld [vmem:[%s1131 + $0x58] sm:$0xf]
        %v1150 = vld [vmem:[%s1131 + $0x60] sm:$0x8]
        %v1151 = vld [vmem:[%s1131 + $0x64] sm:$0xf]
        %v1152 = vld [vmem:[%s1131 + $0x68] sm:$0xf]
        %v1153 = vld [vmem:[%s1131 + $0x70] sm:$0x8]
        %v1154 = vld [vmem:[%s1131 + $0x74] sm:$0xf]
        %v1155 = vld [vmem:[%s1131 + $0x78] sm:$0xf]
        %v1157 = vshrl.u32 %v1132, 16
        %v1159 = vrot.slane %v1157, 7
        %v1160 = vrot.slane %v1159, 4
        %v1162 = vshrl.u32 %v1133, 16
        %v1164 = vrot.slane %v1162, 7
        %v1165 = vshll.u32 %v1133, 16
        %v1167 = vor.u32 %v1164, %v1165
        %v1168 = vsel %vm831, %v1160, %v1167
        %v1169 = vrot.slane %v1164, 4
        %v1171 = vshrl.u32 %v1134, 16
        %v1173 = vrot.slane %v1171, 7
        %v1174 = vshll.u32 %v1134, 16
        %v1176 = vor.u32 %v1173, %v1174
        %v1177 = vsel %vm831, %v1169, %v1176
        %v1179 = vshrl.u32 %v1135, 16
        %v1181 = vrot.slane %v1179, 7
        %v1182 = vrot.slane %v1181, 4
        %v1184 = vshrl.u32 %v1136, 16
        %v1186 = vrot.slane %v1184, 7
        %v1187 = vshll.u32 %v1136, 16
        %v1189 = vor.u32 %v1186, %v1187
        %v1190 = vsel %vm831, %v1182, %v1189
        %v1191 = vrot.slane %v1186, 4
        %v1193 = vshrl.u32 %v1137, 16
        %v1195 = vrot.slane %v1193, 7
        %v1196 = vshll.u32 %v1137, 16
        %v1198 = vor.u32 %v1195, %v1196
        %v1199 = vsel %vm831, %v1191, %v1198
        %v1201 = vshrl.u32 %v1138, 16
        %v1203 = vrot.slane %v1201, 7
        %v1204 = vrot.slane %v1203, 4
        %v1206 = vshrl.u32 %v1139, 16
        %v1208 = vrot.slane %v1206, 7
        %v1209 = vshll.u32 %v1139, 16
        %v1211 = vor.u32 %v1208, %v1209
        %v1212 = vsel %vm831, %v1204, %v1211
        %v1213 = vrot.slane %v1208, 4
        %v1215 = vshrl.u32 %v1140, 16
        %v1217 = vrot.slane %v1215, 7
        %v1218 = vshll.u32 %v1140, 16
        %v1220 = vor.u32 %v1217, %v1218
        %v1221 = vsel %vm831, %v1213, %v1220
        %v1223 = vshrl.u32 %v1141, 16
        %v1225 = vrot.slane %v1223, 7
        %v1226 = vrot.slane %v1225, 4
        %v1228 = vshrl.u32 %v1142, 16
        %v1230 = vrot.slane %v1228, 7
        %v1231 = vshll.u32 %v1142, 16
        %v1233 = vor.u32 %v1230, %v1231
        %v1234 = vsel %vm831, %v1226, %v1233
        %v1235 = vrot.slane %v1230, 4
        %v1237 = vshrl.u32 %v1143, 16
        %v1239 = vrot.slane %v1237, 7
        %v1240 = vshll.u32 %v1143, 16
        %v1242 = vor.u32 %v1239, %v1240
        %v1243 = vsel %vm831, %v1235, %v1242
        %v1245 = vshrl.u32 %v1144, 16
        %v1247 = vrot.slane %v1245, 7
        %v1248 = vrot.slane %v1247, 4
        %v1250 = vshrl.u32 %v1145, 16
        %v1252 = vrot.slane %v1250, 7
        %v1253 = vshll.u32 %v1145, 16
        %v1255 = vor.u32 %v1252, %v1253
        %v1256 = vsel %vm831, %v1248, %v1255
        %v1257 = vrot.slane %v1252, 4
        %v1259 = vshrl.u32 %v1146, 16
        %v1261 = vrot.slane %v1259, 7
        %v1262 = vshll.u32 %v1146, 16
        %v1264 = vor.u32 %v1261, %v1262
        %v1265 = vsel %vm831, %v1257, %v1264
        %v1267 = vshrl.u32 %v1147, 16
        %v1269 = vrot.slane %v1267, 7
        %v1270 = vrot.slane %v1269, 4
        %v1272 = vshrl.u32 %v1148, 16
        %v1274 = vrot.slane %v1272, 7
        %v1275 = vshll.u32 %v1148, 16
        %v1277 = vor.u32 %v1274, %v1275
        %v1278 = vsel %vm831, %v1270, %v1277
        %v1279 = vrot.slane %v1274, 4
        %v1281 = vshrl.u32 %v1149, 16
        %v1283 = vrot.slane %v1281, 7
        %v1284 = vshll.u32 %v1149, 16
        %v1286 = vor.u32 %v1283, %v1284
        %v1287 = vsel %vm831, %v1279, %v1286
        %v1289 = vshrl.u32 %v1150, 16
        %v1291 = vrot.slane %v1289, 7
        %v1292 = vrot.slane %v1291, 4
        %v1294 = vshrl.u32 %v1151, 16
        %v1296 = vrot.slane %v1294, 7
        %v1297 = vshll.u32 %v1151, 16
        %v1299 = vor.u32 %v1296, %v1297
        %v1300 = vsel %vm831, %v1292, %v1299
        %v1301 = vrot.slane %v1296, 4
        %v1303 = vshrl.u32 %v1152, 16
        %v1305 = vrot.slane %v1303, 7
        %v1306 = vshll.u32 %v1152, 16
        %v1308 = vor.u32 %v1305, %v1306
        %v1309 = vsel %vm831, %v1301, %v1308
        %v1311 = vshrl.u32 %v1153, 16
        %v1313 = vrot.slane %v1311, 7
        %v1314 = vrot.slane %v1313, 4
        %v1316 = vshrl.u32 %v1154, 16
        %v1318 = vrot.slane %v1316, 7
        %v1319 = vshll.u32 %v1154, 16
        %v1321 = vor.u32 %v1318, %v1319
        %v1322 = vsel %vm831, %v1314, %v1321
        %v1323 = vrot.slane %v1318, 4
        %v1325 = vshrl.u32 %v1155, 16
        %v1327 = vrot.slane %v1325, 7
        %v1328 = vshll.u32 %v1155, 16
        %v1330 = vor.u32 %v1327, %v1328
        %v1331 = vsel %vm831, %v1323, %v1330
        %v1332 = vld [vmem:[%s1131 + $0xc] sm:$0x1]
        %v1333 = vld [vmem:[%s1131 + $0x1c] sm:$0x1]
        %v1334 = vld [vmem:[%s1131 + $0x2c] sm:$0x1]
        %v1335 = vld [vmem:[%s1131 + $0x3c] sm:$0x1]
        %v1336 = vld [vmem:[%s1131 + $0x4c] sm:$0x1]
        %v1337 = vld [vmem:[%s1131 + $0x5c] sm:$0x1]
        %v1338 = vld [vmem:[%s1131 + $0x6c] sm:$0x1]
        %v1339 = vld [vmem:[%s1131 + $0x7c] sm:$0x1]
        %v1340 = vrot.slane %v1162, 4
        %v1341 = vrot.slane %v1165, 5
        %v1342 = vor.u32 %v1340, %v1341
        %v1343 = vrot.slane %v1342, 4
        %v1344 = vrot.slane %v1174, 5
        %v1345 = vsel %vm1018, %v1343, %v1344
        %v1346 = vrot.slane %v1171, 4
        %v1347 = vor.u32 %v1346, %v1344
        %v1348 = vrot.slane %v1347, 4
        %v1350 = vshll.u32 %v1332, 16
        %v1352 = vrot.slane %v1350, 5
        %v1353 = vsel %vm1018, %v1348, %v1352
        %v1354 = vrot.slane %v1184, 4
        %v1355 = vrot.slane %v1187, 5
        %v1356 = vor.u32 %v1354, %v1355
        %v1357 = vrot.slane %v1356, 4
        %v1358 = vrot.slane %v1196, 5
        %v1359 = vsel %vm1018, %v1357, %v1358
        %v1360 = vrot.slane %v1193, 4
        %v1361 = vor.u32 %v1360, %v1358
        %v1362 = vrot.slane %v1361, 4
        %v1364 = vshll.u32 %v1333, 16
        %v1366 = vrot.slane %v1364, 5
        %v1367 = vsel %vm1018, %v1362, %v1366
        %v1368 = vrot.slane %v1206, 4
        %v1369 = vrot.slane %v1209, 5
        %v1370 = vor.u32 %v1368, %v1369
        %v1371 = vrot.slane %v1370, 4
        %v1372 = vrot.slane %v1218, 5
        %v1373 = vsel %vm1018, %v1371, %v1372
        %v1374 = vrot.slane %v1215, 4
        %v1375 = vor.u32 %v1374, %v1372
        %v1376 = vrot.slane %v1375, 4
        %v1378 = vshll.u32 %v1334, 16
        %v1380 = vrot.slane %v1378, 5
        %v1381 = vsel %vm1018, %v1376, %v1380
        %v1382 = vrot.slane %v1228, 4
        %v1383 = vrot.slane %v1231, 5
        %v1384 = vor.u32 %v1382, %v1383
        %v1385 = vrot.slane %v1384, 4
        %v1386 = vrot.slane %v1240, 5
        %v1387 = vsel %vm1018, %v1385, %v1386
        %v1388 = vrot.slane %v1237, 4
        %v1389 = vor.u32 %v1388, %v1386
        %v1390 = vrot.slane %v1389, 4
        %v1392 = vshll.u32 %v1335, 16
        %v1394 = vrot.slane %v1392, 5
        %v1395 = vsel %vm1018, %v1390, %v1394
        %v1396 = vrot.slane %v1250, 4
        %v1397 = vrot.slane %v1253, 5
        %v1398 = vor.u32 %v1396, %v1397
        %v1399 = vrot.slane %v1398, 4
        %v1400 = vrot.slane %v1262, 5
        %v1401 = vsel %vm1018, %v1399, %v1400
        %v1402 = vrot.slane %v1259, 4
        %v1403 = vor.u32 %v1402, %v1400
        %v1404 = vrot.slane %v1403, 4
        %v1406 = vshll.u32 %v1336, 16
        %v1408 = vrot.slane %v1406, 5
        %v1409 = vsel %vm1018, %v1404, %v1408
        %v1410 = vrot.slane %v1272, 4
        %v1411 = vrot.slane %v1275, 5
        %v1412 = vor.u32 %v1410, %v1411
        %v1413 = vrot.slane %v1412, 4
        %v1414 = vrot.slane %v1284, 5
        %v1415 = vsel %vm1018, %v1413, %v1414
        %v1416 = vrot.slane %v1281, 4
        %v1417 = vor.u32 %v1416, %v1414
        %v1418 = vrot.slane %v1417, 4
        %v1420 = vshll.u32 %v1337, 16
        %v1422 = vrot.slane %v1420, 5
        %v1423 = vsel %vm1018, %v1418, %v1422
        %v1424 = vrot.slane %v1294, 4
        %v1425 = vrot.slane %v1297, 5
        %v1426 = vor.u32 %v1424, %v1425
        %v1427 = vrot.slane %v1426, 4
        %v1428 = vrot.slane %v1306, 5
        %v1429 = vsel %vm1018, %v1427, %v1428
        %v1430 = vrot.slane %v1303, 4
        %v1431 = vor.u32 %v1430, %v1428
        %v1432 = vrot.slane %v1431, 4
        %v1434 = vshll.u32 %v1338, 16
        %v1436 = vrot.slane %v1434, 5
        %v1437 = vsel %vm1018, %v1432, %v1436
        %v1438 = vrot.slane %v1316, 4
        %v1439 = vrot.slane %v1319, 5
        %v1440 = vor.u32 %v1438, %v1439
        %v1441 = vrot.slane %v1440, 4
        %v1442 = vrot.slane %v1328, 5
        %v1443 = vsel %vm1018, %v1441, %v1442
        %v1444 = vrot.slane %v1325, 4
        %v1445 = vor.u32 %v1444, %v1442
        %v1446 = vrot.slane %v1445, 4
        %v1448 = vshll.u32 %v1339, 16
        %v1450 = vrot.slane %v1448, 5
        %v1451 = vsel %vm1018, %v1446, %v1450
        %s1452 = scalar_lea.vmem [#allocation2], 32
        %v1453 = vld [vmem:[%s1452] sm:$0x8]
        %v1454 = vld [vmem:[%s1452 + $0x4] sm:$0xf]
        %v1455 = vld [vmem:[%s1452 + $0x8] sm:$0xf]
        %v1456 = vld [vmem:[%s1452 + $0x10] sm:$0x8]
        %v1457 = vld [vmem:[%s1452 + $0x14] sm:$0xf]
        %v1458 = vld [vmem:[%s1452 + $0x18] sm:$0xf]
        %v1459 = vld [vmem:[%s1452 + $0x20] sm:$0x8]
        %v1460 = vld [vmem:[%s1452 + $0x24] sm:$0xf]
        %v1461 = vld [vmem:[%s1452 + $0x28] sm:$0xf]
        %v1462 = vld [vmem:[%s1452 + $0x30] sm:$0x8]
        %v1463 = vld [vmem:[%s1452 + $0x34] sm:$0xf]
        %v1464 = vld [vmem:[%s1452 + $0x38] sm:$0xf]
        %v1465 = vld [vmem:[%s1452 + $0x40] sm:$0x8]
        %v1466 = vld [vmem:[%s1452 + $0x44] sm:$0xf]
        %v1467 = vld [vmem:[%s1452 + $0x48] sm:$0xf]
        %v1468 = vld [vmem:[%s1452 + $0x50] sm:$0x8]
        %v1469 = vld [vmem:[%s1452 + $0x54] sm:$0xf]
        %v1470 = vld [vmem:[%s1452 + $0x58] sm:$0xf]
        %v1471 = vld [vmem:[%s1452 + $0x60] sm:$0x8]
        %v1472 = vld [vmem:[%s1452 + $0x64] sm:$0xf]
        %v1473 = vld [vmem:[%s1452 + $0x68] sm:$0xf]
        %v1474 = vld [vmem:[%s1452 + $0x70] sm:$0x8]
        %v1475 = vld [vmem:[%s1452 + $0x74] sm:$0xf]
        %v1476 = vld [vmem:[%s1452 + $0x78] sm:$0xf]
        %v1478 = vshrl.u32 %v1453, 16
        %v1480 = vrot.slane %v1478, 7
        %v1481 = vrot.slane %v1480, 4
        %v1483 = vshrl.u32 %v1454, 16
        %v1485 = vrot.slane %v1483, 7
        %v1486 = vshll.u32 %v1454, 16
        %v1488 = vor.u32 %v1485, %v1486
        %v1489 = vsel %vm831, %v1481, %v1488
        %v1490 = vrot.slane %v1485, 4
        %v1492 = vshrl.u32 %v1455, 16
        %v1494 = vrot.slane %v1492, 7
        %v1495 = vshll.u32 %v1455, 16
        %v1497 = vor.u32 %v1494, %v1495
        %v1498 = vsel %vm831, %v1490, %v1497
        %v1500 = vshrl.u32 %v1456, 16
        %v1502 = vrot.slane %v1500, 7
        %v1503 = vrot.slane %v1502, 4
        %v1505 = vshrl.u32 %v1457, 16
        %v1507 = vrot.slane %v1505, 7
        %v1508 = vshll.u32 %v1457, 16
        %v1510 = vor.u32 %v1507, %v1508
        %v1511 = vsel %vm831, %v1503, %v1510
        %v1512 = vrot.slane %v1507, 4
        %v1514 = vshrl.u32 %v1458, 16
        %v1516 = vrot.slane %v1514, 7
        %v1517 = vshll.u32 %v1458, 16
        %v1519 = vor.u32 %v1516, %v1517
        %v1520 = vsel %vm831, %v1512, %v1519
        %v1522 = vshrl.u32 %v1459, 16
        %v1524 = vrot.slane %v1522, 7
        %v1525 = vrot.slane %v1524, 4
        %v1527 = vshrl.u32 %v1460, 16
        %v1529 = vrot.slane %v1527, 7
        %v1530 = vshll.u32 %v1460, 16
        %v1532 = vor.u32 %v1529, %v1530
        %v1533 = vsel %vm831, %v1525, %v1532
        %v1534 = vrot.slane %v1529, 4
        %v1536 = vshrl.u32 %v1461, 16
        %v1538 = vrot.slane %v1536, 7
        %v1539 = vshll.u32 %v1461, 16
        %v1541 = vor.u32 %v1538, %v1539
        %v1542 = vsel %vm831, %v1534, %v1541
        %v1544 = vshrl.u32 %v1462, 16
        %v1546 = vrot.slane %v1544, 7
        %v1547 = vrot.slane %v1546, 4
        %v1549 = vshrl.u32 %v1463, 16
        %v1551 = vrot.slane %v1549, 7
        %v1552 = vshll.u32 %v1463, 16
        %v1554 = vor.u32 %v1551, %v1552
        %v1555 = vsel %vm831, %v1547, %v1554
        %v1556 = vrot.slane %v1551, 4
        %v1558 = vshrl.u32 %v1464, 16
        %v1560 = vrot.slane %v1558, 7
        %v1561 = vshll.u32 %v1464, 16
        %v1563 = vor.u32 %v1560, %v1561
        %v1564 = vsel %vm831, %v1556, %v1563
        %v1566 = vshrl.u32 %v1465, 16
        %v1568 = vrot.slane %v1566, 7
        %v1569 = vrot.slane %v1568, 4
        %v1571 = vshrl.u32 %v1466, 16
        %v1573 = vrot.slane %v1571, 7
        %v1574 = vshll.u32 %v1466, 16
        %v1576 = vor.u32 %v1573, %v1574
        %v1577 = vsel %vm831, %v1569, %v1576
        %v1578 = vrot.slane %v1573, 4
        %v1580 = vshrl.u32 %v1467, 16
        %v1582 = vrot.slane %v1580, 7
        %v1583 = vshll.u32 %v1467, 16
        %v1585 = vor.u32 %v1582, %v1583
        %v1586 = vsel %vm831, %v1578, %v1585
        %v1588 = vshrl.u32 %v1468, 16
        %v1590 = vrot.slane %v1588, 7
        %v1591 = vrot.slane %v1590, 4
        %v1593 = vshrl.u32 %v1469, 16
        %v1595 = vrot.slane %v1593, 7
        %v1596 = vshll.u32 %v1469, 16
        %v1598 = vor.u32 %v1595, %v1596
        %v1599 = vsel %vm831, %v1591, %v1598
        %v1600 = vrot.slane %v1595, 4
        %v1602 = vshrl.u32 %v1470, 16
        %v1604 = vrot.slane %v1602, 7
        %v1605 = vshll.u32 %v1470, 16
        %v1607 = vor.u32 %v1604, %v1605
        %v1608 = vsel %vm831, %v1600, %v1607
        %v1610 = vshrl.u32 %v1471, 16
        %v1612 = vrot.slane %v1610, 7
        %v1613 = vrot.slane %v1612, 4
        %v1615 = vshrl.u32 %v1472, 16
        %v1617 = vrot.slane %v1615, 7
        %v1618 = vshll.u32 %v1472, 16
        %v1620 = vor.u32 %v1617, %v1618
        %v1621 = vsel %vm831, %v1613, %v1620
        %v1622 = vrot.slane %v1617, 4
        %v1624 = vshrl.u32 %v1473, 16
        %v1626 = vrot.slane %v1624, 7
        %v1627 = vshll.u32 %v1473, 16
        %v1629 = vor.u32 %v1626, %v1627
        %v1630 = vsel %vm831, %v1622, %v1629
        %v1632 = vshrl.u32 %v1474, 16
        %v1634 = vrot.slane %v1632, 7
        %v1635 = vrot.slane %v1634, 4
        %v1637 = vshrl.u32 %v1475, 16
        %v1639 = vrot.slane %v1637, 7
        %v1640 = vshll.u32 %v1475, 16
        %v1642 = vor.u32 %v1639, %v1640
        %v1643 = vsel %vm831, %v1635, %v1642
        %v1644 = vrot.slane %v1639, 4
        %v1646 = vshrl.u32 %v1476, 16
        %v1648 = vrot.slane %v1646, 7
        %v1649 = vshll.u32 %v1476, 16
        %v1651 = vor.u32 %v1648, %v1649
        %v1652 = vsel %vm831, %v1644, %v1651
        %v1653 = vld [vmem:[%s1452 + $0xc] sm:$0x1]
        %v1654 = vld [vmem:[%s1452 + $0x1c] sm:$0x1]
        %v1655 = vld [vmem:[%s1452 + $0x2c] sm:$0x1]
        %v1656 = vld [vmem:[%s1452 + $0x3c] sm:$0x1]
        %v1657 = vld [vmem:[%s1452 + $0x4c] sm:$0x1]
        %v1658 = vld [vmem:[%s1452 + $0x5c] sm:$0x1]
        %v1659 = vld [vmem:[%s1452 + $0x6c] sm:$0x1]
        %v1660 = vld [vmem:[%s1452 + $0x7c] sm:$0x1]
        %v1661 = vrot.slane %v1483, 4
        %v1662 = vrot.slane %v1486, 5
        %v1663 = vor.u32 %v1661, %v1662
        %v1664 = vrot.slane %v1663, 4
        %v1665 = vrot.slane %v1495, 5
        %v1666 = vsel %vm1018, %v1664, %v1665
        %v1667 = vrot.slane %v1492, 4
        %v1668 = vor.u32 %v1667, %v1665
        %v1669 = vrot.slane %v1668, 4
        %v1671 = vshll.u32 %v1653, 16
        %v1673 = vrot.slane %v1671, 5
        %v1674 = vsel %vm1018, %v1669, %v1673
        %v1675 = vrot.slane %v1505, 4
        %v1676 = vrot.slane %v1508, 5
        %v1677 = vor.u32 %v1675, %v1676
        %v1678 = vrot.slane %v1677, 4
        %v1679 = vrot.slane %v1517, 5
        %v1680 = vsel %vm1018, %v1678, %v1679
        %v1681 = vrot.slane %v1514, 4
        %v1682 = vor.u32 %v1681, %v1679
        %v1683 = vrot.slane %v1682, 4
        %v1685 = vshll.u32 %v1654, 16
        %v1687 = vrot.slane %v1685, 5
        %v1688 = vsel %vm1018, %v1683, %v1687
        %v1689 = vrot.slane %v1527, 4
        %v1690 = vrot.slane %v1530, 5
        %v1691 = vor.u32 %v1689, %v1690
        %v1692 = vrot.slane %v1691, 4
        %v1693 = vrot.slane %v1539, 5
        %v1694 = vsel %vm1018, %v1692, %v1693
        %v1695 = vrot.slane %v1536, 4
        %v1696 = vor.u32 %v1695, %v1693
        %v1697 = vrot.slane %v1696, 4
        %v1699 = vshll.u32 %v1655, 16
        %v1701 = vrot.slane %v1699, 5
        %v1702 = vsel %vm1018, %v1697, %v1701
        %v1703 = vrot.slane %v1549, 4
        %v1704 = vrot.slane %v1552, 5
        %v1705 = vor.u32 %v1703, %v1704
        %v1706 = vrot.slane %v1705, 4
        %v1707 = vrot.slane %v1561, 5
        %v1708 = vsel %vm1018, %v1706, %v1707
        %v1709 = vrot.slane %v1558, 4
        %v1710 = vor.u32 %v1709, %v1707
        %v1711 = vrot.slane %v1710, 4
        %v1713 = vshll.u32 %v1656, 16
        %v1715 = vrot.slane %v1713, 5
        %v1716 = vsel %vm1018, %v1711, %v1715
        %v1717 = vrot.slane %v1571, 4
        %v1718 = vrot.slane %v1574, 5
        %v1719 = vor.u32 %v1717, %v1718
        %v1720 = vrot.slane %v1719, 4
        %v1721 = vrot.slane %v1583, 5
        %v1722 = vsel %vm1018, %v1720, %v1721
        %v1723 = vrot.slane %v1580, 4
        %v1724 = vor.u32 %v1723, %v1721
        %v1725 = vrot.slane %v1724, 4
        %v1727 = vshll.u32 %v1657, 16
        %v1729 = vrot.slane %v1727, 5
        %v1730 = vsel %vm1018, %v1725, %v1729
        %v1731 = vrot.slane %v1593, 4
        %v1732 = vrot.slane %v1596, 5
        %v1733 = vor.u32 %v1731, %v1732
        %v1734 = vrot.slane %v1733, 4
        %v1735 = vrot.slane %v1605, 5
        %v1736 = vsel %vm1018, %v1734, %v1735
        %v1737 = vrot.slane %v1602, 4
        %v1738 = vor.u32 %v1737, %v1735
        %v1739 = vrot.slane %v1738, 4
        %v1741 = vshll.u32 %v1658, 16
        %v1743 = vrot.slane %v1741, 5
        %v1744 = vsel %vm1018, %v1739, %v1743
        %v1745 = vrot.slane %v1615, 4
        %v1746 = vrot.slane %v1618, 5
        %v1747 = vor.u32 %v1745, %v1746
        %v1748 = vrot.slane %v1747, 4
        %v1749 = vrot.slane %v1627, 5
        %v1750 = vsel %vm1018, %v1748, %v1749
        %v1751 = vrot.slane %v1624, 4
        %v1752 = vor.u32 %v1751, %v1749
        %v1753 = vrot.slane %v1752, 4
        %v1755 = vshll.u32 %v1659, 16
        %v1757 = vrot.slane %v1755, 5
        %v1758 = vsel %vm1018, %v1753, %v1757
        %v1759 = vrot.slane %v1637, 4
        %v1760 = vrot.slane %v1640, 5
        %v1761 = vor.u32 %v1759, %v1760
        %v1762 = vrot.slane %v1761, 4
        %v1763 = vrot.slane %v1649, 5
        %v1764 = vsel %vm1018, %v1762, %v1763
        %v1765 = vrot.slane %v1646, 4
        %v1766 = vor.u32 %v1765, %v1763
        %v1767 = vrot.slane %v1766, 4
        %v1769 = vshll.u32 %v1660, 16
        %v1771 = vrot.slane %v1769, 5
        %v1772 = vsel %vm1018, %v1767, %v1771
        %v1773 = vunpack.c.l.b16 %v844
        %v1774 = vunpack.c.l.b16 %v853
        %v1775 = vunpack.c.l.b16 %v866
        %v1776 = vunpack.c.l.b16 %v875
        %v1777 = vunpack.c.l.b16 %v888
        %v1778 = vunpack.c.l.b16 %v897
        %v1779 = vunpack.c.l.b16 %v910
        %v1780 = vunpack.c.l.b16 %v919
        %v1781 = vunpack.c.l.b16 %v932
        %v1782 = vunpack.c.l.b16 %v941
        %v1783 = vunpack.c.l.b16 %v954
        %v1784 = vunpack.c.l.b16 %v963
        %v1785 = vunpack.c.l.b16 %v976
        %v1786 = vunpack.c.l.b16 %v985
        %v1787 = vunpack.c.l.b16 %v998
        %v1788 = vunpack.c.l.b16 %v1007
        %v1789 = vpack.c.b16 %v1774, %v1773
        %v1790 = vpack.c.b16 %v1776, %v1775
        %v1791 = vpack.c.b16 %v1778, %v1777
        %v1792 = vpack.c.b16 %v1780, %v1779
        %v1793 = vpack.c.b16 %v1782, %v1781
        %v1794 = vpack.c.b16 %v1784, %v1783
        %v1795 = vpack.c.b16 %v1786, %v1785
        %v1796 = vpack.c.b16 %v1788, %v1787
        %v1813 = vunpack.c.l.b16 %v807
        %v1814 = vunpack.c.l.b16 %v808
        %v1815 = vunpack.c.l.b16 %v810
        %v1816 = vunpack.c.l.b16 %v811
        %v1817 = vunpack.c.l.b16 %v813
        %v1818 = vunpack.c.l.b16 %v814
        %v1819 = vunpack.c.l.b16 %v816
        %v1820 = vunpack.c.l.b16 %v817
        %v1821 = vunpack.c.l.b16 %v819
        %v1822 = vunpack.c.l.b16 %v820
        %v1823 = vunpack.c.l.b16 %v822
        %v1824 = vunpack.c.l.b16 %v823
        %v1825 = vunpack.c.l.b16 %v825
        %v1826 = vunpack.c.l.b16 %v826
        %v1827 = vunpack.c.l.b16 %v828
        %v1828 = vunpack.c.l.b16 %v829
        %v1829 = vpack.c.b16 %v1814, %v1813
        %v1830 = vpack.c.b16 %v1816, %v1815
        %v1831 = vpack.c.b16 %v1818, %v1817
        %v1832 = vpack.c.b16 %v1820, %v1819
        %v1833 = vpack.c.b16 %v1822, %v1821
        %v1834 = vpack.c.b16 %v1824, %v1823
        %v1835 = vpack.c.b16 %v1826, %v1825
        %v1836 = vpack.c.b16 %v1828, %v1827
        %1837 = vrot.lane.b32.xlu0 %v1829, 32
        %v1838 = vpop.permute.xlu0 %1837
        %1839 = vrot.lane.b32.xlu0 %v1830, 32
        %v1840 = vpop.permute.xlu0 %1839
        %1841 = vrot.lane.b32.xlu0 %v1831, 32
        %v1842 = vpop.permute.xlu0 %1841
        %1843 = vrot.lane.b32.xlu0 %v1832, 32
        %v1844 = vpop.permute.xlu0 %1843
        %1845 = vrot.lane.b32.xlu0 %v1833, 32
        %v1846 = vpop.permute.xlu0 %1845
        %1847 = vrot.lane.b32.xlu0 %v1834, 32
        %v1848 = vpop.permute.xlu0 %1847
        %1849 = vrot.lane.b32.xlu0 %v1835, 32
        %v1850 = vpop.permute.xlu0 %1849
        %1851 = vrot.lane.b32.xlu0 %v1836, 32
        %v1852 = vpop.permute.xlu0 %1851
        %v1853 = vunpack.c.l.b16 %v1024
        %v1854 = vunpack.c.l.b16 %v1032
        %v1855 = vunpack.c.l.b16 %v1038
        %v1856 = vunpack.c.l.b16 %v1046
        %v1857 = vunpack.c.l.b16 %v1052
        %v1858 = vunpack.c.l.b16 %v1060
        %v1859 = vunpack.c.l.b16 %v1066
        %v1860 = vunpack.c.l.b16 %v1074
        %v1861 = vunpack.c.l.b16 %v1080
        %v1862 = vunpack.c.l.b16 %v1088
        %v1863 = vunpack.c.l.b16 %v1094
        %v1864 = vunpack.c.l.b16 %v1102
        %v1865 = vunpack.c.l.b16 %v1108
        %v1866 = vunpack.c.l.b16 %v1116
        %v1867 = vunpack.c.l.b16 %v1122
        %v1868 = vunpack.c.l.b16 %v1130
        %v1869 = vpack.c.b16 %v1854, %v1853
        %v1870 = vpack.c.b16 %v1856, %v1855
        %v1871 = vpack.c.b16 %v1858, %v1857
        %v1872 = vpack.c.b16 %v1860, %v1859
        %v1873 = vpack.c.b16 %v1862, %v1861
        %v1874 = vpack.c.b16 %v1864, %v1863
        %v1875 = vpack.c.b16 %v1866, %v1865
        %v1876 = vpack.c.b16 %v1868, %v1867
        %1877 = vrot.lane.b32.xlu0 %v1869, 64
        %v1878 = vpop.permute.xlu0 %1877
        %1879 = vrot.lane.b32.xlu0 %v1870, 64
        %v1880 = vpop.permute.xlu0 %1879
        %1881 = vrot.lane.b32.xlu0 %v1871, 64
        %v1882 = vpop.permute.xlu0 %1881
        %1883 = vrot.lane.b32.xlu0 %v1872, 64
        %v1884 = vpop.permute.xlu0 %1883
        %1885 = vrot.lane.b32.xlu0 %v1873, 64
        %v1886 = vpop.permute.xlu0 %1885
        %1887 = vrot.lane.b32.xlu0 %v1874, 64
        %v1888 = vpop.permute.xlu0 %1887
        %1889 = vrot.lane.b32.xlu0 %v1875, 64
        %v1890 = vpop.permute.xlu0 %1889
        %1891 = vrot.lane.b32.xlu0 %v1876, 64
        %v1892 = vpop.permute.xlu0 %1891
        %v1893 = vunpack.c.l.b16 %v1168
        %v1894 = vunpack.c.l.b16 %v1177
        %v1895 = vunpack.c.l.b16 %v1190
        %v1896 = vunpack.c.l.b16 %v1199
        %v1897 = vunpack.c.l.b16 %v1212
        %v1898 = vunpack.c.l.b16 %v1221
        %v1899 = vunpack.c.l.b16 %v1234
        %v1900 = vunpack.c.l.b16 %v1243
        %v1901 = vunpack.c.l.b16 %v1256
        %v1902 = vunpack.c.l.b16 %v1265
        %v1903 = vunpack.c.l.b16 %v1278
        %v1904 = vunpack.c.l.b16 %v1287
        %v1905 = vunpack.c.l.b16 %v1300
        %v1906 = vunpack.c.l.b16 %v1309
        %v1907 = vunpack.c.l.b16 %v1322
        %v1908 = vunpack.c.l.b16 %v1331
        %v1909 = vpack.c.b16 %v1894, %v1893
        %v1910 = vpack.c.b16 %v1896, %v1895
        %v1911 = vpack.c.b16 %v1898, %v1897
        %v1912 = vpack.c.b16 %v1900, %v1899
        %v1913 = vpack.c.b16 %v1902, %v1901
        %v1914 = vpack.c.b16 %v1904, %v1903
        %v1915 = vpack.c.b16 %v1906, %v1905
        %v1916 = vpack.c.b16 %v1908, %v1907
        %1917 = vrot.lane.b32.xlu0 %v1909, 96
        %v1918 = vpop.permute.xlu0 %1917
        %1919 = vrot.lane.b32.xlu0 %v1910, 96
        %v1920 = vpop.permute.xlu0 %1919
        %1921 = vrot.lane.b32.xlu0 %v1911, 96
        %v1922 = vpop.permute.xlu0 %1921
        %1923 = vrot.lane.b32.xlu0 %v1912, 96
        %v1924 = vpop.permute.xlu0 %1923
        %1925 = vrot.lane.b32.xlu0 %v1913, 96
        %v1926 = vpop.permute.xlu0 %1925
        %1927 = vrot.lane.b32.xlu0 %v1914, 96
        %v1928 = vpop.permute.xlu0 %1927
        %1929 = vrot.lane.b32.xlu0 %v1915, 96
        %v1930 = vpop.permute.xlu0 %1929
        %1931 = vrot.lane.b32.xlu0 %v1916, 96
        %v1932 = vpop.permute.xlu0 %1931
        %v1949 = vunpack.c.l.b16 %v1133
        %v1950 = vunpack.c.l.b16 %v1134
        %v1951 = vunpack.c.l.b16 %v1136
        %v1952 = vunpack.c.l.b16 %v1137
        %v1953 = vunpack.c.l.b16 %v1139
        %v1954 = vunpack.c.l.b16 %v1140
        %v1955 = vunpack.c.l.b16 %v1142
        %v1956 = vunpack.c.l.b16 %v1143
        %v1957 = vunpack.c.l.b16 %v1145
        %v1958 = vunpack.c.l.b16 %v1146
        %v1959 = vunpack.c.l.b16 %v1148
        %v1960 = vunpack.c.l.b16 %v1149
        %v1961 = vunpack.c.l.b16 %v1151
        %v1962 = vunpack.c.l.b16 %v1152
        %v1963 = vunpack.c.l.b16 %v1154
        %v1964 = vunpack.c.l.b16 %v1155
        %v1965 = vpack.c.b16 %v1950, %v1949
        %v1966 = vpack.c.b16 %v1952, %v1951
        %v1967 = vpack.c.b16 %v1954, %v1953
        %v1968 = vpack.c.b16 %v1956, %v1955
        %v1969 = vpack.c.b16 %v1958, %v1957
        %v1970 = vpack.c.b16 %v1960, %v1959
        %v1971 = vpack.c.b16 %v1962, %v1961
        %v1972 = vpack.c.b16 %v1964, %v1963
        %v1973 = vunpack.c.l.b16 %v1345
        %v1974 = vunpack.c.l.b16 %v1353
        %v1975 = vunpack.c.l.b16 %v1359
        %v1976 = vunpack.c.l.b16 %v1367
        %v1977 = vunpack.c.l.b16 %v1373
        %v1978 = vunpack.c.l.b16 %v1381
        %v1979 = vunpack.c.l.b16 %v1387
        %v1980 = vunpack.c.l.b16 %v1395
        %v1981 = vunpack.c.l.b16 %v1401
        %v1982 = vunpack.c.l.b16 %v1409
        %v1983 = vunpack.c.l.b16 %v1415
        %v1984 = vunpack.c.l.b16 %v1423
        %v1985 = vunpack.c.l.b16 %v1429
        %v1986 = vunpack.c.l.b16 %v1437
        %v1987 = vunpack.c.l.b16 %v1443
        %v1988 = vunpack.c.l.b16 %v1451
        %v1989 = vpack.c.b16 %v1974, %v1973
        %v1990 = vpack.c.b16 %v1976, %v1975
        %v1991 = vpack.c.b16 %v1978, %v1977
        %v1992 = vpack.c.b16 %v1980, %v1979
        %v1993 = vpack.c.b16 %v1982, %v1981
        %v1994 = vpack.c.b16 %v1984, %v1983
        %v1995 = vpack.c.b16 %v1986, %v1985
        %v1996 = vpack.c.b16 %v1988, %v1987
        %1997 = vrot.lane.b32.xlu0 %v1989, 32
        %v1998 = vpop.permute.xlu0 %1997
        %1999 = vrot.lane.b32.xlu0 %v1990, 32
        %v2000 = vpop.permute.xlu0 %1999
        %2001 = vrot.lane.b32.xlu0 %v1991, 32
        %v2002 = vpop.permute.xlu0 %2001
        %2003 = vrot.lane.b32.xlu0 %v1992, 32
        %v2004 = vpop.permute.xlu0 %2003
        %2005 = vrot.lane.b32.xlu0 %v1993, 32
        %v2006 = vpop.permute.xlu0 %2005
        %2007 = vrot.lane.b32.xlu0 %v1994, 32
        %v2008 = vpop.permute.xlu0 %2007
        %2009 = vrot.lane.b32.xlu0 %v1995, 32
        %v2010 = vpop.permute.xlu0 %2009
        %2011 = vrot.lane.b32.xlu0 %v1996, 32
        %v2012 = vpop.permute.xlu0 %2011
        %v2013 = vunpack.c.l.b16 %v1489
        %v2014 = vunpack.c.l.b16 %v1498
        %v2015 = vunpack.c.l.b16 %v1511
        %v2016 = vunpack.c.l.b16 %v1520
        %v2017 = vunpack.c.l.b16 %v1533
        %v2018 = vunpack.c.l.b16 %v1542
        %v2019 = vunpack.c.l.b16 %v1555
        %v2020 = vunpack.c.l.b16 %v1564
        %v2021 = vunpack.c.l.b16 %v1577
        %v2022 = vunpack.c.l.b16 %v1586
        %v2023 = vunpack.c.l.b16 %v1599
        %v2024 = vunpack.c.l.b16 %v1608
        %v2025 = vunpack.c.l.b16 %v1621
        %v2026 = vunpack.c.l.b16 %v1630
        %v2027 = vunpack.c.l.b16 %v1643
        %v2028 = vunpack.c.l.b16 %v1652
        %v2029 = vpack.c.b16 %v2014, %v2013
        %v2030 = vpack.c.b16 %v2016, %v2015
        %v2031 = vpack.c.b16 %v2018, %v2017
        %v2032 = vpack.c.b16 %v2020, %v2019
        %v2033 = vpack.c.b16 %v2022, %v2021
        %v2034 = vpack.c.b16 %v2024, %v2023
        %v2035 = vpack.c.b16 %v2026, %v2025
        %v2036 = vpack.c.b16 %v2028, %v2027
        %2037 = vrot.lane.b32.xlu0 %v2029, 64
        %v2038 = vpop.permute.xlu0 %2037
        %2039 = vrot.lane.b32.xlu0 %v2030, 64
        %v2040 = vpop.permute.xlu0 %2039
        %2041 = vrot.lane.b32.xlu0 %v2031, 64
        %v2042 = vpop.permute.xlu0 %2041
        %2043 = vrot.lane.b32.xlu0 %v2032, 64
        %v2044 = vpop.permute.xlu0 %2043
        %2045 = vrot.lane.b32.xlu0 %v2033, 64
        %v2046 = vpop.permute.xlu0 %2045
        %2047 = vrot.lane.b32.xlu0 %v2034, 64
        %v2048 = vpop.permute.xlu0 %2047
        %2049 = vrot.lane.b32.xlu0 %v2035, 64
        %v2050 = vpop.permute.xlu0 %2049
        %2051 = vrot.lane.b32.xlu0 %v2036, 64
        %v2052 = vpop.permute.xlu0 %2051
        %v2069 = vunpack.c.l.b16 %v1454
        %v2070 = vunpack.c.l.b16 %v1455
        %v2071 = vunpack.c.l.b16 %v1457
        %v2072 = vunpack.c.l.b16 %v1458
        %v2073 = vunpack.c.l.b16 %v1460
        %v2074 = vunpack.c.l.b16 %v1461
        %v2075 = vunpack.c.l.b16 %v1463
        %v2076 = vunpack.c.l.b16 %v1464
        %v2077 = vunpack.c.l.b16 %v1466
        %v2078 = vunpack.c.l.b16 %v1467
        %v2079 = vunpack.c.l.b16 %v1469
        %v2080 = vunpack.c.l.b16 %v1470
        %v2081 = vunpack.c.l.b16 %v1472
        %v2082 = vunpack.c.l.b16 %v1473
        %v2083 = vunpack.c.l.b16 %v1475
        %v2084 = vunpack.c.l.b16 %v1476
        %v2085 = vpack.c.b16 %v2070, %v2069
        %v2086 = vpack.c.b16 %v2072, %v2071
        %v2087 = vpack.c.b16 %v2074, %v2073
        %v2088 = vpack.c.b16 %v2076, %v2075
        %v2089 = vpack.c.b16 %v2078, %v2077
        %v2090 = vpack.c.b16 %v2080, %v2079
        %v2091 = vpack.c.b16 %v2082, %v2081
        %v2092 = vpack.c.b16 %v2084, %v2083
        %2093 = vrot.lane.b32.xlu0 %v2085, 96
        %v2094 = vpop.permute.xlu0 %2093
        %2095 = vrot.lane.b32.xlu0 %v2086, 96
        %v2096 = vpop.permute.xlu0 %2095
        %2097 = vrot.lane.b32.xlu0 %v2087, 96
        %v2098 = vpop.permute.xlu0 %2097
        %2099 = vrot.lane.b32.xlu0 %v2088, 96
        %v2100 = vpop.permute.xlu0 %2099
        %2101 = vrot.lane.b32.xlu0 %v2089, 96
        %v2102 = vpop.permute.xlu0 %2101
        %2103 = vrot.lane.b32.xlu0 %v2090, 96
        %v2104 = vpop.permute.xlu0 %2103
        %2105 = vrot.lane.b32.xlu0 %v2091, 96
        %v2106 = vpop.permute.xlu0 %2105
        %2107 = vrot.lane.b32.xlu0 %v2092, 96
        %v2108 = vpop.permute.xlu0 %2107
        %v2109 = vunpack.c.l.b16 %v1666
        %v2110 = vunpack.c.l.b16 %v1674
        %v2111 = vunpack.c.l.b16 %v1680
        %v2112 = vunpack.c.l.b16 %v1688
        %v2113 = vunpack.c.l.b16 %v1694
        %v2114 = vunpack.c.l.b16 %v1702
        %v2115 = vunpack.c.l.b16 %v1708
        %v2116 = vunpack.c.l.b16 %v1716
        %v2117 = vunpack.c.l.b16 %v1722
        %v2118 = vunpack.c.l.b16 %v1730
        %v2119 = vunpack.c.l.b16 %v1736
        %v2120 = vunpack.c.l.b16 %v1744
        %v2121 = vunpack.c.l.b16 %v1750
        %v2122 = vunpack.c.l.b16 %v1758
        %v2123 = vunpack.c.l.b16 %v1764
        %v2124 = vunpack.c.l.b16 %v1772
        %v2125 = vpack.c.b16 %v2110, %v2109
        %v2126 = vpack.c.b16 %v2112, %v2111
        %v2127 = vpack.c.b16 %v2114, %v2113
        %v2128 = vpack.c.b16 %v2116, %v2115
        %v2129 = vpack.c.b16 %v2118, %v2117
        %v2130 = vpack.c.b16 %v2120, %v2119
        %v2131 = vpack.c.b16 %v2122, %v2121
        %v2132 = vpack.c.b16 %v2124, %v2123
        %vm2133 = vcmask 261120
        %v2136 = vsel %vm2133, %v1789, %v1838
        %v2139 = vsel %vm2133, %v1790, %v1840
        %v2142 = vsel %vm2133, %v1791, %v1842
        %v2145 = vsel %vm2133, %v1792, %v1844
        %v2148 = vsel %vm2133, %v1793, %v1846
        %v2151 = vsel %vm2133, %v1794, %v1848
        %v2154 = vsel %vm2133, %v1795, %v1850
        %v2157 = vsel %vm2133, %v1796, %v1852
        %vm2158 = vcmask 523264
        %v2160 = vsel %vm2158, %v2136, %v1878
        %v2162 = vsel %vm2158, %v2139, %v1880
        %v2164 = vsel %vm2158, %v2142, %v1882
        %v2166 = vsel %vm2158, %v2145, %v1884
        %v2168 = vsel %vm2158, %v2148, %v1886
        %v2170 = vsel %vm2158, %v2151, %v1888
        %v2172 = vsel %vm2158, %v2154, %v1890
        %v2174 = vsel %vm2158, %v2157, %v1892
        %vm2175 = vcmask 785408
        %v2177 = vsel %vm2175, %v2160, %v1918
        %v2180 = vsel %vm2175, %v2162, %v1920
        %v2183 = vsel %vm2175, %v2164, %v1922
        %v2186 = vsel %vm2175, %v2166, %v1924
        %v2189 = vsel %vm2175, %v2168, %v1926
        %v2192 = vsel %vm2175, %v2170, %v1928
        %v2195 = vsel %vm2175, %v2172, %v1930
        %v2198 = vsel %vm2175, %v2174, %v1932
        %v2202 = vsel %vm2133, %v1965, %v1998
        %v2205 = vsel %vm2133, %v1966, %v2000
        %v2208 = vsel %vm2133, %v1967, %v2002
        %v2211 = vsel %vm2133, %v1968, %v2004
        %v2214 = vsel %vm2133, %v1969, %v2006
        %v2217 = vsel %vm2133, %v1970, %v2008
        %v2220 = vsel %vm2133, %v1971, %v2010
        %v2223 = vsel %vm2133, %v1972, %v2012
        %v2225 = vsel %vm2158, %v2202, %v2038
        %v2227 = vsel %vm2158, %v2205, %v2040
        %v2229 = vsel %vm2158, %v2208, %v2042
        %v2231 = vsel %vm2158, %v2211, %v2044
        %v2233 = vsel %vm2158, %v2214, %v2046
        %v2235 = vsel %vm2158, %v2217, %v2048
        %v2237 = vsel %vm2158, %v2220, %v2050
        %v2239 = vsel %vm2158, %v2223, %v2052
        %v2241 = vsel %vm2175, %v2225, %v2094
        %v2244 = vsel %vm2175, %v2227, %v2096
        %v2247 = vsel %vm2175, %v2229, %v2098
        %v2250 = vsel %vm2175, %v2231, %v2100
        %v2253 = vsel %vm2175, %v2233, %v2102
        %v2256 = vsel %vm2175, %v2235, %v2104
        %v2259 = vsel %vm2175, %v2237, %v2106
        %v2262 = vsel %vm2175, %v2239, %v2108
        %v2264 = vld [vmem:[%s4] sm:$0xf]
        %v2265 = vld [vmem:[%s4 + $0x4] sm:$0xf]
        %v2266 = vld [vmem:[%s4 + $0x8] sm:$0xf]
        %v2267 = vld [vmem:[%s4 + $0xc] sm:$0xf]
        %v2268 = vld [vmem:[%s4 + $0x10] sm:$0xf]
        %v2269 = vld [vmem:[%s4 + $0x14] sm:$0xf]
        %v2270 = vld [vmem:[%s4 + $0x18] sm:$0xf]
        %v2271 = vld [vmem:[%s4 + $0x1c] sm:$0xf]
        %v2272 = vld [vmem:[%s4 + $0x20] sm:$0xf]
        %v2273 = vld [vmem:[%s4 + $0x24] sm:$0xf]
        %v2274 = vld [vmem:[%s4 + $0x28] sm:$0xf]
        %v2275 = vld [vmem:[%s4 + $0x2c] sm:$0xf]
        %v2276 = vld [vmem:[%s4 + $0x30] sm:$0xf]
        %v2277 = vld [vmem:[%s4 + $0x34] sm:$0xf]
        %v2278 = vld [vmem:[%s4 + $0x38] sm:$0xf]
        %v2279 = vld [vmem:[%s4 + $0x3c] sm:$0xf]
        %v2280 = vld [vmem:[%s4 + $0x40] sm:$0xf]
        %v2281 = vld [vmem:[%s4 + $0x44] sm:$0xf]
        %v2282 = vld [vmem:[%s4 + $0x48] sm:$0xf]
        %v2283 = vld [vmem:[%s4 + $0x4c] sm:$0xf]
        %v2284 = vld [vmem:[%s4 + $0x50] sm:$0xf]
        %v2285 = vld [vmem:[%s4 + $0x54] sm:$0xf]
        %v2286 = vld [vmem:[%s4 + $0x58] sm:$0xf]
        %v2287 = vld [vmem:[%s4 + $0x5c] sm:$0xf]
        %v2288 = vld [vmem:[%s4 + $0x60] sm:$0xf]
        %v2289 = vld [vmem:[%s4 + $0x64] sm:$0xf]
        %v2290 = vld [vmem:[%s4 + $0x68] sm:$0xf]
        %v2291 = vld [vmem:[%s4 + $0x6c] sm:$0xf]
        %v2292 = vld [vmem:[%s4 + $0x70] sm:$0xf]
        %v2293 = vld [vmem:[%s4 + $0x74] sm:$0xf]
        %v2294 = vld [vmem:[%s4 + $0x78] sm:$0xf]
        %v2295 = vld [vmem:[%s4 + $0x7c] sm:$0xf]
        %v2296 = vld [vmem:[%s4 + $0x80] sm:$0xf]
        %v2297 = vld [vmem:[%s4 + $0x84] sm:$0xf]
        %v2298 = vld [vmem:[%s4 + $0x88] sm:$0xf]
        %v2299 = vld [vmem:[%s4 + $0x8c] sm:$0xf]
        %v2300 = vld [vmem:[%s5] sm:$0x1]
        %v2302 = vlaneseq
        %v2303 = vshrl.u32 %v2302, 7
        %v2304 = vsub.s32 0, %v2303
        %v2305 = vrot.slane %v2300, %v2304
        %v2343 = vunpack.c.l.b16 %v2264
        %v2344 = vunpack.c.l.b16 %v2265
        %v2345 = vunpack.c.l.b16 %v2266
        %v2346 = vunpack.c.l.b16 %v2267
        %v2347 = vunpack.c.l.b16 %v2268
        %v2348 = vunpack.c.l.b16 %v2269
        %v2349 = vunpack.c.l.b16 %v2270
        %v2350 = vunpack.c.l.b16 %v2271
        %v2351 = vunpack.c.l.b16 %v2272
        %v2352 = vunpack.c.l.b16 %v2273
        %v2353 = vunpack.c.l.b16 %v2274
        %v2354 = vunpack.c.l.b16 %v2275
        %v2355 = vunpack.c.l.b16 %v2276
        %v2356 = vunpack.c.l.b16 %v2277
        %v2357 = vunpack.c.l.b16 %v2278
        %v2358 = vunpack.c.l.b16 %v2279
        %v2359 = vunpack.c.l.b16 %v2280
        %v2360 = vunpack.c.l.b16 %v2281
        %v2361 = vunpack.c.l.b16 %v2282
        %v2362 = vunpack.c.l.b16 %v2283
        %v2363 = vunpack.c.l.b16 %v2284
        %v2364 = vunpack.c.l.b16 %v2285
        %v2365 = vunpack.c.l.b16 %v2286
        %v2366 = vunpack.c.l.b16 %v2287
        %v2367 = vunpack.c.l.b16 %v2288
        %v2368 = vunpack.c.l.b16 %v2289
        %v2369 = vunpack.c.l.b16 %v2290
        %v2370 = vunpack.c.l.b16 %v2291
        %v2371 = vunpack.c.l.b16 %v2292
        %v2372 = vunpack.c.l.b16 %v2293
        %v2373 = vunpack.c.l.b16 %v2294
        %v2374 = vunpack.c.l.b16 %v2295
        %v2375 = vunpack.c.l.b16 %v2296
        %v2376 = vunpack.c.l.b16 %v2297
        %v2377 = vunpack.c.l.b16 %v2298
        %v2378 = vunpack.c.l.b16 %v2299
        %v2379 = vpack.c.b16 %v2344, %v2343
        %v2380 = vpack.c.b16 %v2346, %v2345
        %v2381 = vpack.c.b16 %v2348, %v2347
        %v2382 = vpack.c.b16 %v2350, %v2349
        %v2383 = vpack.c.b16 %v2352, %v2351
        %v2384 = vpack.c.b16 %v2354, %v2353
        %v2385 = vpack.c.b16 %v2356, %v2355
        %v2386 = vpack.c.b16 %v2358, %v2357
        %v2387 = vpack.c.b16 %v2360, %v2359
        %v2388 = vpack.c.b16 %v2362, %v2361
        %v2389 = vpack.c.b16 %v2364, %v2363
        %v2390 = vpack.c.b16 %v2366, %v2365
        %v2391 = vpack.c.b16 %v2368, %v2367
        %v2392 = vpack.c.b16 %v2370, %v2369
        %v2393 = vpack.c.b16 %v2372, %v2371
        %v2394 = vpack.c.b16 %v2374, %v2373
        %v2395 = vpack.c.b16 %v2376, %v2375
        %v2396 = vpack.c.b16 %v2378, %v2377
        %v2416 = vsel %vm2133, %v2125, 0
        %v2419 = vsel %vm2133, %v2126, 0
        %v2422 = vsel %vm2133, %v2127, 0
        %v2425 = vsel %vm2133, %v2128, 0
        %v2428 = vsel %vm2133, %v2129, 0
        %v2431 = vsel %vm2133, %v2130, 0
        %v2434 = vsel %vm2133, %v2131, 0
        %v2437 = vsel %vm2133, %v2132, 0
        %2439 = vmatprep.subr.bf16.mxu0 0
        %2440 = vmatpush1.bf16.msra.mxu0 %v2386
        %2441 = vmatprep.subr.bf16.mxu0 0
        %2442 = vmatpush1.bf16.msra.mxu0 %v2385
        %2443 = vmatprep.subr.bf16.mxu0 0
        %2444 = vmatpush1.bf16.msra.mxu0 %v2384
        %2445 = vmatprep.subr.bf16.mxu0 0
        %2446 = vmatpush1.bf16.msra.mxu0 %v2383
        %2447 = vmatprep.subr.bf16.mxu0 0
        %2448 = vmatpush1.bf16.msra.mxu0 %v2382
        %2449 = vmatprep.subr.bf16.mxu0 0
        %2450 = vmatpush1.bf16.msra.mxu0 %v2381
        %2451 = vmatprep.subr.bf16.mxu0 0
        %2452 = vmatpush1.bf16.msra.mxu0 %v2380
        %2453 = vmatprep.subr.bf16.mxu0 0
        %2454 = vmatpush1.bf16.msra.mxu0 %v2379
        %2455 = vmatprep.subr.bf16.mxu0 0
        %2456 = vmatpush2.bf16.msra.mxu0 %v2394
        %2457 = vmatprep.subr.bf16.mxu0 0
        %2458 = vmatpush2.bf16.msra.mxu0 %v2393
        %2459 = vmatprep.subr.bf16.mxu0 0
        %2460 = vmatpush2.bf16.msra.mxu0 %v2392
        %2461 = vmatprep.subr.bf16.mxu0 0
        %2462 = vmatpush2.bf16.msra.mxu0 %v2391
        %2463 = vmatprep.subr.bf16.mxu0 0
        %2464 = vmatpush2.bf16.msra.mxu0 %v2390
        %2465 = vmatprep.subr.bf16.mxu0 0
        %2466 = vmatpush2.bf16.msra.mxu0 %v2389
        %2467 = vmatprep.subr.bf16.mxu0 0
        %2468 = vmatpush2.bf16.msra.mxu0 %v2388
        %2469 = vmatprep.subr.bf16.mxu0 0
        %2470 = vmatpush2.bf16.msra.mxu0 %v2387
        %2471 = vmatprep.mubr.bf16.mxu0 %v2241
        %2472 = vmatmul.mubr.bf16.gmra.mxu0 %v2177
        %v2473 = vpop.f32.mrf.mxu0
        %v2474 = vadd.f32 %v2305, %v2473
        %v2475 = vpop.f32.mrf.mxu0
        %v2476 = vpop.f32.mrf.mxu0
        %v2477 = vadd.f32 %v2305, %v2476
        %v2478 = vpop.f32.mrf.mxu0
        %2479 = vmatprep.mubr.bf16.mxu0 %v2244
        %2480 = vmatmul.mubr.bf16.gmra.mxu0 %v2180
        %v2481 = vpop.f32.mrf.mxu0
        %v2482 = vadd.f32 %v2305, %v2481
        %v2483 = vpop.f32.mrf.mxu0
        %v2484 = vpop.f32.mrf.mxu0
        %v2485 = vadd.f32 %v2305, %v2484
        %v2486 = vpop.f32.mrf.mxu0
        %2487 = vmatprep.mubr.bf16.mxu0 %v2247
        %2488 = vmatmul.mubr.bf16.gmra.mxu0 %v2183
        %v2489 = vpop.f32.mrf.mxu0
        %v2490 = vadd.f32 %v2305, %v2489
        %v2491 = vpop.f32.mrf.mxu0
        %v2492 = vpop.f32.mrf.mxu0
        %v2493 = vadd.f32 %v2305, %v2492
        %v2494 = vpop.f32.mrf.mxu0
        %2495 = vmatprep.mubr.bf16.mxu0 %v2250
        %2496 = vmatmul.mubr.bf16.gmra.mxu0 %v2186
        %v2497 = vpop.f32.mrf.mxu0
        %v2498 = vadd.f32 %v2305, %v2497
        %v2499 = vpop.f32.mrf.mxu0
        %v2500 = vpop.f32.mrf.mxu0
        %v2501 = vadd.f32 %v2305, %v2500
        %v2502 = vpop.f32.mrf.mxu0
        %2503 = vmatprep.mubr.bf16.mxu0 %v2253
        %2504 = vmatmul.mubr.bf16.gmra.mxu0 %v2189
        %v2505 = vpop.f32.mrf.mxu0
        %v2506 = vadd.f32 %v2305, %v2505
        %v2507 = vpop.f32.mrf.mxu0
        %v2508 = vpop.f32.mrf.mxu0
        %v2509 = vadd.f32 %v2305, %v2508
        %v2510 = vpop.f32.mrf.mxu0
        %2511 = vmatprep.mubr.bf16.mxu0 %v2256
        %2512 = vmatmul.mubr.bf16.gmra.mxu0 %v2192
        %v2513 = vpop.f32.mrf.mxu0
        %v2514 = vadd.f32 %v2305, %v2513
        %v2515 = vpop.f32.mrf.mxu0
        %v2516 = vpop.f32.mrf.mxu0
        %v2517 = vadd.f32 %v2305, %v2516
        %v2518 = vpop.f32.mrf.mxu0
        %2519 = vmatprep.mubr.bf16.mxu0 %v2259
        %2520 = vmatmul.mubr.bf16.gmra.mxu0 %v2195
        %v2521 = vpop.f32.mrf.mxu0
        %v2522 = vadd.f32 %v2305, %v2521
        %v2523 = vpop.f32.mrf.mxu0
        %v2524 = vpop.f32.mrf.mxu0
        %v2525 = vadd.f32 %v2305, %v2524
        %v2526 = vpop.f32.mrf.mxu0
        %2527 = vmatprep.mubr.bf16.mxu0 %v2262
        %2528 = vmatmul.mubr.bf16.gmra.mxu0 %v2198
        %v2529 = vpop.f32.mrf.mxu0
        %v2530 = vadd.f32 %v2305, %v2529
        %v2531 = vpop.f32.mrf.mxu0
        %v2532 = vpop.f32.mrf.mxu0
        %v2533 = vadd.f32 %v2305, %v2532
        %v2534 = vpop.f32.mrf.mxu0
        %2535 = vdwg.mxu0
        %2536 = vmatprep.subr.bf16.mxu0 0
        %2537 = vmatpush1.bf16.msra.mxu0 0
        %2538 = vmatprep.subr.bf16.mxu0 0
        %2539 = vmatpush1.bf16.msra.mxu0 0
        %2540 = vmatprep.subr.bf16.mxu0 0
        %2541 = vmatpush1.bf16.msra.mxu0 0
        %2542 = vmatprep.subr.bf16.mxu0 0
        %2543 = vmatpush1.bf16.msra.mxu0 0
        %2544 = vmatprep.subr.bf16.mxu0 0
        %2545 = vmatpush1.bf16.msra.mxu0 0
        %2546 = vmatprep.subr.bf16.mxu0 0
        %2547 = vmatpush1.bf16.msra.mxu0 0
        %2548 = vmatprep.subr.bf16.mxu0 0
        %2549 = vmatpush1.bf16.msra.mxu0 %v2396
        %2550 = vmatprep.subr.bf16.mxu0 0
        %2551 = vmatpush1.bf16.msra.mxu0 %v2395
        %2552 = vmatprep.subr.bf16.mxu0 0
        %2553 = vmatpush2.bf16.msra.mxu0 0
        %2554 = vmatprep.subr.bf16.mxu0 0
        %2555 = vmatpush2.bf16.msra.mxu0 0
        %2556 = vmatprep.subr.bf16.mxu0 0
        %2557 = vmatpush2.bf16.msra.mxu0 0
        %2558 = vmatprep.subr.bf16.mxu0 0
        %2559 = vmatpush2.bf16.msra.mxu0 0
        %2560 = vmatprep.subr.bf16.mxu0 0
        %2561 = vmatpush2.bf16.msra.mxu0 0
        %2562 = vmatprep.subr.bf16.mxu0 0
        %2563 = vmatpush2.bf16.msra.mxu0 0
        %2564 = vmatprep.subr.bf16.mxu0 0
        %2565 = vmatpush2.bf16.msra.mxu0 0
        %2566 = vmatprep.subr.bf16.mxu0 0
        %2567 = vmatpush2.bf16.msra.mxu0 0
        %2568 = vmatprep.mubr.bf16.mxu0 0
        %2569 = vmatmul.mubr.bf16.gmra.mxu0 %v2416
        %v2570 = vpop.f32.mrf.mxu0
        %v2571 = vadd.f32 %v2474, %v2570
        %v2572 = vpop.f32.mrf.mxu0
        %v2573 = vpop.f32.mrf.mxu0
        %v2574 = vadd.f32 %v2477, %v2573
        %v2575 = vpop.f32.mrf.mxu0
        %2576 = vmatprep.mubr.bf16.mxu0 0
        %2577 = vmatmul.mubr.bf16.gmra.mxu0 %v2419
        %v2578 = vpop.f32.mrf.mxu0
        %v2579 = vadd.f32 %v2482, %v2578
        %v2580 = vpop.f32.mrf.mxu0
        %v2581 = vpop.f32.mrf.mxu0
        %v2582 = vadd.f32 %v2485, %v2581
        %v2583 = vpop.f32.mrf.mxu0
        %2584 = vmatprep.mubr.bf16.mxu0 0
        %2585 = vmatmul.mubr.bf16.gmra.mxu0 %v2422
        %v2586 = vpop.f32.mrf.mxu0
        %v2587 = vadd.f32 %v2490, %v2586
        %v2588 = vpop.f32.mrf.mxu0
        %v2589 = vpop.f32.mrf.mxu0
        %v2590 = vadd.f32 %v2493, %v2589
        %v2591 = vpop.f32.mrf.mxu0
        %2592 = vmatprep.mubr.bf16.mxu0 0
        %2593 = vmatmul.mubr.bf16.gmra.mxu0 %v2425
        %v2594 = vpop.f32.mrf.mxu0
        %v2595 = vadd.f32 %v2498, %v2594
        %v2596 = vpop.f32.mrf.mxu0
        %v2597 = vpop.f32.mrf.mxu0
        %v2598 = vadd.f32 %v2501, %v2597
        %v2599 = vpop.f32.mrf.mxu0
        %2600 = vmatprep.mubr.bf16.mxu0 0
        %2601 = vmatmul.mubr.bf16.gmra.mxu0 %v2428
        %v2602 = vpop.f32.mrf.mxu0
        %v2603 = vadd.f32 %v2506, %v2602
        %v2604 = vpop.f32.mrf.mxu0
        %v2605 = vpop.f32.mrf.mxu0
        %v2606 = vadd.f32 %v2509, %v2605
        %v2607 = vpop.f32.mrf.mxu0
        %2608 = vmatprep.mubr.bf16.mxu0 0
        %2609 = vmatmul.mubr.bf16.gmra.mxu0 %v2431
        %v2610 = vpop.f32.mrf.mxu0
        %v2611 = vadd.f32 %v2514, %v2610
        %v2612 = vpop.f32.mrf.mxu0
        %v2613 = vpop.f32.mrf.mxu0
        %v2614 = vadd.f32 %v2517, %v2613
        %v2615 = vpop.f32.mrf.mxu0
        %2616 = vmatprep.mubr.bf16.mxu0 0
        %2617 = vmatmul.mubr.bf16.gmra.mxu0 %v2434
        %v2618 = vpop.f32.mrf.mxu0
        %v2619 = vadd.f32 %v2522, %v2618
        %v2620 = vpop.f32.mrf.mxu0
        %v2621 = vpop.f32.mrf.mxu0
        %v2622 = vadd.f32 %v2525, %v2621
        %v2623 = vpop.f32.mrf.mxu0
        %2624 = vmatprep.mubr.bf16.mxu0 0
        %2625 = vmatmul.mubr.bf16.gmra.mxu0 %v2437
        %v2626 = vpop.f32.mrf.mxu0
        %v2627 = vadd.f32 %v2530, %v2626
        %v2628 = vpop.f32.mrf.mxu0
        %v2629 = vpop.f32.mrf.mxu0
        %v2630 = vadd.f32 %v2533, %v2629
        %v2631 = vpop.f32.mrf.mxu0
        %2632 = vdwg.mxu0
        %v2633 = vmax.f32 %v2571, 0.0
        %v2634 = vmax.f32 %v2574, 0.0
        %v2635 = vmax.f32 %v2579, 0.0
        %v2636 = vmax.f32 %v2582, 0.0
        %v2637 = vmax.f32 %v2587, 0.0
        %v2638 = vmax.f32 %v2590, 0.0
        %v2639 = vmax.f32 %v2595, 0.0
        %v2640 = vmax.f32 %v2598, 0.0
        %v2641 = vmax.f32 %v2603, 0.0
        %v2642 = vmax.f32 %v2606, 0.0
        %v2643 = vmax.f32 %v2611, 0.0
        %v2644 = vmax.f32 %v2614, 0.0
        %v2645 = vmax.f32 %v2619, 0.0
        %v2646 = vmax.f32 %v2622, 0.0
        %v2647 = vmax.f32 %v2627, 0.0
        %v2648 = vmax.f32 %v2630, 0.0
        %v2649 = vpack.c.bf16 %v2634, %v2633
        %v2650 = vpack.c.bf16 %v2636, %v2635
        %v2651 = vpack.c.bf16 %v2638, %v2637
        %v2652 = vpack.c.bf16 %v2640, %v2639
        %v2653 = vpack.c.bf16 %v2642, %v2641
        %v2654 = vpack.c.bf16 %v2644, %v2643
        %v2655 = vpack.c.bf16 %v2646, %v2645
        %v2656 = vpack.c.bf16 %v2648, %v2647
        %v2657 = vld [vmem:[%s6] sm:$0xf]
        %v2658 = vld [vmem:[%s6 + $0x4] sm:$0xf]
        %v2659 = vld [vmem:[%s6 + $0x8] sm:$0xf]
        %v2660 = vld [vmem:[%s6 + $0xc] sm:$0xf]
        %v2661 = vld [vmem:[%s7] sm:$0x1]
        %v2663 = vlaneseq
        %v2664 = vshrl.u32 %v2663, 7
        %v2665 = vsub.s32 0, %v2664
        %v2666 = vrot.slane %v2661, %v2665
        %v2672 = vunpack.c.l.b16 %v2657
        %v2673 = vunpack.c.l.b16 %v2658
        %v2674 = vunpack.c.l.b16 %v2659
        %v2675 = vunpack.c.l.b16 %v2660
        %v2676 = vpack.c.b16 %v2673, %v2672
        %v2677 = vpack.c.b16 %v2675, %v2674
        %v2681 = vsel %vm2133, %v2649, 0
        %v2684 = vsel %vm2133, %v2650, 0
        %v2687 = vsel %vm2133, %v2651, 0
        %v2690 = vsel %vm2133, %v2652, 0
        %v2693 = vsel %vm2133, %v2653, 0
        %v2696 = vsel %vm2133, %v2654, 0
        %v2699 = vsel %vm2133, %v2655, 0
        %v2702 = vsel %vm2133, %v2656, 0
        %2704 = vmatprep.subr.bf16.mxu0 0
        %2705 = vmatpush1.bf16.msra.mxu0 0
        %2706 = vmatprep.subr.bf16.mxu0 0
        %2707 = vmatpush1.bf16.msra.mxu0 0
        %2708 = vmatprep.subr.bf16.mxu0 0
        %2709 = vmatpush1.bf16.msra.mxu0 0
        %2710 = vmatprep.subr.bf16.mxu0 0
        %2711 = vmatpush1.bf16.msra.mxu0 0
        %2712 = vmatprep.subr.bf16.mxu0 0
        %2713 = vmatpush1.bf16.msra.mxu0 0
        %2714 = vmatprep.subr.bf16.mxu0 0
        %2715 = vmatpush1.bf16.msra.mxu0 0
        %2716 = vmatprep.subr.bf16.mxu0 0
        %2717 = vmatpush1.bf16.msra.mxu0 %v2677
        %2718 = vmatprep.subr.bf16.mxu0 0
        %2719 = vmatpush1.bf16.msra.mxu0 %v2676
        %2720 = vmatprep.subr.bf16.mxu0 0
        %2721 = vmatpush2.bf16.msra.mxu0 0
        %2722 = vmatprep.subr.bf16.mxu0 0
        %2723 = vmatpush2.bf16.msra.mxu0 0
        %2724 = vmatprep.subr.bf16.mxu0 0
        %2725 = vmatpush2.bf16.msra.mxu0 0
        %2726 = vmatprep.subr.bf16.mxu0 0
        %2727 = vmatpush2.bf16.msra.mxu0 0
        %2728 = vmatprep.subr.bf16.mxu0 0
        %2729 = vmatpush2.bf16.msra.mxu0 0
        %2730 = vmatprep.subr.bf16.mxu0 0
        %2731 = vmatpush2.bf16.msra.mxu0 0
        %2732 = vmatprep.subr.bf16.mxu0 0
        %2733 = vmatpush2.bf16.msra.mxu0 0
        %2734 = vmatprep.subr.bf16.mxu0 0
        %2735 = vmatpush2.bf16.msra.mxu0 0
        %2736 = vmatprep.mubr.bf16.mxu0 0
        %2737 = vmatmul.mubr.bf16.gmra.mxu0 %v2681
        %v2738 = vpop.f32.mrf.mxu0
        %v2739 = vadd.f32 %v2666, %v2738
        %v2740 = vpop.f32.mrf.mxu0
        %v2741 = vpop.f32.mrf.mxu0
        %v2742 = vadd.f32 %v2666, %v2741
        %v2743 = vpop.f32.mrf.mxu0
        %2744 = vmatprep.mubr.bf16.mxu0 0
        %2745 = vmatmul.mubr.bf16.gmra.mxu0 %v2684
        %v2746 = vpop.f32.mrf.mxu0
        %v2747 = vadd.f32 %v2666, %v2746
        %v2748 = vpop.f32.mrf.mxu0
        %v2749 = vpop.f32.mrf.mxu0
        %v2750 = vadd.f32 %v2666, %v2749
        %v2751 = vpop.f32.mrf.mxu0
        %2752 = vmatprep.mubr.bf16.mxu0 0
        %2753 = vmatmul.mubr.bf16.gmra.mxu0 %v2687
        %v2754 = vpop.f32.mrf.mxu0
        %v2755 = vadd.f32 %v2666, %v2754
        %v2756 = vpop.f32.mrf.mxu0
        %v2757 = vpop.f32.mrf.mxu0
        %v2758 = vadd.f32 %v2666, %v2757
        %v2759 = vpop.f32.mrf.mxu0
        %2760 = vmatprep.mubr.bf16.mxu0 0
        %2761 = vmatmul.mubr.bf16.gmra.mxu0 %v2690
        %v2762 = vpop.f32.mrf.mxu0
        %v2763 = vadd.f32 %v2666, %v2762
        %v2764 = vpop.f32.mrf.mxu0
        %v2765 = vpop.f32.mrf.mxu0
        %v2766 = vadd.f32 %v2666, %v2765
        %v2767 = vpop.f32.mrf.mxu0
        %2768 = vmatprep.mubr.bf16.mxu0 0
        %2769 = vmatmul.mubr.bf16.gmra.mxu0 %v2693
        %v2770 = vpop.f32.mrf.mxu0
        %v2771 = vadd.f32 %v2666, %v2770
        %v2772 = vpop.f32.mrf.mxu0
        %v2773 = vpop.f32.mrf.mxu0
        %v2774 = vadd.f32 %v2666, %v2773
        %v2775 = vpop.f32.mrf.mxu0
        %2776 = vmatprep.mubr.bf16.mxu0 0
        %2777 = vmatmul.mubr.bf16.gmra.mxu0 %v2696
        %v2778 = vpop.f32.mrf.mxu0
        %v2779 = vadd.f32 %v2666, %v2778
        %v2780 = vpop.f32.mrf.mxu0
        %v2781 = vpop.f32.mrf.mxu0
        %v2782 = vadd.f32 %v2666, %v2781
        %v2783 = vpop.f32.mrf.mxu0
        %2784 = vmatprep.mubr.bf16.mxu0 0
        %2785 = vmatmul.mubr.bf16.gmra.mxu0 %v2699
        %v2786 = vpop.f32.mrf.mxu0
        %v2787 = vadd.f32 %v2666, %v2786
        %v2788 = vpop.f32.mrf.mxu0
        %v2789 = vpop.f32.mrf.mxu0
        %v2790 = vadd.f32 %v2666, %v2789
        %v2791 = vpop.f32.mrf.mxu0
        %2792 = vmatprep.mubr.bf16.mxu0 0
        %2793 = vmatmul.mubr.bf16.gmra.mxu0 %v2702
        %v2794 = vpop.f32.mrf.mxu0
        %v2795 = vadd.f32 %v2666, %v2794
        %v2796 = vpop.f32.mrf.mxu0
        %v2797 = vpop.f32.mrf.mxu0
        %v2798 = vadd.f32 %v2666, %v2797
        %v2799 = vpop.f32.mrf.mxu0
        %2800 = vdwg.mxu0
        %v2801 = vld [vmem:[%s326] sm:$0xff]
        %v2802 = vld [vmem:[%s326 + $0x8] sm:$0xff]
        %v2803 = vld [vmem:[%s326 + $0x10] sm:$0xff]
        %v2804 = vld [vmem:[%s326 + $0x18] sm:$0xff]
        %v2805 = vld [vmem:[%s326 + $0x20] sm:$0xff]
        %v2806 = vld [vmem:[%s326 + $0x28] sm:$0xff]
        %v2807 = vld [vmem:[%s326 + $0x30] sm:$0xff]
        %v2808 = vld [vmem:[%s326 + $0x38] sm:$0xff]
        %v2809 = vld [vmem:[%s326 + $0x40] sm:$0xff]
        %v2810 = vld [vmem:[%s326 + $0x48] sm:$0xff]
        %v2811 = vld [vmem:[%s326 + $0x50] sm:$0xff]
        %v2812 = vld [vmem:[%s326 + $0x58] sm:$0xff]
        %v2813 = vld [vmem:[%s326 + $0x60] sm:$0xff]
        %v2814 = vld [vmem:[%s326 + $0x68] sm:$0xff]
        %v2815 = vld [vmem:[%s326 + $0x70] sm:$0xff]
        %v2816 = vld [vmem:[%s326 + $0x78] sm:$0xff]
        %v2817 = vadd.f32 %v2739, %v2801
        %v2818 = vadd.f32 %v2742, %v2802
        %v2819 = vadd.f32 %v2747, %v2803
        %v2820 = vadd.f32 %v2750, %v2804
        %v2821 = vadd.f32 %v2755, %v2805
        %v2822 = vadd.f32 %v2758, %v2806
        %v2823 = vadd.f32 %v2763, %v2807
        %v2824 = vadd.f32 %v2766, %v2808
        %v2825 = vadd.f32 %v2771, %v2809
        %v2826 = vadd.f32 %v2774, %v2810
        %v2827 = vadd.f32 %v2779, %v2811
        %v2828 = vadd.f32 %v2782, %v2812
        %v2829 = vadd.f32 %v2787, %v2813
        %v2830 = vadd.f32 %v2790, %v2814
        %v2831 = vadd.f32 %v2795, %v2815
        %v2832 = vadd.f32 %v2798, %v2816
        %v2833 = vmax.f32 %v2817, 0.0
        %v2834 = vmax.f32 %v2818, 0.0
        %v2835 = vmax.f32 %v2819, 0.0
        %v2836 = vmax.f32 %v2820, 0.0
        %v2837 = vmax.f32 %v2821, 0.0
        %v2838 = vmax.f32 %v2822, 0.0
        %v2839 = vmax.f32 %v2823, 0.0
        %v2840 = vmax.f32 %v2824, 0.0
        %v2841 = vmax.f32 %v2825, 0.0
        %v2842 = vmax.f32 %v2826, 0.0
        %v2843 = vmax.f32 %v2827, 0.0
        %v2844 = vmax.f32 %v2828, 0.0
        %v2845 = vmax.f32 %v2829, 0.0
        %v2846 = vmax.f32 %v2830, 0.0
        %v2847 = vmax.f32 %v2831, 0.0
        %v2848 = vmax.f32 %v2832, 0.0
        %2849 = vst [vmem:[%s367] sm:$0xff] %v2833
        %2850 = vst [vmem:[%s367 + $0x8] sm:$0xff] %v2834
        %2851 = vst [vmem:[%s367 + $0x10] sm:$0xff] %v2835
        %2852 = vst [vmem:[%s367 + $0x18] sm:$0xff] %v2836
        %2853 = vst [vmem:[%s367 + $0x20] sm:$0xff] %v2837
        %2854 = vst [vmem:[%s367 + $0x28] sm:$0xff] %v2838
        %2855 = vst [vmem:[%s367 + $0x30] sm:$0xff] %v2839
        %2856 = vst [vmem:[%s367 + $0x38] sm:$0xff] %v2840
        %2857 = vst [vmem:[%s367 + $0x40] sm:$0xff] %v2841
        %2858 = vst [vmem:[%s367 + $0x48] sm:$0xff] %v2842
        %2859 = vst [vmem:[%s367 + $0x50] sm:$0xff] %v2843
        %2860 = vst [vmem:[%s367 + $0x58] sm:$0xff] %v2844
        %2861 = vst [vmem:[%s367 + $0x60] sm:$0xff] %v2845
        %2862 = vst [vmem:[%s367 + $0x68] sm:$0xff] %v2846
        %2863 = vst [vmem:[%s367 + $0x70] sm:$0xff] %v2847
        %2864 = vst [vmem:[%s367 + $0x78] sm:$0xff] %v2848
        %s2865 = sand.u32 %s229, 1
        %s2866 = scalar_lea.sflag [#allocation5], %s2865
        %s2867 = sand.u32 %s229, 1
        %s2868 = smul.addr %s2867, 128
        %s2869 = scalar_lea.vmem [#allocation6], %s2868
        // Predicated region
        $region65: #{tpu_custom_call.1} parent=51 // pred_check
          %p2870 = pneg %p239
        $region66: #{tpu_custom_call.1} parent=51 // pred_check_branch
          %2872 = sbr.rel (%p2870) target = $region68
        $region67: #{tpu_custom_call.1} parent=51 // pred_region
          %s2873 = smul.u32 8, %s30
          %s2875 = ssub.s32 2048, 2048
          %2876 = vsyncadd %s2866, %s2875
          %s2877 = smul.addr %s2873, 2
          %s2878 = smul.addr %s29, 32
          %s2879 = sadd.s32 %s2877, %s2878
          %s2880 = smul.addr %s2879, 128
          %s2881 = scalar_lea.hbm %s8, %s2880
          %s2882 = sshll.u32 %s2869, 4
          %s2883 = int_to_ptr.vmem [resolvable:$true] %s2882
          %2888 = dma.vmem_to_hbm [thread:$0]  %s2883, 2048, %s2881, %s2866, 128, 128, 8
        $region68: #{tpu_custom_call.1} parent=51 // pred_fallthru
          _
      $region52: #{tpu_custom_call.1} parent=5 // pred_fallthru
        _
      %p2889 = scmp.le.s32.totalorder 2, %s20
      // Predicated region
      $region69: #{tpu_custom_call.1} parent=5 // pred_check
        %p2890 = pneg %p2889
      $region70: #{tpu_custom_call.1} parent=5 // pred_check_branch
        %2892 = sbr.rel (%p2890) target = $region72
      $region71: #{tpu_custom_call.1} parent=5 // pred_region
        %s2893 = ssub.s32 %s20, 2
        // Predicated region
        $region73: #{tpu_custom_call.1} parent=71 // pred_check
          %p2894 = pneg %p245
        $region74: #{tpu_custom_call.1} parent=71 // pred_check_branch
          %2896 = sbr.rel (%p2894) target = $region76
        $region75: #{tpu_custom_call.1} parent=71 // pred_region
          %s2897 = sand.u32 %s230, 1
          %s2898 = scalar_lea.sflag [#allocation5], %s2897
          %s2899 = sand.u32 %s230, 1
          %s2900 = smul.addr %s2899, 128
          %s2901 = scalar_lea.vmem [#allocation6], %s2900
          %2902 = dma.done %s2898, 2048
        $region76: #{tpu_custom_call.1} parent=71 // pred_fallthru
          _
      $region72: #{tpu_custom_call.1} parent=5 // pred_fallthru
        _
    $region6: #{tpu_custom_call.1} parent=1 // loop_footer
      %s24 = sadd.s32 1, %s20
    $region7: #{tpu_custom_call.1} parent=1 // loop_footer_branch
      %19 = sbr.rel target = $region3
    $region8: #{tpu_custom_call.1} parent=1 // loop_exit
      _
    %2903 = vsyncpa [#allocation4], 1
    %s2904 = scalar_lea.sflag [#allocation4], 1
    %2905 = vsyncpa %s2904, 1
    %2906 = vsyncpa [#allocation5], 1
    %s2907 = scalar_lea.sflag [#allocation5], 1
    %2908 = vsyncpa %s2907, 1

// kernel: tpu_custom_call.1
$region0: #{tpu_custom_call.1}
  #allocation0 [shape = 'u32[]', space=smem, size = 0x4, offset = 0x4, fixed_abs, tag = 'smem constant byte address 0x4 - core index']
  #allocation1 [shape = 'u32[144,128]{1,0:T(1,128)}', space=vmem, size = 0x12000, scoped, tag = 'internal scratch']
  #allocation2 [shape = 'bf16[10,32,32]{2,1,0:T(8,128)(2,1)}', space=vmem, size = 0x14000, scoped, tag = 'scratch operand']
  %s0 = inlined_call_operand.hbm [shape: f32[2,16,16,128], index: 0, kind: input, shape index: {}]
  %s1 = inlined_call_operand.vmem [shape: f32[2,2,2,16,128], index: 1, kind: input, shape index: {}]
  %s2 = inlined_call_operand.vmem [shape: bf16[128,32], index: 2, kind: input, shape index: {}]
  %s3 = inlined_call_operand.vmem [shape: f32[1,32], index: 3, kind: input, shape index: {}]
  %s4 = inlined_call_operand.vmem [shape: bf16[288,32], index: 4, kind: input, shape index: {}]
  %s5 = inlined_call_operand.vmem [shape: f32[1,32], index: 5, kind: input, shape index: {}]
  %s6 = inlined_call_operand.vmem [shape: bf16[32,128], index: 6, kind: input, shape index: {}]
  %s7 = inlined_call_operand.vmem [shape: f32[1,128], index: 7, kind: input, shape index: {}]
  %s8 = inlined_call_operand.hbm [shape: f32[2,16,16,128], index: 8, kind: output, shape index: {}]
  %s9 = sld [smem:[#allocation0]]
  $region77: #{tpu_custom_call.1} parent=0
    _
  %s11 = ssub.s32 1, %s9
  %s12 = scalar_select 0, %s11, %s9
  $region1: #{tpu_custom_call.1} parent=0
    #allocation3 [shape = 'u8[131072]{0}', space=vmem, size = 0x20000, scoped, tag = 'input window, operand 0']
    #allocation4 [shape = 's32[2]{0}', space=sflag, size = 0x8, scoped, tag = 'scoped memory for tpu_custom_call.1']
    #allocation5 [shape = 's32[2]{0}', space=sflag, size = 0x8, scoped, tag = 'scoped memory for tpu_custom_call.1']
    #allocation6 [shape = 'u8[131072]{0}', space=vmem, size = 0x20000, scoped, tag = 'output window, operand 0']
    %13 = vsyncpa [#allocation4], 0
    %s14 = scalar_lea.sflag [#allocation4], 1
    %15 = vsyncpa %s14, 0
    %16 = vsyncpa [#allocation5], 0
    %s17 = scalar_lea.sflag [#allocation5], 1
    %18 = vsyncpa %s17, 0
    loop: start=0, step=1, limit=6
    $region2: #{tpu_custom_call.1} parent=1 // loop_pre_header
      _
    $region3: #{tpu_custom_call.1} parent=1 // loop_header
      %s20 = sphi 0, %s24
      %p21 = scmp.ge.s32.totalorder %s20, 6
      %s27 = sphi 0, %s39
      %s28 = sphi 0, %s35
      %s29 = sphi 0, %s27
      %s30 = sphi 0, %s28
      %s31 = sphi 0, %s29
      %s32 = sphi 0, %s30
      %s44 = sphi 0, %s46
      %s47 = sphi 0, %s44
      %s48 = sphi 0, %s47
      %s64 = sphi 0, %s48
      %s72 = sphi 0, %s74
      %s75 = sphi 0, %s72
      %s76 = sphi 0, %s75
      %s92 = sphi 0, %s76
      %s96 = sphi 0, %s96
      %s98 = sphi 0, %s96
      %s99 = sphi 0, %s98
      %s113 = sphi 0, %s99
      %s117 = sphi 0, %s117
      %s119 = sphi 0, %s117
      %s120 = sphi 0, %s119
      %s134 = sphi 0, %s120
      %s138 = sphi 0, %s138
      %s140 = sphi 0, %s138
      %s141 = sphi 0, %s140
      %s155 = sphi 0, %s141
      %s159 = sphi 0, %s159
      %s161 = sphi 0, %s159
      %s162 = sphi 0, %s161
      %s176 = sphi 0, %s162
      %s180 = sphi 0, %s180
      %s182 = sphi 0, %s180
      %s183 = sphi 0, %s182
      %s197 = sphi 0, %s183
      %s201 = sphi 0, %s201
      %s203 = sphi 0, %s201
      %s204 = sphi 0, %s203
      %s218 = sphi 0, %s204
      %s226 = sphi 0, %s228
      %s229 = sphi 0, %s226
      %s230 = sphi 0, %s229
      %s246 = sphi 0, %s230
    $region4: #{tpu_custom_call.1} parent=1 // loop_header_branch
      %23 = sbr.rel (%p21) target = $region8
    $region5: #{tpu_custom_call.1} parent=1 // loop_body
      %s25 = ssub.s32 %s20, 1
      %s26 = ssub.s32 %s20, 2
      %s33 = sadd.s32 1, %s28
      %p34 = scmp.ge.s32.totalorder %s33, 2
      %s35 = scalar_select %p34, 0, %s33
      %s36 = sadd.s32 1, %s27
      %s37 = scalar_select %p34, %s36, %s27
      %p38 = scmp.ge.s32.totalorder %s37, 2
      %s39 = scalar_select %p38, 0, %s37
      %s40 = ssub.s32 %s27, %s39
      %s41 = ssub.s32 %s28, %s35
      %s42 = sor.u32 %s40, %s41
      %p43 = scmp.eq.s32.totalorder %s42, 0
      %s45 = sadd.s32 %s44, 1
      %s46 = scalar_select %p43, %s44, %s45
      %p49 = pneg %p43
      %p50 = scmp.eq.s32.totalorder %s20, 3
      %p51 = por %p49, %p50
      %p52 = scmp.ne.s32.totalorder %s44, %s47
      %p53 = scmp.eq.s32.totalorder %s20, 0
      %p54 = por %p52, %p53
      %p55 = scmp.ne.s32.totalorder %s44, %s47
      %p56 = scmp.eq.s32.totalorder %s25, 3
      %p57 = por %p55, %p56
      %p58 = scmp.ne.s32.totalorder %s47, %s48
      %p59 = scmp.eq.s32.totalorder %s25, 0
      %p60 = por %p58, %p59
      %p61 = scmp.ne.s32.totalorder %s47, %s48
      %p62 = scmp.eq.s32.totalorder %s26, 3
      %p63 = por %p61, %p62
      %p65 = scmp.ne.s32.totalorder %s48, %s64
      %p66 = scmp.eq.s32.totalorder %s26, 0
      %p67 = por %p65, %p66
      %s68 = ssub.s32 %s27, %s39
      %s69 = ssub.s32 %s28, %s35
      %s70 = sor.u32 %s68, %s69
      %p71 = scmp.eq.s32.totalorder %s70, 0
      %s73 = sadd.s32 %s72, 1
      %s74 = scalar_select %p71, %s72, %s73
      %p77 = pneg %p71
      %p78 = scmp.eq.s32.totalorder %s20, 3
      %p79 = por %p77, %p78
      %p80 = scmp.ne.s32.totalorder %s72, %s75
      %p81 = scmp.eq.s32.totalorder %s20, 0
      %p82 = por %p80, %p81
      %p83 = scmp.ne.s32.totalorder %s72, %s75
      %p84 = scmp.eq.s32.totalorder %s25, 3
      %p85 = por %p83, %p84
      %p86 = scmp.ne.s32.totalorder %s75, %s76
      %p87 = scmp.eq.s32.totalorder %s25, 0
      %p88 = por %p86, %p87
      %p89 = scmp.ne.s32.totalorder %s75, %s76
      %p90 = scmp.eq.s32.totalorder %s26, 3
      %p91 = por %p89, %p90
      %p93 = scmp.ne.s32.totalorder %s76, %s92
      %p94 = scmp.eq.s32.totalorder %s26, 0
      %p95 = por %p93, %p94
      %s97 = sadd.s32 %s96, 1
      %p100 = scmp.eq.s32.totalorder %s20, 3
      %p101 = scmp.ne.s32.totalorder %s96, %s98
      %p102 = scmp.eq.s32.totalorder %s20, 0
      %p103 = por %p101, %p102
      %p104 = scmp.ne.s32.totalorder %s96, %s98
      %p105 = scmp.eq.s32.totalorder %s25, 3
      %p106 = por %p104, %p105
      %p107 = scmp.ne.s32.totalorder %s98, %s99
      %p108 = scmp.eq.s32.totalorder %s25, 0
      %p109 = por %p107, %p108
      %p110 = scmp.ne.s32.totalorder %s98, %s99
      %p111 = scmp.eq.s32.totalorder %s26, 3
      %p112 = por %p110, %p111
      %p114 = scmp.ne.s32.totalorder %s99, %s113
      %p115 = scmp.eq.s32.totalorder %s26, 0
      %p116 = por %p114, %p115
      %s118 = sadd.s32 %s117, 1
      %p121 = scmp.eq.s32.totalorder %s20, 3
      %p122 = scmp.ne.s32.totalorder %s117, %s119
      %p123 = scmp.eq.s32.totalorder %s20, 0
      %p124 = por %p122, %p123
      %p125 = scmp.ne.s32.totalorder %s117, %s119
      %p126 = scmp.eq.s32.totalorder %s25, 3
      %p127 = por %p125, %p126
      %p128 = scmp.ne.s32.totalorder %s119, %s120
      %p129 = scmp.eq.s32.totalorder %s25, 0
      %p130 = por %p128, %p129
      %p131 = scmp.ne.s32.totalorder %s119, %s120
      %p132 = scmp.eq.s32.totalorder %s26, 3
      %p133 = por %p131, %p132
      %p135 = scmp.ne.s32.totalorder %s120, %s134
      %p136 = scmp.eq.s32.totalorder %s26, 0
      %p137 = por %p135, %p136
      %s139 = sadd.s32 %s138, 1
      %p142 = scmp.eq.s32.totalorder %s20, 3
      %p143 = scmp.ne.s32.totalorder %s138, %s140
      %p144 = scmp.eq.s32.totalorder %s20, 0
      %p145 = por %p143, %p144
      %p146 = scmp.ne.s32.totalorder %s138, %s140
      %p147 = scmp.eq.s32.totalorder %s25, 3
      %p148 = por %p146, %p147
      %p149 = scmp.ne.s32.totalorder %s140, %s141
      %p150 = scmp.eq.s32.totalorder %s25, 0
      %p151 = por %p149, %p150
      %p152 = scmp.ne.s32.totalorder %s140, %s141
      %p153 = scmp.eq.s32.totalorder %s26, 3
      %p154 = por %p152, %p153
      %p156 = scmp.ne.s32.totalorder %s141, %s155
      %p157 = scmp.eq.s32.totalorder %s26, 0
      %p158 = por %p156, %p157
      %s160 = sadd.s32 %s159, 1
      %p163 = scmp.eq.s32.totalorder %s20, 3
      %p164 = scmp.ne.s32.totalorder %s159, %s161
      %p165 = scmp.eq.s32.totalorder %s20, 0
      %p166 = por %p164, %p165
      %p167 = scmp.ne.s32.totalorder %s159, %s161
      %p168 = scmp.eq.s32.totalorder %s25, 3
      %p169 = por %p167, %p168
      %p170 = scmp.ne.s32.totalorder %s161, %s162
      %p171 = scmp.eq.s32.totalorder %s25, 0
      %p172 = por %p170, %p171
      %p173 = scmp.ne.s32.totalorder %s161, %s162
      %p174 = scmp.eq.s32.totalorder %s26, 3
      %p175 = por %p173, %p174
      %p177 = scmp.ne.s32.totalorder %s162, %s176
      %p178 = scmp.eq.s32.totalorder %s26, 0
      %p179 = por %p177, %p178
      %s181 = sadd.s32 %s180, 1
      %p184 = scmp.eq.s32.totalorder %s20, 3
      %p185 = scmp.ne.s32.totalorder %s180, %s182
      %p186 = scmp.eq.s32.totalorder %s20, 0
      %p187 = por %p185, %p186
      %p188 = scmp.ne.s32.totalorder %s180, %s182
      %p189 = scmp.eq.s32.totalorder %s25, 3
      %p190 = por %p188, %p189
      %p191 = scmp.ne.s32.totalorder %s182, %s183
      %p192 = scmp.eq.s32.totalorder %s25, 0
      %p193 = por %p191, %p192
      %p194 = scmp.ne.s32.totalorder %s182, %s183
      %p195 = scmp.eq.s32.totalorder %s26, 3
      %p196 = por %p194, %p195
      %p198 = scmp.ne.s32.totalorder %s183, %s197
      %p199 = scmp.eq.s32.totalorder %s26, 0
      %p200 = por %p198, %p199
      %s202 = sadd.s32 %s201, 1
      %p205 = scmp.eq.s32.totalorder %s20, 3
      %p206 = scmp.ne.s32.totalorder %s201, %s203
      %p207 = scmp.eq.s32.totalorder %s20, 0
      %p208 = por %p206, %p207
      %p209 = scmp.ne.s32.totalorder %s201, %s203
      %p210 = scmp.eq.s32.totalorder %s25, 3
      %p211 = por %p209, %p210
      %p212 = scmp.ne.s32.totalorder %s203, %s204
      %p213 = scmp.eq.s32.totalorder %s25, 0
      %p214 = por %p212, %p213
      %p215 = scmp.ne.s32.totalorder %s203, %s204
      %p216 = scmp.eq.s32.totalorder %s26, 3
      %p217 = por %p215, %p216
      %p219 = scmp.ne.s32.totalorder %s204, %s218
      %p220 = scmp.eq.s32.totalorder %s26, 0
      %p221 = por %p219, %p220
      %s222 = ssub.s32 %s27, %s39
      %s223 = ssub.s32 %s28, %s35
      %s224 = sor.u32 %s222, %s223
      %p225 = scmp.eq.s32.totalorder %s224, 0
      %s227 = sadd.s32 %s226, 1
      %s228 = scalar_select %p225, %s226, %s227
      %p231 = pneg %p225
      %p232 = scmp.eq.s32.totalorder %s20, 3
      %p233 = por %p231, %p232
      %p234 = scmp.ne.s32.totalorder %s226, %s229
      %p235 = scmp.eq.s32.totalorder %s20, 0
      %p236 = por %p234, %p235
      %p237 = scmp.ne.s32.totalorder %s226, %s229
      %p238 = scmp.eq.s32.totalorder %s25, 3
      %p239 = por %p237, %p238
      %p240 = scmp.ne.s32.totalorder %s229, %s230
      %p241 = scmp.eq.s32.totalorder %s25, 0
      %p242 = por %p240, %p241
      %p243 = scmp.ne.s32.totalorder %s229, %s230
      %p244 = scmp.eq.s32.totalorder %s26, 3
      %p245 = por %p243, %p244
      %p247 = scmp.ne.s32.totalorder %s230, %s246
      %p248 = scmp.eq.s32.totalorder %s26, 0
      %p249 = por %p247, %p248
      %p250 = scmp.le.s32.totalorder 1, %s20
      %p251 = scmp.lt.s32.totalorder %s20, 5
      %p252 = pnand %p250, %p251
      %p253 = pneg %p252
      // Predicated region
      $region9: #{tpu_custom_call.1} parent=5 // pred_check
        _
      $region10: #{tpu_custom_call.1} parent=5 // pred_check_branch
        %255 = sbr.rel (%p252) target = $region12
      $region11: #{tpu_custom_call.1} parent=5 // pred_region
        %s256 = ssub.s32 %s20, 1
        // Predicated region
        $region13: #{tpu_custom_call.1} parent=11 // pred_check
          %p257 = pneg %p109
        $region14: #{tpu_custom_call.1} parent=11 // pred_check_branch
          %259 = sbr.rel (%p257) target = $region16
        $region15: #{tpu_custom_call.1} parent=11 // pred_region
          _
        $region16: #{tpu_custom_call.1} parent=11 // pred_fallthru
          _
        // Predicated region
        $region17: #{tpu_custom_call.1} parent=11 // pred_check
          %p260 = pneg %p130
        $region18: #{tpu_custom_call.1} parent=11 // pred_check_branch
          %262 = sbr.rel (%p260) target = $region20
        $region19: #{tpu_custom_call.1} parent=11 // pred_region
          _
        $region20: #{tpu_custom_call.1} parent=11 // pred_fallthru
          _
        // Predicated region
        $region21: #{tpu_custom_call.1} parent=11 // pred_check
          %p263 = pneg %p151
        $region22: #{tpu_custom_call.1} parent=11 // pred_check_branch
          %265 = sbr.rel (%p263) target = $region24
        $region23: #{tpu_custom_call.1} parent=11 // pred_region
          _
        $region24: #{tpu_custom_call.1} parent=11 // pred_fallthru
          _
        // Predicated region
        $region25: #{tpu_custom_call.1} parent=11 // pred_check
          %p266 = pneg %p172
        $region26: #{tpu_custom_call.1} parent=11 // pred_check_branch
          %268 = sbr.rel (%p266) target = $region28
        $region27: #{tpu_custom_call.1} parent=11 // pred_region
          _
        $region28: #{tpu_custom_call.1} parent=11 // pred_fallthru
          _
        // Predicated region
        $region29: #{tpu_custom_call.1} parent=11 // pred_check
          %p269 = pneg %p193
        $region30: #{tpu_custom_call.1} parent=11 // pred_check_branch
          %271 = sbr.rel (%p269) target = $region32
        $region31: #{tpu_custom_call.1} parent=11 // pred_region
          _
        $region32: #{tpu_custom_call.1} parent=11 // pred_fallthru
          _
        // Predicated region
        $region33: #{tpu_custom_call.1} parent=11 // pred_check
          %p272 = pneg %p214
        $region34: #{tpu_custom_call.1} parent=11 // pred_check_branch
          %274 = sbr.rel (%p272) target = $region36
        $region35: #{tpu_custom_call.1} parent=11 // pred_region
          _
        $region36: #{tpu_custom_call.1} parent=11 // pred_fallthru
          _
      $region12: #{tpu_custom_call.1} parent=5 // pred_fallthru
        _
      %p275 = scmp.lt.s32.totalorder %s20, 4
      // Predicated region
      $region37: #{tpu_custom_call.1} parent=5 // pred_check
        %p276 = pneg %p275
      $region38: #{tpu_custom_call.1} parent=5 // pred_check_branch
        %278 = sbr.rel (%p276) target = $region40
      $region39: #{tpu_custom_call.1} parent=5 // pred_region
        // Predicated region
        $region41: #{tpu_custom_call.1} parent=39 // pred_check
          %p279 = pneg %p54
        $region42: #{tpu_custom_call.1} parent=39 // pred_check_branch
          %281 = sbr.rel (%p279) target = $region44
        $region43: #{tpu_custom_call.1} parent=39 // pred_region
          %s282 = sand.u32 %s44, 1
          %s283 = scalar_lea.sflag [#allocation4], %s282
          %s284 = sand.u32 %s44, 1
          %s285 = smul.addr %s284, 128
          %s286 = scalar_lea.vmem [#allocation3], %s285
          %s287 = smul.u32 8, %s28
          %s289 = ssub.s32 2048, 2048
          %290 = vsyncadd %s283, %s289
          %s291 = smul.addr %s287, 2
          %s292 = smul.addr %s27, 32
          %s293 = sadd.s32 %s291, %s292
          %s294 = smul.addr %s293, 128
          %s295 = scalar_lea.hbm %s0, %s294
          %s296 = sshll.u32 %s286, 4
          %s297 = int_to_ptr.vmem [resolvable:$true] %s296
          %302 = dma.hbm_to_vmem [thread:$0]  %s295, 2048, %s297, %s283, 128, 128, 8
        $region44: #{tpu_custom_call.1} parent=39 // pred_fallthru
          _
        // Predicated region
        $region45: #{tpu_custom_call.1} parent=39 // pred_check
          %p303 = pneg %p82
        $region46: #{tpu_custom_call.1} parent=39 // pred_check_branch
          %305 = sbr.rel (%p303) target = $region48
        $region47: #{tpu_custom_call.1} parent=39 // pred_region
          %p306 = scmp.lt.s32.totalorder %s27, 1
          %s307 = scalar_select %p306, %s27, 1
          %p308 = scmp.lt.s32.totalorder %s28, 1
          %s309 = scalar_select %p308, %s28, 1
          %s310 = smul.addr %s309, 4
          %s311 = smul.addr %s307, 8
          %s312 = sadd.s32 %s310, %s311
          %s313 = smul.addr %s312, 8
          %s314 = scalar_lea.vmem %s1, %s313
        $region48: #{tpu_custom_call.1} parent=39 // pred_fallthru
          _
      $region40: #{tpu_custom_call.1} parent=5 // pred_fallthru
        _
      %p315 = scmp.le.s32.totalorder 1, %s20
      %p316 = scmp.lt.s32.totalorder %s20, 5
      %p317 = pnand %p315, %p316
      %p318 = pneg %p317
      // Predicated region
      $region49: #{tpu_custom_call.1} parent=5 // pred_check
        _
      $region50: #{tpu_custom_call.1} parent=5 // pred_check_branch
        %320 = sbr.rel (%p317) target = $region52
      $region51: #{tpu_custom_call.1} parent=5 // pred_region
        %s321 = ssub.s32 %s20, 1
        %s322 = sand.u32 %s47, 1
        %s323 = scalar_lea.sflag [#allocation4], %s322
        %s324 = sand.u32 %s47, 1
        %s325 = smul.addr %s324, 128
        %s326 = scalar_lea.vmem [#allocation3], %s325
        // Predicated region
        $region53: #{tpu_custom_call.1} parent=51 // pred_check
          %p327 = pneg %p60
        $region54: #{tpu_custom_call.1} parent=51 // pred_check_branch
          %329 = sbr.rel (%p327) target = $region56
        $region55: #{tpu_custom_call.1} parent=51 // pred_region
          %330 = dma.done %s323, 2048
        $region56: #{tpu_custom_call.1} parent=51 // pred_fallthru
          _
        %s331 = sand.u32 %s47, 1
        %s332 = scalar_lea.sflag [#allocation4], %s331
        %s333 = sand.u32 %s47, 1
        %s334 = smul.addr %s333, 128
        %s335 = scalar_lea.vmem [#allocation3], %s334
        %p336 = pneg %p60
        %p337 = pneg %p57
        %p338 = scmp.lt.s32.totalorder %s29, 1
        %s339 = scalar_select %p338, %s29, 1
        %p340 = scmp.lt.s32.totalorder %s30, 1
        %s341 = scalar_select %p340, %s30, 1
        %s342 = smul.addr %s341, 4
        %s343 = smul.addr %s339, 8
        %s344 = sadd.s32 %s342, %s343
        %s345 = smul.addr %s344, 8
        %s346 = scalar_lea.vmem %s1, %s345
        %p347 = pneg %p88
        %p348 = pneg %p85
        %p349 = pneg %p109
        %p350 = pneg %p106
        %p351 = pneg %p130
        %p352 = pneg %p127
        %p353 = pneg %p151
        %p354 = pneg %p148
        %p355 = pneg %p172
        %p356 = pneg %p169
        %p357 = pneg %p193
        %p358 = pneg %p190
        %p359 = pneg %p214
        %p360 = pneg %p211
        %p361 = pneg %p242
        %p362 = pneg %p239
        %s363 = sand.u32 %s229, 1
        %s364 = scalar_lea.sflag [#allocation5], %s363
        %s365 = sand.u32 %s229, 1
        %s366 = smul.addr %s365, 128
        %s367 = scalar_lea.vmem [#allocation6], %s366
        %s368 = smul.u32 8, %s30
        %p369 = scmp.lt.s32.totalorder %s29, 1
        %s370 = scalar_select %p369, %s29, 1
        %p371 = scmp.lt.s32.totalorder %s30, 1
        %s372 = scalar_select %p371, %s30, 1
        %s373 = smul.addr %s372, 4
        %s374 = smul.addr %s370, 8
        %s375 = sadd.s32 %s373, %s374
        %s376 = smul.addr %s375, 8
        %s377 = scalar_lea.vmem %s1, %s376
        %s378 = smul.u32 8, %s30
        %vm380 = vcmask 257027
        %vm381 = vsmask.f32 7950
        %vm382 = vmand %vm380, %vm381
        %v383 = vld [vmem:[#allocation2] sm:$0x8]
        %v384 = vsel %vm382, 0, %v383
        %385 = vst [vmem:[#allocation2] sm:$0x8] %v384
        %v386 = vld [vmem:[#allocation2 + $0x10] sm:$0x8]
        %v387 = vsel %vm382, 0, %v386
        %388 = vst [vmem:[#allocation2 + $0x10] sm:$0x8] %v387
        %v389 = vld [vmem:[#allocation2 + $0x20] sm:$0x8]
        %v390 = vsel %vm382, 0, %v389
        %391 = vst [vmem:[#allocation2 + $0x20] sm:$0x8] %v390
        %v392 = vld [vmem:[#allocation2 + $0x30] sm:$0x8]
        %v393 = vsel %vm382, 0, %v392
        %394 = vst [vmem:[#allocation2 + $0x30] sm:$0x8] %v393
        %v395 = vld [vmem:[#allocation2 + $0x40] sm:$0x8]
        %v396 = vsel %vm382, 0, %v395
        %397 = vst [vmem:[#allocation2 + $0x40] sm:$0x8] %v396
        %v398 = vld [vmem:[#allocation2 + $0x50] sm:$0x8]
        %v399 = vsel %vm382, 0, %v398
        %400 = vst [vmem:[#allocation2 + $0x50] sm:$0x8] %v399
        %v401 = vld [vmem:[#allocation2 + $0x60] sm:$0x8]
        %v402 = vsel %vm382, 0, %v401
        %403 = vst [vmem:[#allocation2 + $0x60] sm:$0x8] %v402
        %v404 = vld [vmem:[#allocation2 + $0x70] sm:$0x8]
        %v405 = vsel %vm382, 0, %v404
        %406 = vst [vmem:[#allocation2 + $0x70] sm:$0x8] %v405
        %v407 = vld [vmem:[#allocation2 + $0x80] sm:$0x8]
        %v408 = vsel %vm382, 0, %v407
        %409 = vst [vmem:[#allocation2 + $0x80] sm:$0x8] %v408
        %v410 = vld [vmem:[#allocation2 + $0x90] sm:$0x8]
        %v411 = vsel %vm382, 0, %v410
        %412 = vst [vmem:[#allocation2 + $0x90] sm:$0x8] %v411
        %vm413 = vcmask 253952
        %vm414 = vsmask.f32 256
        %vm415 = vmand %vm413, %vm414
        %v416 = vld [vmem:[#allocation2 + $0xc] sm:$0x1]
        %v417 = vsel %vm415, 0, %v416
        %418 = vst [vmem:[#allocation2 + $0xc] sm:$0x1] %v417
        %v419 = vld [vmem:[#allocation2 + $0x1c] sm:$0x1]
        %v420 = vsel %vm415, 0, %v419
        %421 = vst [vmem:[#allocation2 + $0x1c] sm:$0x1] %v420
        %v422 = vld [vmem:[#allocation2 + $0x2c] sm:$0x1]
        %v423 = vsel %vm415, 0, %v422
        %424 = vst [vmem:[#allocation2 + $0x2c] sm:$0x1] %v423
        %v425 = vld [vmem:[#allocation2 + $0x3c] sm:$0x1]
        %v426 = vsel %vm415, 0, %v425
        %427 = vst [vmem:[#allocation2 + $0x3c] sm:$0x1] %v426
        %v428 = vld [vmem:[#allocation2 + $0x4c] sm:$0x1]
        %v429 = vsel %vm415, 0, %v428
        %430 = vst [vmem:[#allocation2 + $0x4c] sm:$0x1] %v429
        %v431 = vld [vmem:[#allocation2 + $0x5c] sm:$0x1]
        %v432 = vsel %vm415, 0, %v431
        %433 = vst [vmem:[#allocation2 + $0x5c] sm:$0x1] %v432
        %v434 = vld [vmem:[#allocation2 + $0x6c] sm:$0x1]
        %v435 = vsel %vm415, 0, %v434
        %436 = vst [vmem:[#allocation2 + $0x6c] sm:$0x1] %v435
        %v437 = vld [vmem:[#allocation2 + $0x7c] sm:$0x1]
        %v438 = vsel %vm415, 0, %v437
        %439 = vst [vmem:[#allocation2 + $0x7c] sm:$0x1] %v438
        %v440 = vld [vmem:[#allocation2 + $0x8c] sm:$0x1]
        %v441 = vsel %vm415, 0, %v440
        %442 = vst [vmem:[#allocation2 + $0x8c] sm:$0x1] %v441
        %v443 = vld [vmem:[#allocation2 + $0x9c] sm:$0x1]
        %v444 = vsel %vm415, 0, %v443
        %445 = vst [vmem:[#allocation2 + $0x9c] sm:$0x1] %v444
        %v446 = vld [vmem:[%s377] sm:$0xff]
        %v447 = vld [vmem:[%s377 + $0x8] sm:$0xff]
        %v448 = vld [vmem:[%s377 + $0x10] sm:$0xff]
        %v449 = vld [vmem:[%s377 + $0x18] sm:$0xff]
        %v450 = vpack.c.bf16 %v447, %v446
        %v451 = vld [vmem:[%s326] sm:$0xff]
        %v452 = vld [vmem:[%s326 + $0x8] sm:$0xff]
        %v453 = vld [vmem:[%s326 + $0x10] sm:$0xff]
        %v454 = vld [vmem:[%s326 + $0x18] sm:$0xff]
        %v455 = vld [vmem:[%s326 + $0x20] sm:$0xff]
        %v456 = vld [vmem:[%s326 + $0x28] sm:$0xff]
        %v457 = vld [vmem:[%s326 + $0x30] sm:$0xff]
        %v458 = vld [vmem:[%s326 + $0x38] sm:$0xff]
        %v459 = vld [vmem:[%s326 + $0x40] sm:$0xff]
        %v460 = vld [vmem:[%s326 + $0x48] sm:$0xff]
        %v461 = vld [vmem:[%s326 + $0x50] sm:$0xff]
        %v462 = vld [vmem:[%s326 + $0x58] sm:$0xff]
        %v463 = vld [vmem:[%s326 + $0x60] sm:$0xff]
        %v464 = vld [vmem:[%s326 + $0x68] sm:$0xff]
        %v465 = vld [vmem:[%s326 + $0x70] sm:$0xff]
        %v466 = vld [vmem:[%s326 + $0x78] sm:$0xff]
        %v467 = vpack.c.bf16 %v452, %v451
        %v468 = vpack.c.bf16 %v454, %v453
        %v469 = vpack.c.bf16 %v456, %v455
        %v470 = vpack.c.bf16 %v458, %v457
        %v471 = vpack.c.bf16 %v460, %v459
        %v472 = vpack.c.bf16 %v462, %v461
        %v473 = vpack.c.bf16 %v464, %v463
        %v474 = vpack.c.bf16 %v466, %v465
        %v475 = vpack.c.bf16 %v449, %v448
        %v476 = vld [vmem:[%s2] sm:$0xf]
        %v477 = vld [vmem:[%s2 + $0x4] sm:$0xf]
        %v478 = vld [vmem:[%s2 + $0x8] sm:$0xf]
        %v479 = vld [vmem:[%s2 + $0xc] sm:$0xf]
        %v480 = vld [vmem:[%s2 + $0x10] sm:$0xf]
        %v481 = vld [vmem:[%s2 + $0x14] sm:$0xf]
        %v482 = vld [vmem:[%s2 + $0x18] sm:$0xf]
        %v483 = vld [vmem:[%s2 + $0x1c] sm:$0xf]
        %v484 = vld [vmem:[%s2 + $0x20] sm:$0xf]
        %v485 = vld [vmem:[%s2 + $0x24] sm:$0xf]
        %v486 = vld [vmem:[%s2 + $0x28] sm:$0xf]
        %v487 = vld [vmem:[%s2 + $0x2c] sm:$0xf]
        %v488 = vld [vmem:[%s2 + $0x30] sm:$0xf]
        %v489 = vld [vmem:[%s2 + $0x34] sm:$0xf]
        %v490 = vld [vmem:[%s2 + $0x38] sm:$0xf]
        %v491 = vld [vmem:[%s2 + $0x3c] sm:$0xf]
        %v492 = vld [vmem:[%s3] sm:$0x1]
        %v494 = vlaneseq
        %v495 = vshrl.u32 %v494, 7
        %v496 = vsub.s32 0, %v495
        %v497 = vrot.slane %v492, %v496
        %v515 = vunpack.c.l.b16 %v476
        %v516 = vunpack.c.l.b16 %v477
        %v517 = vunpack.c.l.b16 %v478
        %v518 = vunpack.c.l.b16 %v479
        %v519 = vunpack.c.l.b16 %v480
        %v520 = vunpack.c.l.b16 %v481
        %v521 = vunpack.c.l.b16 %v482
        %v522 = vunpack.c.l.b16 %v483
        %v523 = vunpack.c.l.b16 %v484
        %v524 = vunpack.c.l.b16 %v485
        %v525 = vunpack.c.l.b16 %v486
        %v526 = vunpack.c.l.b16 %v487
        %v527 = vunpack.c.l.b16 %v488
        %v528 = vunpack.c.l.b16 %v489
        %v529 = vunpack.c.l.b16 %v490
        %v530 = vunpack.c.l.b16 %v491
        %v531 = vpack.c.b16 %v516, %v515
        %v532 = vpack.c.b16 %v518, %v517
        %v533 = vpack.c.b16 %v520, %v519
        %v534 = vpack.c.b16 %v522, %v521
        %v535 = vpack.c.b16 %v524, %v523
        %v536 = vpack.c.b16 %v526, %v525
        %v537 = vpack.c.b16 %v528, %v527
        %v538 = vpack.c.b16 %v530, %v529
        %547 = vmatprep.subr.bf16.mxu0 0
        %548 = vmatpush1.bf16.msra.mxu0 %v538
        %549 = vmatprep.subr.bf16.mxu0 0
        %550 = vmatpush1.bf16.msra.mxu0 %v537
        %551 = vmatprep.subr.bf16.mxu0 0
        %552 = vmatpush1.bf16.msra.mxu0 %v536
        %553 = vmatprep.subr.bf16.mxu0 0
        %554 = vmatpush1.bf16.msra.mxu0 %v535
        %555 = vmatprep.subr.bf16.mxu0 0
        %556 = vmatpush1.bf16.msra.mxu0 %v534
        %557 = vmatprep.subr.bf16.mxu0 0
        %558 = vmatpush1.bf16.msra.mxu0 %v533
        %559 = vmatprep.subr.bf16.mxu0 0
        %560 = vmatpush1.bf16.msra.mxu0 %v532
        %561 = vmatprep.subr.bf16.mxu0 0
        %562 = vmatpush1.bf16.msra.mxu0 %v531
        %563 = vmatprep.subr.bf16.mxu0 0
        %564 = vmatpush2.bf16.msra.mxu0 0
        %565 = vmatprep.subr.bf16.mxu0 0
        %566 = vmatpush2.bf16.msra.mxu0 0
        %567 = vmatprep.subr.bf16.mxu0 0
        %568 = vmatpush2.bf16.msra.mxu0 0
        %569 = vmatprep.subr.bf16.mxu0 0
        %570 = vmatpush2.bf16.msra.mxu0 0
        %571 = vmatprep.subr.bf16.mxu0 0
        %572 = vmatpush2.bf16.msra.mxu0 0
        %573 = vmatprep.subr.bf16.mxu0 0
        %574 = vmatpush2.bf16.msra.mxu0 0
        %575 = vmatprep.subr.bf16.mxu0 0
        %576 = vmatpush2.bf16.msra.mxu0 0
        %577 = vmatprep.subr.bf16.mxu0 0
        %578 = vmatpush2.bf16.msra.mxu0 0
        %579 = vmatprep.mubr.bf16.mxu0 0
        %580 = vmatmul.mubr.bf16.gmra.mxu0 %v450
        %v581 = vpop.f32.mrf.mxu0
        %v582 = vadd.f32 %v497, %v581
        %v583 = vpop.f32.mrf.mxu0
        %v584 = vpop.f32.mrf.mxu0
        %v585 = vadd.f32 %v497, %v584
        %v586 = vpop.f32.mrf.mxu0
        %587 = vmatprep.mubr.bf16.mxu0 0
        %588 = vmatmul.mubr.bf16.gmra.mxu0 %v467
        %v589 = vpop.f32.mrf.mxu0
        %v590 = vadd.f32 %v497, %v589
        %v591 = vpop.f32.mrf.mxu0
        %v592 = vpop.f32.mrf.mxu0
        %v593 = vadd.f32 %v497, %v592
        %v594 = vpop.f32.mrf.mxu0
        %595 = vmatprep.mubr.bf16.mxu0 0
        %596 = vmatmul.mubr.bf16.gmra.mxu0 %v468
        %v597 = vpop.f32.mrf.mxu0
        %v598 = vadd.f32 %v497, %v597
        %v599 = vpop.f32.mrf.mxu0
        %v600 = vpop.f32.mrf.mxu0
        %v601 = vadd.f32 %v497, %v600
        %v602 = vpop.f32.mrf.mxu0
        %603 = vmatprep.mubr.bf16.mxu0 0
        %604 = vmatmul.mubr.bf16.gmra.mxu0 %v469
        %v605 = vpop.f32.mrf.mxu0
        %v606 = vadd.f32 %v497, %v605
        %v607 = vpop.f32.mrf.mxu0
        %v608 = vpop.f32.mrf.mxu0
        %v609 = vadd.f32 %v497, %v608
        %v610 = vpop.f32.mrf.mxu0
        %611 = vmatprep.mubr.bf16.mxu0 0
        %612 = vmatmul.mubr.bf16.gmra.mxu0 %v470
        %v613 = vpop.f32.mrf.mxu0
        %v614 = vadd.f32 %v497, %v613
        %v615 = vpop.f32.mrf.mxu0
        %v616 = vpop.f32.mrf.mxu0
        %v617 = vadd.f32 %v497, %v616
        %v618 = vpop.f32.mrf.mxu0
        %619 = vmatprep.mubr.bf16.mxu0 0
        %620 = vmatmul.mubr.bf16.gmra.mxu0 %v471
        %v621 = vpop.f32.mrf.mxu0
        %v622 = vadd.f32 %v497, %v621
        %v623 = vpop.f32.mrf.mxu0
        %v624 = vpop.f32.mrf.mxu0
        %v625 = vadd.f32 %v497, %v624
        %v626 = vpop.f32.mrf.mxu0
        %627 = vmatprep.mubr.bf16.mxu0 0
        %628 = vmatmul.mubr.bf16.gmra.mxu0 %v472
        %v629 = vpop.f32.mrf.mxu0
        %v630 = vadd.f32 %v497, %v629
        %v631 = vpop.f32.mrf.mxu0
        %v632 = vpop.f32.mrf.mxu0
        %v633 = vadd.f32 %v497, %v632
        %v634 = vpop.f32.mrf.mxu0
        %635 = vmatprep.mubr.bf16.mxu0 0
        %636 = vmatmul.mubr.bf16.gmra.mxu0 %v473
        %v637 = vpop.f32.mrf.mxu0
        %v638 = vadd.f32 %v497, %v637
        %v639 = vpop.f32.mrf.mxu0
        %v640 = vpop.f32.mrf.mxu0
        %v641 = vadd.f32 %v497, %v640
        %v642 = vpop.f32.mrf.mxu0
        %643 = vmatprep.mubr.bf16.mxu0 0
        %644 = vmatmul.mubr.bf16.gmra.mxu0 %v474
        %v645 = vpop.f32.mrf.mxu0
        %v646 = vadd.f32 %v497, %v645
        %v647 = vpop.f32.mrf.mxu0
        %v648 = vpop.f32.mrf.mxu0
        %v649 = vadd.f32 %v497, %v648
        %v650 = vpop.f32.mrf.mxu0
        %651 = vmatprep.mubr.bf16.mxu0 0
        %652 = vmatmul.mubr.bf16.gmra.mxu0 %v475
        %v653 = vpop.f32.mrf.mxu0
        %v654 = vadd.f32 %v497, %v653
        %v655 = vpop.f32.mrf.mxu0
        %v656 = vpop.f32.mrf.mxu0
        %v657 = vadd.f32 %v497, %v656
        %v658 = vpop.f32.mrf.mxu0
        %659 = vdwg.mxu0
        %v660 = vmax.f32 %v582, 0.0
        %v661 = vmax.f32 %v585, 0.0
        %v662 = vmax.f32 %v590, 0.0
        %v663 = vmax.f32 %v593, 0.0
        %v664 = vmax.f32 %v598, 0.0
        %v665 = vmax.f32 %v601, 0.0
        %v666 = vmax.f32 %v606, 0.0
        %v667 = vmax.f32 %v609, 0.0
        %v668 = vmax.f32 %v614, 0.0
        %v669 = vmax.f32 %v617, 0.0
        %v670 = vmax.f32 %v622, 0.0
        %v671 = vmax.f32 %v625, 0.0
        %v672 = vmax.f32 %v630, 0.0
        %v673 = vmax.f32 %v633, 0.0
        %v674 = vmax.f32 %v638, 0.0
        %v675 = vmax.f32 %v641, 0.0
        %v676 = vmax.f32 %v646, 0.0
        %v677 = vmax.f32 %v649, 0.0
        %v678 = vmax.f32 %v654, 0.0
        %v679 = vmax.f32 %v657, 0.0
        %v680 = vpack.c.bf16 %v661, %v660
        %v681 = vpack.c.bf16 %v663, %v662
        %v682 = vpack.c.bf16 %v665, %v664
        %v683 = vpack.c.bf16 %v667, %v666
        %v684 = vpack.c.bf16 %v669, %v668
        %v685 = vpack.c.bf16 %v671, %v670
        %v686 = vpack.c.bf16 %v673, %v672
        %v687 = vpack.c.bf16 %v675, %v674
        %v688 = vpack.c.bf16 %v677, %v676
        %v689 = vpack.c.bf16 %v679, %v678
        %v700 = vunpack.c.l.b16 %v680
        %v701 = vunpack.c.h.b16 %v680
        %v702 = vunpack.c.l.b16 %v681
        %v703 = vunpack.c.h.b16 %v681
        %v704 = vunpack.c.l.b16 %v682
        %v705 = vunpack.c.h.b16 %v682
        %v706 = vunpack.c.l.b16 %v683
        %v707 = vunpack.c.h.b16 %v683
        %v708 = vunpack.c.l.b16 %v684
        %v709 = vunpack.c.h.b16 %v684
        %v710 = vunpack.c.l.b16 %v685
        %v711 = vunpack.c.h.b16 %v685
        %v712 = vunpack.c.l.b16 %v686
        %v713 = vunpack.c.h.b16 %v686
        %v714 = vunpack.c.l.b16 %v687
        %v715 = vunpack.c.h.b16 %v687
        %v716 = vunpack.c.l.b16 %v688
        %v717 = vunpack.c.h.b16 %v688
        %v718 = vunpack.c.l.b16 %v689
        %v719 = vunpack.c.h.b16 %v689
        %v720 = vpack.c.b16 %v700, %v700
        %v721 = vpack.c.b16 %v701, %v701
        %v722 = vpack.c.b16 %v702, %v702
        %v723 = vpack.c.b16 %v703, %v703
        %v724 = vpack.c.b16 %v704, %v704
        %v725 = vpack.c.b16 %v705, %v705
        %v726 = vpack.c.b16 %v706, %v706
        %v727 = vpack.c.b16 %v707, %v707
        %v728 = vpack.c.b16 %v708, %v708
        %v729 = vpack.c.b16 %v709, %v709
        %v730 = vpack.c.b16 %v710, %v710
        %v731 = vpack.c.b16 %v711, %v711
        %v732 = vpack.c.b16 %v712, %v712
        %v733 = vpack.c.b16 %v713, %v713
        %v734 = vpack.c.b16 %v714, %v714
        %v735 = vpack.c.b16 %v715, %v715
        %v736 = vpack.c.b16 %v716, %v716
        %v737 = vpack.c.b16 %v717, %v717
        %v738 = vpack.c.b16 %v718, %v718
        %v739 = vpack.c.b16 %v719, %v719
        %vm760 = vcmask 257024
        %761 = vst.msk [vmem:[#allocation2 + $0x4] sm:$0xf] %vm760, %v720
        %762 = vst.msk [vmem:[#allocation2 + $0x8] sm:$0xf] %vm760, %v721
        %763 = vst.msk [vmem:[#allocation2 + $0x14] sm:$0xf] %vm760, %v722
        %764 = vst.msk [vmem:[#allocation2 + $0x18] sm:$0xf] %vm760, %v723
        %765 = vst.msk [vmem:[#allocation2 + $0x24] sm:$0xf] %vm760, %v724
        %766 = vst.msk [vmem:[#allocation2 + $0x28] sm:$0xf] %vm760, %v725
        %767 = vst.msk [vmem:[#allocation2 + $0x34] sm:$0xf] %vm760, %v726
        %768 = vst.msk [vmem:[#allocation2 + $0x38] sm:$0xf] %vm760, %v727
        %769 = vst.msk [vmem:[#allocation2 + $0x44] sm:$0xf] %vm760, %v728
        %770 = vst.msk [vmem:[#allocation2 + $0x48] sm:$0xf] %vm760, %v729
        %771 = vst.msk [vmem:[#allocation2 + $0x54] sm:$0xf] %vm760, %v730
        %772 = vst.msk [vmem:[#allocation2 + $0x58] sm:$0xf] %vm760, %v731
        %773 = vst.msk [vmem:[#allocation2 + $0x64] sm:$0xf] %vm760, %v732
        %774 = vst.msk [vmem:[#allocation2 + $0x68] sm:$0xf] %vm760, %v733
        %775 = vst.msk [vmem:[#allocation2 + $0x74] sm:$0xf] %vm760, %v734
        %776 = vst.msk [vmem:[#allocation2 + $0x78] sm:$0xf] %vm760, %v735
        %777 = vst.msk [vmem:[#allocation2 + $0x84] sm:$0xf] %vm760, %v736
        %778 = vst.msk [vmem:[#allocation2 + $0x88] sm:$0xf] %vm760, %v737
        %779 = vst.msk [vmem:[#allocation2 + $0x94] sm:$0xf] %vm760, %v738
        %780 = vst.msk [vmem:[#allocation2 + $0x98] sm:$0xf] %vm760, %v739
        %p781 = scmp.eq.s32.totalorder %s30, 0
        // Predicated region
        $region57: #{tpu_custom_call.1} parent=51 // pred_check
          %p782 = pneg %p781
        $region58: #{tpu_custom_call.1} parent=51 // pred_check_branch
          %784 = sbr.rel (%p782) target = $region60
        $region59: #{tpu_custom_call.1} parent=51 // pred_region
          %v785 = vld [vmem:[#allocation2] sm:$0x8]
          %v786 = vsel %vm382, 0, %v785
          %787 = vst [vmem:[#allocation2] sm:$0x8] %v786
          %788 = vst.msk [vmem:[#allocation2 + $0x4] sm:$0xf] %vm760, 0
          %789 = vst.msk [vmem:[#allocation2 + $0x8] sm:$0xf] %vm760, 0
          %v790 = vld [vmem:[#allocation2 + $0xc] sm:$0x1]
          %v791 = vsel %vm415, 0, %v790
          %792 = vst [vmem:[#allocation2 + $0xc] sm:$0x1] %v791
        $region60: #{tpu_custom_call.1} parent=51 // pred_fallthru
          _
        %p793 = scmp.eq.s32.totalorder %s30, 1
        // Predicated region
        $region61: #{tpu_custom_call.1} parent=51 // pred_check
          %p794 = pneg %p793
        $region62: #{tpu_custom_call.1} parent=51 // pred_check_branch
          %796 = sbr.rel (%p794) target = $region64
        $region63: #{tpu_custom_call.1} parent=51 // pred_region
          %s797 = scalar_lea.vmem [#allocation2], 144
          %v798 = vld [vmem:[%s797] sm:$0x8]
          %v799 = vsel %vm382, 0, %v798
          %800 = vst [vmem:[%s797] sm:$0x8] %v799
          %801 = vst.msk [vmem:[%s797 + $0x4] sm:$0xf] %vm760, 0
          %802 = vst.msk [vmem:[%s797 + $0x8] sm:$0xf] %vm760, 0
          %v803 = vld [vmem:[%s797 + $0xc] sm:$0x1]
          %v804 = vsel %vm415, 0, %v803
          %805 = vst [vmem:[%s797 + $0xc] sm:$0x1] %v804
        $region64: #{tpu_custom_call.1} parent=51 // pred_fallthru
          _
        %v806 = vld [vmem:[#allocation2] sm:$0x8]
        %v807 = vld [vmem:[#allocation2 + $0x4] sm:$0xf]
        %v808 = vld [vmem:[#allocation2 + $0x8] sm:$0xf]
        %v809 = vld [vmem:[#allocation2 + $0x10] sm:$0x8]
        %v810 = vld [vmem:[#allocation2 + $0x14] sm:$0xf]
        %v811 = vld [vmem:[#allocation2 + $0x18] sm:$0xf]
        %v812 = vld [vmem:[#allocation2 + $0x20] sm:$0x8]
        %v813 = vld [vmem:[#allocation2 + $0x24] sm:$0xf]
        %v814 = vld [vmem:[#allocation2 + $0x28] sm:$0xf]
        %v815 = vld [vmem:[#allocation2 + $0x30] sm:$0x8]
        %v816 = vld [vmem:[#allocation2 + $0x34] sm:$0xf]
        %v817 = vld [vmem:[#allocation2 + $0x38] sm:$0xf]
        %v818 = vld [vmem:[#allocation2 + $0x40] sm:$0x8]
        %v819 = vld [vmem:[#allocation2 + $0x44] sm:$0xf]
        %v820 = vld [vmem:[#allocation2 + $0x48] sm:$0xf]
        %v821 = vld [vmem:[#allocation2 + $0x50] sm:$0x8]
        %v822 = vld [vmem:[#allocation2 + $0x54] sm:$0xf]
        %v823 = vld [vmem:[#allocation2 + $0x58] sm:$0xf]
        %v824 = vld [vmem:[#allocation2 + $0x60] sm:$0x8]
        %v825 = vld [vmem:[#allocation2 + $0x64] sm:$0xf]
        %v826 = vld [vmem:[#allocation2 + $0x68] sm:$0xf]
        %v827 = vld [vmem:[#allocation2 + $0x70] sm:$0x8]
        %v828 = vld [vmem:[#allocation2 + $0x74] sm:$0xf]
        %v829 = vld [vmem:[#allocation2 + $0x78] sm:$0xf]
        %vm830 = vsmask.f32 4368
        %vm831 = vmor %vm414, %vm830
        %v833 = vshrl.u32 %v806, 16
        %v835 = vrot.slane %v833, 7
        %v836 = vrot.slane %v835, 4
        %v838 = vshrl.u32 %v807, 16
        %v840 = vrot.slane %v838, 7
        %v841 = vshll.u32 %v807, 16
        %v843 = vor.u32 %v840, %v841
        %v844 = vsel %vm831, %v836, %v843
        %v845 = vrot.slane %v840, 4
        %v847 = vshrl.u32 %v808, 16
        %v849 = vrot.slane %v847, 7
        %v850 = vshll.u32 %v808, 16
        %v852 = vor.u32 %v849, %v850
        %v853 = vsel %vm831, %v845, %v852
        %v855 = vshrl.u32 %v809, 16
        %v857 = vrot.slane %v855, 7
        %v858 = vrot.slane %v857, 4
        %v860 = vshrl.u32 %v810, 16
        %v862 = vrot.slane %v860, 7
        %v863 = vshll.u32 %v810, 16
        %v865 = vor.u32 %v862, %v863
        %v866 = vsel %vm831, %v858, %v865
        %v867 = vrot.slane %v862, 4
        %v869 = vshrl.u32 %v811, 16
        %v871 = vrot.slane %v869, 7
        %v872 = vshll.u32 %v811, 16
        %v874 = vor.u32 %v871, %v872
        %v875 = vsel %vm831, %v867, %v874
        %v877 = vshrl.u32 %v812, 16
        %v879 = vrot.slane %v877, 7
        %v880 = vrot.slane %v879, 4
        %v882 = vshrl.u32 %v813, 16
        %v884 = vrot.slane %v882, 7
        %v885 = vshll.u32 %v813, 16
        %v887 = vor.u32 %v884, %v885
        %v888 = vsel %vm831, %v880, %v887
        %v889 = vrot.slane %v884, 4
        %v891 = vshrl.u32 %v814, 16
        %v893 = vrot.slane %v891, 7
        %v894 = vshll.u32 %v814, 16
        %v896 = vor.u32 %v893, %v894
        %v897 = vsel %vm831, %v889, %v896
        %v899 = vshrl.u32 %v815, 16
        %v901 = vrot.slane %v899, 7
        %v902 = vrot.slane %v901, 4
        %v904 = vshrl.u32 %v816, 16
        %v906 = vrot.slane %v904, 7
        %v907 = vshll.u32 %v816, 16
        %v909 = vor.u32 %v906, %v907
        %v910 = vsel %vm831, %v902, %v909
        %v911 = vrot.slane %v906, 4
        %v913 = vshrl.u32 %v817, 16
        %v915 = vrot.slane %v913, 7
        %v916 = vshll.u32 %v817, 16
        %v918 = vor.u32 %v915, %v916
        %v919 = vsel %vm831, %v911, %v918
        %v921 = vshrl.u32 %v818, 16
        %v923 = vrot.slane %v921, 7
        %v924 = vrot.slane %v923, 4
        %v926 = vshrl.u32 %v819, 16
        %v928 = vrot.slane %v926, 7
        %v929 = vshll.u32 %v819, 16
        %v931 = vor.u32 %v928, %v929
        %v932 = vsel %vm831, %v924, %v931
        %v933 = vrot.slane %v928, 4
        %v935 = vshrl.u32 %v820, 16
        %v937 = vrot.slane %v935, 7
        %v938 = vshll.u32 %v820, 16
        %v940 = vor.u32 %v937, %v938
        %v941 = vsel %vm831, %v933, %v940
        %v943 = vshrl.u32 %v821, 16
        %v945 = vrot.slane %v943, 7
        %v946 = vrot.slane %v945, 4
        %v948 = vshrl.u32 %v822, 16
        %v950 = vrot.slane %v948, 7
        %v951 = vshll.u32 %v822, 16
        %v953 = vor.u32 %v950, %v951
        %v954 = vsel %vm831, %v946, %v953
        %v955 = vrot.slane %v950, 4
        %v957 = vshrl.u32 %v823, 16
        %v959 = vrot.slane %v957, 7
        %v960 = vshll.u32 %v823, 16
        %v962 = vor.u32 %v959, %v960
        %v963 = vsel %vm831, %v955, %v962
        %v965 = vshrl.u32 %v824, 16
        %v967 = vrot.slane %v965, 7
        %v968 = vrot.slane %v967, 4
        %v970 = vshrl.u32 %v825, 16
        %v972 = vrot.slane %v970, 7
        %v973 = vshll.u32 %v825, 16
        %v975 = vor.u32 %v972, %v973
        %v976 = vsel %vm831, %v968, %v975
        %v977 = vrot.slane %v972, 4
        %v979 = vshrl.u32 %v826, 16
        %v981 = vrot.slane %v979, 7
        %v982 = vshll.u32 %v826, 16
        %v984 = vor.u32 %v981, %v982
        %v985 = vsel %vm831, %v977, %v984
        %v987 = vshrl.u32 %v827, 16
        %v989 = vrot.slane %v987, 7
        %v990 = vrot.slane %v989, 4
        %v992 = vshrl.u32 %v828, 16
        %v994 = vrot.slane %v992, 7
        %v995 = vshll.u32 %v828, 16
        %v997 = vor.u32 %v994, %v995
        %v998 = vsel %vm831, %v990, %v997
        %v999 = vrot.slane %v994, 4
        %v1001 = vshrl.u32 %v829, 16
        %v1003 = vrot.slane %v1001, 7
        %v1004 = vshll.u32 %v829, 16
        %v1006 = vor.u32 %v1003, %v1004
        %v1007 = vsel %vm831, %v999, %v1006
        %v1008 = vld [vmem:[#allocation2 + $0xc] sm:$0x1]
        %v1009 = vld [vmem:[#allocation2 + $0x1c] sm:$0x1]
        %v1010 = vld [vmem:[#allocation2 + $0x2c] sm:$0x1]
        %v1011 = vld [vmem:[#allocation2 + $0x3c] sm:$0x1]
        %v1012 = vld [vmem:[#allocation2 + $0x4c] sm:$0x1]
        %v1013 = vld [vmem:[#allocation2 + $0x5c] sm:$0x1]
        %v1014 = vld [vmem:[#allocation2 + $0x6c] sm:$0x1]
        %v1015 = vld [vmem:[#allocation2 + $0x7c] sm:$0x1]
        %vm1016 = vsmask.f32 3328
        %vm1017 = vsmask.f32 7440
        %vm1018 = vmor %vm1016, %vm1017
        %v1019 = vrot.slane %v838, 4
        %v1020 = vrot.slane %v841, 5
        %v1021 = vor.u32 %v1019, %v1020
        %v1022 = vrot.slane %v1021, 4
        %v1023 = vrot.slane %v850, 5
        %v1024 = vsel %vm1018, %v1022, %v1023
        %v1025 = vrot.slane %v847, 4
        %v1026 = vor.u32 %v1025, %v1023
        %v1027 = vrot.slane %v1026, 4
        %v1029 = vshll.u32 %v1008, 16
        %v1031 = vrot.slane %v1029, 5
        %v1032 = vsel %vm1018, %v1027, %v1031
        %v1033 = vrot.slane %v860, 4
        %v1034 = vrot.slane %v863, 5
        %v1035 = vor.u32 %v1033, %v1034
        %v1036 = vrot.slane %v1035, 4
        %v1037 = vrot.slane %v872, 5
        %v1038 = vsel %vm1018, %v1036, %v1037
        %v1039 = vrot.slane %v869, 4
        %v1040 = vor.u32 %v1039, %v1037
        %v1041 = vrot.slane %v1040, 4
        %v1043 = vshll.u32 %v1009, 16
        %v1045 = vrot.slane %v1043, 5
        %v1046 = vsel %vm1018, %v1041, %v1045
        %v1047 = vrot.slane %v882, 4
        %v1048 = vrot.slane %v885, 5
        %v1049 = vor.u32 %v1047, %v1048
        %v1050 = vrot.slane %v1049, 4
        %v1051 = vrot.slane %v894, 5
        %v1052 = vsel %vm1018, %v1050, %v1051
        %v1053 = vrot.slane %v891, 4
        %v1054 = vor.u32 %v1053, %v1051
        %v1055 = vrot.slane %v1054, 4
        %v1057 = vshll.u32 %v1010, 16
        %v1059 = vrot.slane %v1057, 5
        %v1060 = vsel %vm1018, %v1055, %v1059
        %v1061 = vrot.slane %v904, 4
        %v1062 = vrot.slane %v907, 5
        %v1063 = vor.u32 %v1061, %v1062
        %v1064 = vrot.slane %v1063, 4
        %v1065 = vrot.slane %v916, 5
        %v1066 = vsel %vm1018, %v1064, %v1065
        %v1067 = vrot.slane %v913, 4
        %v1068 = vor.u32 %v1067, %v1065
        %v1069 = vrot.slane %v1068, 4
        %v1071 = vshll.u32 %v1011, 16
        %v1073 = vrot.slane %v1071, 5
        %v1074 = vsel %vm1018, %v1069, %v1073
        %v1075 = vrot.slane %v926, 4
        %v1076 = vrot.slane %v929, 5
        %v1077 = vor.u32 %v1075, %v1076
        %v1078 = vrot.slane %v1077, 4
        %v1079 = vrot.slane %v938, 5
        %v1080 = vsel %vm1018, %v1078, %v1079
        %v1081 = vrot.slane %v935, 4
        %v1082 = vor.u32 %v1081, %v1079
        %v1083 = vrot.slane %v1082, 4
        %v1085 = vshll.u32 %v1012, 16
        %v1087 = vrot.slane %v1085, 5
        %v1088 = vsel %vm1018, %v1083, %v1087
        %v1089 = vrot.slane %v948, 4
        %v1090 = vrot.slane %v951, 5
        %v1091 = vor.u32 %v1089, %v1090
        %v1092 = vrot.slane %v1091, 4
        %v1093 = vrot.slane %v960, 5
        %v1094 = vsel %vm1018, %v1092, %v1093
        %v1095 = vrot.slane %v957, 4
        %v1096 = vor.u32 %v1095, %v1093
        %v1097 = vrot.slane %v1096, 4
        %v1099 = vshll.u32 %v1013, 16
        %v1101 = vrot.slane %v1099, 5
        %v1102 = vsel %vm1018, %v1097, %v1101
        %v1103 = vrot.slane %v970, 4
        %v1104 = vrot.slane %v973, 5
        %v1105 = vor.u32 %v1103, %v1104
        %v1106 = vrot.slane %v1105, 4
        %v1107 = vrot.slane %v982, 5
        %v1108 = vsel %vm1018, %v1106, %v1107
        %v1109 = vrot.slane %v979, 4
        %v1110 = vor.u32 %v1109, %v1107
        %v1111 = vrot.slane %v1110, 4
        %v1113 = vshll.u32 %v1014, 16
        %v1115 = vrot.slane %v1113, 5
        %v1116 = vsel %vm1018, %v1111, %v1115
        %v1117 = vrot.slane %v992, 4
        %v1118 = vrot.slane %v995, 5
        %v1119 = vor.u32 %v1117, %v1118
        %v1120 = vrot.slane %v1119, 4
        %v1121 = vrot.slane %v1004, 5
        %v1122 = vsel %vm1018, %v1120, %v1121
        %v1123 = vrot.slane %v1001, 4
        %v1124 = vor.u32 %v1123, %v1121
        %v1125 = vrot.slane %v1124, 4
        %v1127 = vshll.u32 %v1015, 16
        %v1129 = vrot.slane %v1127, 5
        %v1130 = vsel %vm1018, %v1125, %v1129
        %s1131 = scalar_lea.vmem [#allocation2], 16
        %v1132 = vld [vmem:[%s1131] sm:$0x8]
        %v1133 = vld [vmem:[%s1131 + $0x4] sm:$0xf]
        %v1134 = vld [vmem:[%s1131 + $0x8] sm:$0xf]
        %v1135 = vld [vmem:[%s1131 + $0x10] sm:$0x8]
        %v1136 = vld [vmem:[%s1131 + $0x14] sm:$0xf]
        %v1137 = vld [vmem:[%s1131 + $0x18] sm:$0xf]
        %v1138 = vld [vmem:[%s1131 + $0x20] sm:$0x8]
        %v1139 = vld [vmem:[%s1131 + $0x24] sm:$0xf]
        %v1140 = vld [vmem:[%s1131 + $0x28] sm:$0xf]
        %v1141 = vld [vmem:[%s1131 + $0x30] sm:$0x8]
        %v1142 = vld [vmem:[%s1131 + $0x34] sm:$0xf]
        %v1143 = vld [vmem:[%s1131 + $0x38] sm:$0xf]
        %v1144 = vld [vmem:[%s1131 + $0x40] sm:$0x8]
        %v1145 = vld [vmem:[%s1131 + $0x44] sm:$0xf]
        %v1146 = vld [vmem:[%s1131 + $0x48] sm:$0xf]
        %v1147 = vld [vmem:[%s1131 + $0x50] sm:$0x8]
        %v1148 = vld [vmem:[%s1131 + $0x54] sm:$0xf]
        %v1149 = vld [vmem:[%s1131 + $0x58] sm:$0xf]
        %v1150 = vld [vmem:[%s1131 + $0x60] sm:$0x8]
        %v1151 = vld [vmem:[%s1131 + $0x64] sm:$0xf]
        %v1152 = vld [vmem:[%s1131 + $0x68] sm:$0xf]
        %v1153 = vld [vmem:[%s1131 + $0x70] sm:$0x8]
        %v1154 = vld [vmem:[%s1131 + $0x74] sm:$0xf]
        %v1155 = vld [vmem:[%s1131 + $0x78] sm:$0xf]
        %v1157 = vshrl.u32 %v1132, 16
        %v1159 = vrot.slane %v1157, 7
        %v1160 = vrot.slane %v1159, 4
        %v1162 = vshrl.u32 %v1133, 16
        %v1164 = vrot.slane %v1162, 7
        %v1165 = vshll.u32 %v1133, 16
        %v1167 = vor.u32 %v1164, %v1165
        %v1168 = vsel %vm831, %v1160, %v1167
        %v1169 = vrot.slane %v1164, 4
        %v1171 = vshrl.u32 %v1134, 16
        %v1173 = vrot.slane %v1171, 7
        %v1174 = vshll.u32 %v1134, 16
        %v1176 = vor.u32 %v1173, %v1174
        %v1177 = vsel %vm831, %v1169, %v1176
        %v1179 = vshrl.u32 %v1135, 16
        %v1181 = vrot.slane %v1179, 7
        %v1182 = vrot.slane %v1181, 4
        %v1184 = vshrl.u32 %v1136, 16
        %v1186 = vrot.slane %v1184, 7
        %v1187 = vshll.u32 %v1136, 16
        %v1189 = vor.u32 %v1186, %v1187
        %v1190 = vsel %vm831, %v1182, %v1189
        %v1191 = vrot.slane %v1186, 4
        %v1193 = vshrl.u32 %v1137, 16
        %v1195 = vrot.slane %v1193, 7
        %v1196 = vshll.u32 %v1137, 16
        %v1198 = vor.u32 %v1195, %v1196
        %v1199 = vsel %vm831, %v1191, %v1198
        %v1201 = vshrl.u32 %v1138, 16
        %v1203 = vrot.slane %v1201, 7
        %v1204 = vrot.slane %v1203, 4
        %v1206 = vshrl.u32 %v1139, 16
        %v1208 = vrot.slane %v1206, 7
        %v1209 = vshll.u32 %v1139, 16
        %v1211 = vor.u32 %v1208, %v1209
        %v1212 = vsel %vm831, %v1204, %v1211
        %v1213 = vrot.slane %v1208, 4
        %v1215 = vshrl.u32 %v1140, 16
        %v1217 = vrot.slane %v1215, 7
        %v1218 = vshll.u32 %v1140, 16
        %v1220 = vor.u32 %v1217, %v1218
        %v1221 = vsel %vm831, %v1213, %v1220
        %v1223 = vshrl.u32 %v1141, 16
        %v1225 = vrot.slane %v1223, 7
        %v1226 = vrot.slane %v1225, 4
        %v1228 = vshrl.u32 %v1142, 16
        %v1230 = vrot.slane %v1228, 7
        %v1231 = vshll.u32 %v1142, 16
        %v1233 = vor.u32 %v1230, %v1231
        %v1234 = vsel %vm831, %v1226, %v1233
        %v1235 = vrot.slane %v1230, 4
        %v1237 = vshrl.u32 %v1143, 16
        %v1239 = vrot.slane %v1237, 7
        %v1240 = vshll.u32 %v1143, 16
        %v1242 = vor.u32 %v1239, %v1240
        %v1243 = vsel %vm831, %v1235, %v1242
        %v1245 = vshrl.u32 %v1144, 16
        %v1247 = vrot.slane %v1245, 7
        %v1248 = vrot.slane %v1247, 4
        %v1250 = vshrl.u32 %v1145, 16
        %v1252 = vrot.slane %v1250, 7
        %v1253 = vshll.u32 %v1145, 16
        %v1255 = vor.u32 %v1252, %v1253
        %v1256 = vsel %vm831, %v1248, %v1255
        %v1257 = vrot.slane %v1252, 4
        %v1259 = vshrl.u32 %v1146, 16
        %v1261 = vrot.slane %v1259, 7
        %v1262 = vshll.u32 %v1146, 16
        %v1264 = vor.u32 %v1261, %v1262
        %v1265 = vsel %vm831, %v1257, %v1264
        %v1267 = vshrl.u32 %v1147, 16
        %v1269 = vrot.slane %v1267, 7
        %v1270 = vrot.slane %v1269, 4
        %v1272 = vshrl.u32 %v1148, 16
        %v1274 = vrot.slane %v1272, 7
        %v1275 = vshll.u32 %v1148, 16
        %v1277 = vor.u32 %v1274, %v1275
        %v1278 = vsel %vm831, %v1270, %v1277
        %v1279 = vrot.slane %v1274, 4
        %v1281 = vshrl.u32 %v1149, 16
        %v1283 = vrot.slane %v1281, 7
        %v1284 = vshll.u32 %v1149, 16
        %v1286 = vor.u32 %v1283, %v1284
        %v1287 = vsel %vm831, %v1279, %v1286
        %v1289 = vshrl.u32 %v1150, 16
        %v1291 = vrot.slane %v1289, 7
        %v1292 = vrot.slane %v1291, 4
        %v1294 = vshrl.u32 %v1151, 16
        %v1296 = vrot.slane %v1294, 7
        %v1297 = vshll.u32 %v1151, 16
        %v1299 = vor.u32 %v1296, %v1297
        %v1300 = vsel %vm831, %v1292, %v1299
        %v1301 = vrot.slane %v1296, 4
        %v1303 = vshrl.u32 %v1152, 16
        %v1305 = vrot.slane %v1303, 7
        %v1306 = vshll.u32 %v1152, 16
        %v1308 = vor.u32 %v1305, %v1306
        %v1309 = vsel %vm831, %v1301, %v1308
        %v1311 = vshrl.u32 %v1153, 16
        %v1313 = vrot.slane %v1311, 7
        %v1314 = vrot.slane %v1313, 4
        %v1316 = vshrl.u32 %v1154, 16
        %v1318 = vrot.slane %v1316, 7
        %v1319 = vshll.u32 %v1154, 16
        %v1321 = vor.u32 %v1318, %v1319
        %v1322 = vsel %vm831, %v1314, %v1321
        %v1323 = vrot.slane %v1318, 4
        %v1325 = vshrl.u32 %v1155, 16
        %v1327 = vrot.slane %v1325, 7
        %v1328 = vshll.u32 %v1155, 16
        %v1330 = vor.u32 %v1327, %v1328
        %v1331 = vsel %vm831, %v1323, %v1330
        %v1332 = vld [vmem:[%s1131 + $0xc] sm:$0x1]
        %v1333 = vld [vmem:[%s1131 + $0x1c] sm:$0x1]
        %v1334 = vld [vmem:[%s1131 + $0x2c] sm:$0x1]
        %v1335 = vld [vmem:[%s1131 + $0x3c] sm:$0x1]
        %v1336 = vld [vmem:[%s1131 + $0x4c] sm:$0x1]
        %v1337 = vld [vmem:[%s1131 + $0x5c] sm:$0x1]
        %v1338 = vld [vmem:[%s1131 + $0x6c] sm:$0x1]
        %v1339 = vld [vmem:[%s1131 + $0x7c] sm:$0x1]
        %v1340 = vrot.slane %v1162, 4
        %v1341 = vrot.slane %v1165, 5
        %v1342 = vor.u32 %v1340, %v1341
        %v1343 = vrot.slane %v1342, 4
        %v1344 = vrot.slane %v1174, 5
        %v1345 = vsel %vm1018, %v1343, %v1344
        %v1346 = vrot.slane %v1171, 4
        %v1347 = vor.u32 %v1346, %v1344
        %v1348 = vrot.slane %v1347, 4
        %v1350 = vshll.u32 %v1332, 16
        %v1352 = vrot.slane %v1350, 5
        %v1353 = vsel %vm1018, %v1348, %v1352
        %v1354 = vrot.slane %v1184, 4
        %v1355 = vrot.slane %v1187, 5
        %v1356 = vor.u32 %v1354, %v1355
        %v1357 = vrot.slane %v1356, 4
        %v1358 = vrot.slane %v1196, 5
        %v1359 = vsel %vm1018, %v1357, %v1358
        %v1360 = vrot.slane %v1193, 4
        %v1361 = vor.u32 %v1360, %v1358
        %v1362 = vrot.slane %v1361, 4
        %v1364 = vshll.u32 %v1333, 16
        %v1366 = vrot.slane %v1364, 5
        %v1367 = vsel %vm1018, %v1362, %v1366
        %v1368 = vrot.slane %v1206, 4
        %v1369 = vrot.slane %v1209, 5
        %v1370 = vor.u32 %v1368, %v1369
        %v1371 = vrot.slane %v1370, 4
        %v1372 = vrot.slane %v1218, 5
        %v1373 = vsel %vm1018, %v1371, %v1372
        %v1374 = vrot.slane %v1215, 4
        %v1375 = vor.u32 %v1374, %v1372
        %v1376 = vrot.slane %v1375, 4
        %v1378 = vshll.u32 %v1334, 16
        %v1380 = vrot.slane %v1378, 5
        %v1381 = vsel %vm1018, %v1376, %v1380
        %v1382 = vrot.slane %v1228, 4
        %v1383 = vrot.slane %v1231, 5
        %v1384 = vor.u32 %v1382, %v1383
        %v1385 = vrot.slane %v1384, 4
        %v1386 = vrot.slane %v1240, 5
        %v1387 = vsel %vm1018, %v1385, %v1386
        %v1388 = vrot.slane %v1237, 4
        %v1389 = vor.u32 %v1388, %v1386
        %v1390 = vrot.slane %v1389, 4
        %v1392 = vshll.u32 %v1335, 16
        %v1394 = vrot.slane %v1392, 5
        %v1395 = vsel %vm1018, %v1390, %v1394
        %v1396 = vrot.slane %v1250, 4
        %v1397 = vrot.slane %v1253, 5
        %v1398 = vor.u32 %v1396, %v1397
        %v1399 = vrot.slane %v1398, 4
        %v1400 = vrot.slane %v1262, 5
        %v1401 = vsel %vm1018, %v1399, %v1400
        %v1402 = vrot.slane %v1259, 4
        %v1403 = vor.u32 %v1402, %v1400
        %v1404 = vrot.slane %v1403, 4
        %v1406 = vshll.u32 %v1336, 16
        %v1408 = vrot.slane %v1406, 5
        %v1409 = vsel %vm1018, %v1404, %v1408
        %v1410 = vrot.slane %v1272, 4
        %v1411 = vrot.slane %v1275, 5
        %v1412 = vor.u32 %v1410, %v1411
        %v1413 = vrot.slane %v1412, 4
        %v1414 = vrot.slane %v1284, 5
        %v1415 = vsel %vm1018, %v1413, %v1414
        %v1416 = vrot.slane %v1281, 4
        %v1417 = vor.u32 %v1416, %v1414
        %v1418 = vrot.slane %v1417, 4
        %v1420 = vshll.u32 %v1337, 16
        %v1422 = vrot.slane %v1420, 5
        %v1423 = vsel %vm1018, %v1418, %v1422
        %v1424 = vrot.slane %v1294, 4
        %v1425 = vrot.slane %v1297, 5
        %v1426 = vor.u32 %v1424, %v1425
        %v1427 = vrot.slane %v1426, 4
        %v1428 = vrot.slane %v1306, 5
        %v1429 = vsel %vm1018, %v1427, %v1428
        %v1430 = vrot.slane %v1303, 4
        %v1431 = vor.u32 %v1430, %v1428
        %v1432 = vrot.slane %v1431, 4
        %v1434 = vshll.u32 %v1338, 16
        %v1436 = vrot.slane %v1434, 5
        %v1437 = vsel %vm1018, %v1432, %v1436
        %v1438 = vrot.slane %v1316, 4
        %v1439 = vrot.slane %v1319, 5
        %v1440 = vor.u32 %v1438, %v1439
        %v1441 = vrot.slane %v1440, 4
        %v1442 = vrot.slane %v1328, 5
        %v1443 = vsel %vm1018, %v1441, %v1442
        %v1444 = vrot.slane %v1325, 4
        %v1445 = vor.u32 %v1444, %v1442
        %v1446 = vrot.slane %v1445, 4
        %v1448 = vshll.u32 %v1339, 16
        %v1450 = vrot.slane %v1448, 5
        %v1451 = vsel %vm1018, %v1446, %v1450
        %s1452 = scalar_lea.vmem [#allocation2], 32
        %v1453 = vld [vmem:[%s1452] sm:$0x8]
        %v1454 = vld [vmem:[%s1452 + $0x4] sm:$0xf]
        %v1455 = vld [vmem:[%s1452 + $0x8] sm:$0xf]
        %v1456 = vld [vmem:[%s1452 + $0x10] sm:$0x8]
        %v1457 = vld [vmem:[%s1452 + $0x14] sm:$0xf]
        %v1458 = vld [vmem:[%s1452 + $0x18] sm:$0xf]
        %v1459 = vld [vmem:[%s1452 + $0x20] sm:$0x8]
        %v1460 = vld [vmem:[%s1452 + $0x24] sm:$0xf]
        %v1461 = vld [vmem:[%s1452 + $0x28] sm:$0xf]
        %v1462 = vld [vmem:[%s1452 + $0x30] sm:$0x8]
        %v1463 = vld [vmem:[%s1452 + $0x34] sm:$0xf]
        %v1464 = vld [vmem:[%s1452 + $0x38] sm:$0xf]
        %v1465 = vld [vmem:[%s1452 + $0x40] sm:$0x8]
        %v1466 = vld [vmem:[%s1452 + $0x44] sm:$0xf]
        %v1467 = vld [vmem:[%s1452 + $0x48] sm:$0xf]
        %v1468 = vld [vmem:[%s1452 + $0x50] sm:$0x8]
        %v1469 = vld [vmem:[%s1452 + $0x54] sm:$0xf]
        %v1470 = vld [vmem:[%s1452 + $0x58] sm:$0xf]
        %v1471 = vld [vmem:[%s1452 + $0x60] sm:$0x8]
        %v1472 = vld [vmem:[%s1452 + $0x64] sm:$0xf]
        %v1473 = vld [vmem:[%s1452 + $0x68] sm:$0xf]
        %v1474 = vld [vmem:[%s1452 + $0x70] sm:$0x8]
        %v1475 = vld [vmem:[%s1452 + $0x74] sm:$0xf]
        %v1476 = vld [vmem:[%s1452 + $0x78] sm:$0xf]
        %v1478 = vshrl.u32 %v1453, 16
        %v1480 = vrot.slane %v1478, 7
        %v1481 = vrot.slane %v1480, 4
        %v1483 = vshrl.u32 %v1454, 16
        %v1485 = vrot.slane %v1483, 7
        %v1486 = vshll.u32 %v1454, 16
        %v1488 = vor.u32 %v1485, %v1486
        %v1489 = vsel %vm831, %v1481, %v1488
        %v1490 = vrot.slane %v1485, 4
        %v1492 = vshrl.u32 %v1455, 16
        %v1494 = vrot.slane %v1492, 7
        %v1495 = vshll.u32 %v1455, 16
        %v1497 = vor.u32 %v1494, %v1495
        %v1498 = vsel %vm831, %v1490, %v1497
        %v1500 = vshrl.u32 %v1456, 16
        %v1502 = vrot.slane %v1500, 7
        %v1503 = vrot.slane %v1502, 4
        %v1505 = vshrl.u32 %v1457, 16
        %v1507 = vrot.slane %v1505, 7
        %v1508 = vshll.u32 %v1457, 16
        %v1510 = vor.u32 %v1507, %v1508
        %v1511 = vsel %vm831, %v1503, %v1510
        %v1512 = vrot.slane %v1507, 4
        %v1514 = vshrl.u32 %v1458, 16
        %v1516 = vrot.slane %v1514, 7
        %v1517 = vshll.u32 %v1458, 16
        %v1519 = vor.u32 %v1516, %v1517
        %v1520 = vsel %vm831, %v1512, %v1519
        %v1522 = vshrl.u32 %v1459, 16
        %v1524 = vrot.slane %v1522, 7
        %v1525 = vrot.slane %v1524, 4
        %v1527 = vshrl.u32 %v1460, 16
        %v1529 = vrot.slane %v1527, 7
        %v1530 = vshll.u32 %v1460, 16
        %v1532 = vor.u32 %v1529, %v1530
        %v1533 = vsel %vm831, %v1525, %v1532
        %v1534 = vrot.slane %v1529, 4
        %v1536 = vshrl.u32 %v1461, 16
        %v1538 = vrot.slane %v1536, 7
        %v1539 = vshll.u32 %v1461, 16
        %v1541 = vor.u32 %v1538, %v1539
        %v1542 = vsel %vm831, %v1534, %v1541
        %v1544 = vshrl.u32 %v1462, 16
        %v1546 = vrot.slane %v1544, 7
        %v1547 = vrot.slane %v1546, 4
        %v1549 = vshrl.u32 %v1463, 16
        %v1551 = vrot.slane %v1549, 7
        %v1552 = vshll.u32 %v1463, 16
        %v1554 = vor.u32 %v1551, %v1552
        %v1555 = vsel %vm831, %v1547, %v1554
        %v1556 = vrot.slane %v1551, 4
        %v1558 = vshrl.u32 %v1464, 16
        %v1560 = vrot.slane %v1558, 7
        %v1561 = vshll.u32 %v1464, 16
        %v1563 = vor.u32 %v1560, %v1561
        %v1564 = vsel %vm831, %v1556, %v1563
        %v1566 = vshrl.u32 %v1465, 16
        %v1568 = vrot.slane %v1566, 7
        %v1569 = vrot.slane %v1568, 4
        %v1571 = vshrl.u32 %v1466, 16
        %v1573 = vrot.slane %v1571, 7
        %v1574 = vshll.u32 %v1466, 16
        %v1576 = vor.u32 %v1573, %v1574
        %v1577 = vsel %vm831, %v1569, %v1576
        %v1578 = vrot.slane %v1573, 4
        %v1580 = vshrl.u32 %v1467, 16
        %v1582 = vrot.slane %v1580, 7
        %v1583 = vshll.u32 %v1467, 16
        %v1585 = vor.u32 %v1582, %v1583
        %v1586 = vsel %vm831, %v1578, %v1585
        %v1588 = vshrl.u32 %v1468, 16
        %v1590 = vrot.slane %v1588, 7
        %v1591 = vrot.slane %v1590, 4
        %v1593 = vshrl.u32 %v1469, 16
        %v1595 = vrot.slane %v1593, 7
        %v1596 = vshll.u32 %v1469, 16
        %v1598 = vor.u32 %v1595, %v1596
        %v1599 = vsel %vm831, %v1591, %v1598
        %v1600 = vrot.slane %v1595, 4
        %v1602 = vshrl.u32 %v1470, 16
        %v1604 = vrot.slane %v1602, 7
        %v1605 = vshll.u32 %v1470, 16
        %v1607 = vor.u32 %v1604, %v1605
        %v1608 = vsel %vm831, %v1600, %v1607
        %v1610 = vshrl.u32 %v1471, 16
        %v1612 = vrot.slane %v1610, 7
        %v1613 = vrot.slane %v1612, 4
        %v1615 = vshrl.u32 %v1472, 16
        %v1617 = vrot.slane %v1615, 7
        %v1618 = vshll.u32 %v1472, 16
        %v1620 = vor.u32 %v1617, %v1618
        %v1621 = vsel %vm831, %v1613, %v1620
        %v1622 = vrot.slane %v1617, 4
        %v1624 = vshrl.u32 %v1473, 16
        %v1626 = vrot.slane %v1624, 7
        %v1627 = vshll.u32 %v1473, 16
        %v1629 = vor.u32 %v1626, %v1627
        %v1630 = vsel %vm831, %v1622, %v1629
        %v1632 = vshrl.u32 %v1474, 16
        %v1634 = vrot.slane %v1632, 7
        %v1635 = vrot.slane %v1634, 4
        %v1637 = vshrl.u32 %v1475, 16
        %v1639 = vrot.slane %v1637, 7
        %v1640 = vshll.u32 %v1475, 16
        %v1642 = vor.u32 %v1639, %v1640
        %v1643 = vsel %vm831, %v1635, %v1642
        %v1644 = vrot.slane %v1639, 4
        %v1646 = vshrl.u32 %v1476, 16
        %v1648 = vrot.slane %v1646, 7
        %v1649 = vshll.u32 %v1476, 16
        %v1651 = vor.u32 %v1648, %v1649
        %v1652 = vsel %vm831, %v1644, %v1651
        %v1653 = vld [vmem:[%s1452 + $0xc] sm:$0x1]
        %v1654 = vld [vmem:[%s1452 + $0x1c] sm:$0x1]
        %v1655 = vld [vmem:[%s1452 + $0x2c] sm:$0x1]
        %v1656 = vld [vmem:[%s1452 + $0x3c] sm:$0x1]
        %v1657 = vld [vmem:[%s1452 + $0x4c] sm:$0x1]
        %v1658 = vld [vmem:[%s1452 + $0x5c] sm:$0x1]
        %v1659 = vld [vmem:[%s1452 + $0x6c] sm:$0x1]
        %v1660 = vld [vmem:[%s1452 + $0x7c] sm:$0x1]
        %v1661 = vrot.slane %v1483, 4
        %v1662 = vrot.slane %v1486, 5
        %v1663 = vor.u32 %v1661, %v1662
        %v1664 = vrot.slane %v1663, 4
        %v1665 = vrot.slane %v1495, 5
        %v1666 = vsel %vm1018, %v1664, %v1665
        %v1667 = vrot.slane %v1492, 4
        %v1668 = vor.u32 %v1667, %v1665
        %v1669 = vrot.slane %v1668, 4
        %v1671 = vshll.u32 %v1653, 16
        %v1673 = vrot.slane %v1671, 5
        %v1674 = vsel %vm1018, %v1669, %v1673
        %v1675 = vrot.slane %v1505, 4
        %v1676 = vrot.slane %v1508, 5
        %v1677 = vor.u32 %v1675, %v1676
        %v1678 = vrot.slane %v1677, 4
        %v1679 = vrot.slane %v1517, 5
        %v1680 = vsel %vm1018, %v1678, %v1679
        %v1681 = vrot.slane %v1514, 4
        %v1682 = vor.u32 %v1681, %v1679
        %v1683 = vrot.slane %v1682, 4
        %v1685 = vshll.u32 %v1654, 16
        %v1687 = vrot.slane %v1685, 5
        %v1688 = vsel %vm1018, %v1683, %v1687
        %v1689 = vrot.slane %v1527, 4
        %v1690 = vrot.slane %v1530, 5
        %v1691 = vor.u32 %v1689, %v1690
        %v1692 = vrot.slane %v1691, 4
        %v1693 = vrot.slane %v1539, 5
        %v1694 = vsel %vm1018, %v1692, %v1693
        %v1695 = vrot.slane %v1536, 4
        %v1696 = vor.u32 %v1695, %v1693
        %v1697 = vrot.slane %v1696, 4
        %v1699 = vshll.u32 %v1655, 16
        %v1701 = vrot.slane %v1699, 5
        %v1702 = vsel %vm1018, %v1697, %v1701
        %v1703 = vrot.slane %v1549, 4
        %v1704 = vrot.slane %v1552, 5
        %v1705 = vor.u32 %v1703, %v1704
        %v1706 = vrot.slane %v1705, 4
        %v1707 = vrot.slane %v1561, 5
        %v1708 = vsel %vm1018, %v1706, %v1707
        %v1709 = vrot.slane %v1558, 4
        %v1710 = vor.u32 %v1709, %v1707
        %v1711 = vrot.slane %v1710, 4
        %v1713 = vshll.u32 %v1656, 16
        %v1715 = vrot.slane %v1713, 5
        %v1716 = vsel %vm1018, %v1711, %v1715
        %v1717 = vrot.slane %v1571, 4
        %v1718 = vrot.slane %v1574, 5
        %v1719 = vor.u32 %v1717, %v1718
        %v1720 = vrot.slane %v1719, 4
        %v1721 = vrot.slane %v1583, 5
        %v1722 = vsel %vm1018, %v1720, %v1721
        %v1723 = vrot.slane %v1580, 4
        %v1724 = vor.u32 %v1723, %v1721
        %v1725 = vrot.slane %v1724, 4
        %v1727 = vshll.u32 %v1657, 16
        %v1729 = vrot.slane %v1727, 5
        %v1730 = vsel %vm1018, %v1725, %v1729
        %v1731 = vrot.slane %v1593, 4
        %v1732 = vrot.slane %v1596, 5
        %v1733 = vor.u32 %v1731, %v1732
        %v1734 = vrot.slane %v1733, 4
        %v1735 = vrot.slane %v1605, 5
        %v1736 = vsel %vm1018, %v1734, %v1735
        %v1737 = vrot.slane %v1602, 4
        %v1738 = vor.u32 %v1737, %v1735
        %v1739 = vrot.slane %v1738, 4
        %v1741 = vshll.u32 %v1658, 16
        %v1743 = vrot.slane %v1741, 5
        %v1744 = vsel %vm1018, %v1739, %v1743
        %v1745 = vrot.slane %v1615, 4
        %v1746 = vrot.slane %v1618, 5
        %v1747 = vor.u32 %v1745, %v1746
        %v1748 = vrot.slane %v1747, 4
        %v1749 = vrot.slane %v1627, 5
        %v1750 = vsel %vm1018, %v1748, %v1749
        %v1751 = vrot.slane %v1624, 4
        %v1752 = vor.u32 %v1751, %v1749
        %v1753 = vrot.slane %v1752, 4
        %v1755 = vshll.u32 %v1659, 16
        %v1757 = vrot.slane %v1755, 5
        %v1758 = vsel %vm1018, %v1753, %v1757
        %v1759 = vrot.slane %v1637, 4
        %v1760 = vrot.slane %v1640, 5
        %v1761 = vor.u32 %v1759, %v1760
        %v1762 = vrot.slane %v1761, 4
        %v1763 = vrot.slane %v1649, 5
        %v1764 = vsel %vm1018, %v1762, %v1763
        %v1765 = vrot.slane %v1646, 4
        %v1766 = vor.u32 %v1765, %v1763
        %v1767 = vrot.slane %v1766, 4
        %v1769 = vshll.u32 %v1660, 16
        %v1771 = vrot.slane %v1769, 5
        %v1772 = vsel %vm1018, %v1767, %v1771
        %v1773 = vunpack.c.l.b16 %v844
        %v1774 = vunpack.c.l.b16 %v853
        %v1775 = vunpack.c.l.b16 %v866
        %v1776 = vunpack.c.l.b16 %v875
        %v1777 = vunpack.c.l.b16 %v888
        %v1778 = vunpack.c.l.b16 %v897
        %v1779 = vunpack.c.l.b16 %v910
        %v1780 = vunpack.c.l.b16 %v919
        %v1781 = vunpack.c.l.b16 %v932
        %v1782 = vunpack.c.l.b16 %v941
        %v1783 = vunpack.c.l.b16 %v954
        %v1784 = vunpack.c.l.b16 %v963
        %v1785 = vunpack.c.l.b16 %v976
        %v1786 = vunpack.c.l.b16 %v985
        %v1787 = vunpack.c.l.b16 %v998
        %v1788 = vunpack.c.l.b16 %v1007
        %v1789 = vpack.c.b16 %v1774, %v1773
        %v1790 = vpack.c.b16 %v1776, %v1775
        %v1791 = vpack.c.b16 %v1778, %v1777
        %v1792 = vpack.c.b16 %v1780, %v1779
        %v1793 = vpack.c.b16 %v1782, %v1781
        %v1794 = vpack.c.b16 %v1784, %v1783
        %v1795 = vpack.c.b16 %v1786, %v1785
        %v1796 = vpack.c.b16 %v1788, %v1787
        %v1813 = vunpack.c.l.b16 %v807
        %v1814 = vunpack.c.l.b16 %v808
        %v1815 = vunpack.c.l.b16 %v810
        %v1816 = vunpack.c.l.b16 %v811
        %v1817 = vunpack.c.l.b16 %v813
        %v1818 = vunpack.c.l.b16 %v814
        %v1819 = vunpack.c.l.b16 %v816
        %v1820 = vunpack.c.l.b16 %v817
        %v1821 = vunpack.c.l.b16 %v819
        %v1822 = vunpack.c.l.b16 %v820
        %v1823 = vunpack.c.l.b16 %v822
        %v1824 = vunpack.c.l.b16 %v823
        %v1825 = vunpack.c.l.b16 %v825
        %v1826 = vunpack.c.l.b16 %v826
        %v1827 = vunpack.c.l.b16 %v828
        %v1828 = vunpack.c.l.b16 %v829
        %v1829 = vpack.c.b16 %v1814, %v1813
        %v1830 = vpack.c.b16 %v1816, %v1815
        %v1831 = vpack.c.b16 %v1818, %v1817
        %v1832 = vpack.c.b16 %v1820, %v1819
        %v1833 = vpack.c.b16 %v1822, %v1821
        %v1834 = vpack.c.b16 %v1824, %v1823
        %v1835 = vpack.c.b16 %v1826, %v1825
        %v1836 = vpack.c.b16 %v1828, %v1827
        %1837 = vrot.lane.b32.xlu0 %v1829, 32
        %v1838 = vpop.permute.xlu0 %1837
        %1839 = vrot.lane.b32.xlu0 %v1830, 32
        %v1840 = vpop.permute.xlu0 %1839
        %1841 = vrot.lane.b32.xlu0 %v1831, 32
        %v1842 = vpop.permute.xlu0 %1841
        %1843 = vrot.lane.b32.xlu0 %v1832, 32
        %v1844 = vpop.permute.xlu0 %1843
        %1845 = vrot.lane.b32.xlu0 %v1833, 32
        %v1846 = vpop.permute.xlu0 %1845
        %1847 = vrot.lane.b32.xlu0 %v1834, 32
        %v1848 = vpop.permute.xlu0 %1847
        %1849 = vrot.lane.b32.xlu0 %v1835, 32
        %v1850 = vpop.permute.xlu0 %1849
        %1851 = vrot.lane.b32.xlu0 %v1836, 32
        %v1852 = vpop.permute.xlu0 %1851
        %v1853 = vunpack.c.l.b16 %v1024
        %v1854 = vunpack.c.l.b16 %v1032
        %v1855 = vunpack.c.l.b16 %v1038
        %v1856 = vunpack.c.l.b16 %v1046
        %v1857 = vunpack.c.l.b16 %v1052
        %v1858 = vunpack.c.l.b16 %v1060
        %v1859 = vunpack.c.l.b16 %v1066
        %v1860 = vunpack.c.l.b16 %v1074
        %v1861 = vunpack.c.l.b16 %v1080
        %v1862 = vunpack.c.l.b16 %v1088
        %v1863 = vunpack.c.l.b16 %v1094
        %v1864 = vunpack.c.l.b16 %v1102
        %v1865 = vunpack.c.l.b16 %v1108
        %v1866 = vunpack.c.l.b16 %v1116
        %v1867 = vunpack.c.l.b16 %v1122
        %v1868 = vunpack.c.l.b16 %v1130
        %v1869 = vpack.c.b16 %v1854, %v1853
        %v1870 = vpack.c.b16 %v1856, %v1855
        %v1871 = vpack.c.b16 %v1858, %v1857
        %v1872 = vpack.c.b16 %v1860, %v1859
        %v1873 = vpack.c.b16 %v1862, %v1861
        %v1874 = vpack.c.b16 %v1864, %v1863
        %v1875 = vpack.c.b16 %v1866, %v1865
        %v1876 = vpack.c.b16 %v1868, %v1867
        %1877 = vrot.lane.b32.xlu0 %v1869, 64
        %v1878 = vpop.permute.xlu0 %1877
        %1879 = vrot.lane.b32.xlu0 %v1870, 64
        %v1880 = vpop.permute.xlu0 %1879
        %1881 = vrot.lane.b32.xlu0 %v1871, 64
        %v1882 = vpop.permute.xlu0 %1881
        %1883 = vrot.lane.b32.xlu0 %v1872, 64
        %v1884 = vpop.permute.xlu0 %1883
        %1885 = vrot.lane.b32.xlu0 %v1873, 64
        %v1886 = vpop.permute.xlu0 %1885
        %1887 = vrot.lane.b32.xlu0 %v1874, 64
        %v1888 = vpop.permute.xlu0 %1887
        %1889 = vrot.lane.b32.xlu0 %v1875, 64
        %v1890 = vpop.permute.xlu0 %1889
        %1891 = vrot.lane.b32.xlu0 %v1876, 64
        %v1892 = vpop.permute.xlu0 %1891
        %v1893 = vunpack.c.l.b16 %v1168
        %v1894 = vunpack.c.l.b16 %v1177
        %v1895 = vunpack.c.l.b16 %v1190
        %v1896 = vunpack.c.l.b16 %v1199
        %v1897 = vunpack.c.l.b16 %v1212
        %v1898 = vunpack.c.l.b16 %v1221
        %v1899 = vunpack.c.l.b16 %v1234
        %v1900 = vunpack.c.l.b16 %v1243
        %v1901 = vunpack.c.l.b16 %v1256
        %v1902 = vunpack.c.l.b16 %v1265
        %v1903 = vunpack.c.l.b16 %v1278
        %v1904 = vunpack.c.l.b16 %v1287
        %v1905 = vunpack.c.l.b16 %v1300
        %v1906 = vunpack.c.l.b16 %v1309
        %v1907 = vunpack.c.l.b16 %v1322
        %v1908 = vunpack.c.l.b16 %v1331
        %v1909 = vpack.c.b16 %v1894, %v1893
        %v1910 = vpack.c.b16 %v1896, %v1895
        %v1911 = vpack.c.b16 %v1898, %v1897
        %v1912 = vpack.c.b16 %v1900, %v1899
        %v1913 = vpack.c.b16 %v1902, %v1901
        %v1914 = vpack.c.b16 %v1904, %v1903
        %v1915 = vpack.c.b16 %v1906, %v1905
        %v1916 = vpack.c.b16 %v1908, %v1907
        %1917 = vrot.lane.b32.xlu0 %v1909, 96
        %v1918 = vpop.permute.xlu0 %1917
        %1919 = vrot.lane.b32.xlu0 %v1910, 96
        %v1920 = vpop.permute.xlu0 %1919
        %1921 = vrot.lane.b32.xlu0 %v1911, 96
        %v1922 = vpop.permute.xlu0 %1921
        %1923 = vrot.lane.b32.xlu0 %v1912, 96
        %v1924 = vpop.permute.xlu0 %1923
        %1925 = vrot.lane.b32.xlu0 %v1913, 96
        %v1926 = vpop.permute.xlu0 %1925
        %1927 = vrot.lane.b32.xlu0 %v1914, 96
        %v1928 = vpop.permute.xlu0 %1927
        %1929 = vrot.lane.b32.xlu0 %v1915, 96
        %v1930 = vpop.permute.xlu0 %1929
        %1931 = vrot.lane.b32.xlu0 %v1916, 96
        %v1932 = vpop.permute.xlu0 %1931
        %v1949 = vunpack.c.l.b16 %v1133
        %v1950 = vunpack.c.l.b16 %v1134
        %v1951 = vunpack.c.l.b16 %v1136
        %v1952 = vunpack.c.l.b16 %v1137
        %v1953 = vunpack.c.l.b16 %v1139
        %v1954 = vunpack.c.l.b16 %v1140
        %v1955 = vunpack.c.l.b16 %v1142
        %v1956 = vunpack.c.l.b16 %v1143
        %v1957 = vunpack.c.l.b16 %v1145
        %v1958 = vunpack.c.l.b16 %v1146
        %v1959 = vunpack.c.l.b16 %v1148
        %v1960 = vunpack.c.l.b16 %v1149
        %v1961 = vunpack.c.l.b16 %v1151
        %v1962 = vunpack.c.l.b16 %v1152
        %v1963 = vunpack.c.l.b16 %v1154
        %v1964 = vunpack.c.l.b16 %v1155
        %v1965 = vpack.c.b16 %v1950, %v1949
        %v1966 = vpack.c.b16 %v1952, %v1951
        %v1967 = vpack.c.b16 %v1954, %v1953
        %v1968 = vpack.c.b16 %v1956, %v1955
        %v1969 = vpack.c.b16 %v1958, %v1957
        %v1970 = vpack.c.b16 %v1960, %v1959
        %v1971 = vpack.c.b16 %v1962, %v1961
        %v1972 = vpack.c.b16 %v1964, %v1963
        %v1973 = vunpack.c.l.b16 %v1345
        %v1974 = vunpack.c.l.b16 %v1353
        %v1975 = vunpack.c.l.b16 %v1359
        %v1976 = vunpack.c.l.b16 %v1367
        %v1977 = vunpack.c.l.b16 %v1373
        %v1978 = vunpack.c.l.b16 %v1381
        %v1979 = vunpack.c.l.b16 %v1387
        %v1980 = vunpack.c.l.b16 %v1395
        %v1981 = vunpack.c.l.b16 %v1401
        %v1982 = vunpack.c.l.b16 %v1409
        %v1983 = vunpack.c.l.b16 %v1415
        %v1984 = vunpack.c.l.b16 %v1423
        %v1985 = vunpack.c.l.b16 %v1429
        %v1986 = vunpack.c.l.b16 %v1437
        %v1987 = vunpack.c.l.b16 %v1443
        %v1988 = vunpack.c.l.b16 %v1451
        %v1989 = vpack.c.b16 %v1974, %v1973
        %v1990 = vpack.c.b16 %v1976, %v1975
        %v1991 = vpack.c.b16 %v1978, %v1977
        %v1992 = vpack.c.b16 %v1980, %v1979
        %v1993 = vpack.c.b16 %v1982, %v1981
        %v1994 = vpack.c.b16 %v1984, %v1983
        %v1995 = vpack.c.b16 %v1986, %v1985
        %v1996 = vpack.c.b16 %v1988, %v1987
        %1997 = vrot.lane.b32.xlu0 %v1989, 32
        %v1998 = vpop.permute.xlu0 %1997
        %1999 = vrot.lane.b32.xlu0 %v1990, 32
        %v2000 = vpop.permute.xlu0 %1999
        %2001 = vrot.lane.b32.xlu0 %v1991, 32
        %v2002 = vpop.permute.xlu0 %2001
        %2003 = vrot.lane.b32.xlu0 %v1992, 32
        %v2004 = vpop.permute.xlu0 %2003
        %2005 = vrot.lane.b32.xlu0 %v1993, 32
        %v2006 = vpop.permute.xlu0 %2005
        %2007 = vrot.lane.b32.xlu0 %v1994, 32
        %v2008 = vpop.permute.xlu0 %2007
        %2009 = vrot.lane.b32.xlu0 %v1995, 32
        %v2010 = vpop.permute.xlu0 %2009
        %2011 = vrot.lane.b32.xlu0 %v1996, 32
        %v2012 = vpop.permute.xlu0 %2011
        %v2013 = vunpack.c.l.b16 %v1489
        %v2014 = vunpack.c.l.b16 %v1498
        %v2015 = vunpack.c.l.b16 %v1511
        %v2016 = vunpack.c.l.b16 %v1520
        %v2017 = vunpack.c.l.b16 %v1533
        %v2018 = vunpack.c.l.b16 %v1542
        %v2019 = vunpack.c.l.b16 %v1555
        %v2020 = vunpack.c.l.b16 %v1564
        %v2021 = vunpack.c.l.b16 %v1577
        %v2022 = vunpack.c.l.b16 %v1586
        %v2023 = vunpack.c.l.b16 %v1599
        %v2024 = vunpack.c.l.b16 %v1608
        %v2025 = vunpack.c.l.b16 %v1621
        %v2026 = vunpack.c.l.b16 %v1630
        %v2027 = vunpack.c.l.b16 %v1643
        %v2028 = vunpack.c.l.b16 %v1652
        %v2029 = vpack.c.b16 %v2014, %v2013
        %v2030 = vpack.c.b16 %v2016, %v2015
        %v2031 = vpack.c.b16 %v2018, %v2017
        %v2032 = vpack.c.b16 %v2020, %v2019
        %v2033 = vpack.c.b16 %v2022, %v2021
        %v2034 = vpack.c.b16 %v2024, %v2023
        %v2035 = vpack.c.b16 %v2026, %v2025
        %v2036 = vpack.c.b16 %v2028, %v2027
        %2037 = vrot.lane.b32.xlu0 %v2029, 64
        %v2038 = vpop.permute.xlu0 %2037
        %2039 = vrot.lane.b32.xlu0 %v2030, 64
        %v2040 = vpop.permute.xlu0 %2039
        %2041 = vrot.lane.b32.xlu0 %v2031, 64
        %v2042 = vpop.permute.xlu0 %2041
        %2043 = vrot.lane.b32.xlu0 %v2032, 64
        %v2044 = vpop.permute.xlu0 %2043
        %2045 = vrot.lane.b32.xlu0 %v2033, 64
        %v2046 = vpop.permute.xlu0 %2045
        %2047 = vrot.lane.b32.xlu0 %v2034, 64
        %v2048 = vpop.permute.xlu0 %2047
        %2049 = vrot.lane.b32.xlu0 %v2035, 64
        %v2050 = vpop.permute.xlu0 %2049
        %2051 = vrot.lane.b32.xlu0 %v2036, 64
        %v2052 = vpop.permute.xlu0 %2051
        %v2069 = vunpack.c.l.b16 %v1454
        %v2070 = vunpack.c.l.b16 %v1455
        %v2071 = vunpack.c.l.b16 %v1457
        %v2072 = vunpack.c.l.b16 %v1458
        %v2073 = vunpack.c.l.b16 %v1460
        %v2074 = vunpack.c.l.b16 %v1461
        %v2075 = vunpack.c.l.b16 %v1463
        %v2076 = vunpack.c.l.b16 %v1464
        %v2077 = vunpack.c.l.b16 %v1466
        %v2078 = vunpack.c.l.b16 %v1467
        %v2079 = vunpack.c.l.b16 %v1469
        %v2080 = vunpack.c.l.b16 %v1470
        %v2081 = vunpack.c.l.b16 %v1472
        %v2082 = vunpack.c.l.b16 %v1473
        %v2083 = vunpack.c.l.b16 %v1475
        %v2084 = vunpack.c.l.b16 %v1476
        %v2085 = vpack.c.b16 %v2070, %v2069
        %v2086 = vpack.c.b16 %v2072, %v2071
        %v2087 = vpack.c.b16 %v2074, %v2073
        %v2088 = vpack.c.b16 %v2076, %v2075
        %v2089 = vpack.c.b16 %v2078, %v2077
        %v2090 = vpack.c.b16 %v2080, %v2079
        %v2091 = vpack.c.b16 %v2082, %v2081
        %v2092 = vpack.c.b16 %v2084, %v2083
        %2093 = vrot.lane.b32.xlu0 %v2085, 96
        %v2094 = vpop.permute.xlu0 %2093
        %2095 = vrot.lane.b32.xlu0 %v2086, 96
        %v2096 = vpop.permute.xlu0 %2095
        %2097 = vrot.lane.b32.xlu0 %v2087, 96
        %v2098 = vpop.permute.xlu0 %2097
        %2099 = vrot.lane.b32.xlu0 %v2088, 96
        %v2100 = vpop.permute.xlu0 %2099
        %2101 = vrot.lane.b32.xlu0 %v2089, 96
        %v2102 = vpop.permute.xlu0 %2101
        %2103 = vrot.lane.b32.xlu0 %v2090, 96
        %v2104 = vpop.permute.xlu0 %2103
        %2105 = vrot.lane.b32.xlu0 %v2091, 96
        %v2106 = vpop.permute.xlu0 %2105
        %2107 = vrot.lane.b32.xlu0 %v2092, 96
        %v2108 = vpop.permute.xlu0 %2107
        %v2109 = vunpack.c.l.b16 %v1666
        %v2110 = vunpack.c.l.b16 %v1674
        %v2111 = vunpack.c.l.b16 %v1680
        %v2112 = vunpack.c.l.b16 %v1688
        %v2113 = vunpack.c.l.b16 %v1694
        %v2114 = vunpack.c.l.b16 %v1702
        %v2115 = vunpack.c.l.b16 %v1708
        %v2116 = vunpack.c.l.b16 %v1716
        %v2117 = vunpack.c.l.b16 %v1722
        %v2118 = vunpack.c.l.b16 %v1730
        %v2119 = vunpack.c.l.b16 %v1736
        %v2120 = vunpack.c.l.b16 %v1744
        %v2121 = vunpack.c.l.b16 %v1750
        %v2122 = vunpack.c.l.b16 %v1758
        %v2123 = vunpack.c.l.b16 %v1764
        %v2124 = vunpack.c.l.b16 %v1772
        %v2125 = vpack.c.b16 %v2110, %v2109
        %v2126 = vpack.c.b16 %v2112, %v2111
        %v2127 = vpack.c.b16 %v2114, %v2113
        %v2128 = vpack.c.b16 %v2116, %v2115
        %v2129 = vpack.c.b16 %v2118, %v2117
        %v2130 = vpack.c.b16 %v2120, %v2119
        %v2131 = vpack.c.b16 %v2122, %v2121
        %v2132 = vpack.c.b16 %v2124, %v2123
        %vm2133 = vcmask 261120
        %v2136 = vsel %vm2133, %v1789, %v1838
        %v2139 = vsel %vm2133, %v1790, %v1840
        %v2142 = vsel %vm2133, %v1791, %v1842
        %v2145 = vsel %vm2133, %v1792, %v1844
        %v2148 = vsel %vm2133, %v1793, %v1846
        %v2151 = vsel %vm2133, %v1794, %v1848
        %v2154 = vsel %vm2133, %v1795, %v1850
        %v2157 = vsel %vm2133, %v1796, %v1852
        %vm2158 = vcmask 523264
        %v2160 = vsel %vm2158, %v2136, %v1878
        %v2162 = vsel %vm2158, %v2139, %v1880
        %v2164 = vsel %vm2158, %v2142, %v1882
        %v2166 = vsel %vm2158, %v2145, %v1884
        %v2168 = vsel %vm2158, %v2148, %v1886
        %v2170 = vsel %vm2158, %v2151, %v1888
        %v2172 = vsel %vm2158, %v2154, %v1890
        %v2174 = vsel %vm2158, %v2157, %v1892
        %vm2175 = vcmask 785408
        %v2177 = vsel %vm2175, %v2160, %v1918
        %v2180 = vsel %vm2175, %v2162, %v1920
        %v2183 = vsel %vm2175, %v2164, %v1922
        %v2186 = vsel %vm2175, %v2166, %v1924
        %v2189 = vsel %vm2175, %v2168, %v1926
        %v2192 = vsel %vm2175, %v2170, %v1928
        %v2195 = vsel %vm2175, %v2172, %v1930
        %v2198 = vsel %vm2175, %v2174, %v1932
        %v2202 = vsel %vm2133, %v1965, %v1998
        %v2205 = vsel %vm2133, %v1966, %v2000
        %v2208 = vsel %vm2133, %v1967, %v2002
        %v2211 = vsel %vm2133, %v1968, %v2004
        %v2214 = vsel %vm2133, %v1969, %v2006
        %v2217 = vsel %vm2133, %v1970, %v2008
        %v2220 = vsel %vm2133, %v1971, %v2010
        %v2223 = vsel %vm2133, %v1972, %v2012
        %v2225 = vsel %vm2158, %v2202, %v2038
        %v2227 = vsel %vm2158, %v2205, %v2040
        %v2229 = vsel %vm2158, %v2208, %v2042
        %v2231 = vsel %vm2158, %v2211, %v2044
        %v2233 = vsel %vm2158, %v2214, %v2046
        %v2235 = vsel %vm2158, %v2217, %v2048
        %v2237 = vsel %vm2158, %v2220, %v2050
        %v2239 = vsel %vm2158, %v2223, %v2052
        %v2241 = vsel %vm2175, %v2225, %v2094
        %v2244 = vsel %vm2175, %v2227, %v2096
        %v2247 = vsel %vm2175, %v2229, %v2098
        %v2250 = vsel %vm2175, %v2231, %v2100
        %v2253 = vsel %vm2175, %v2233, %v2102
        %v2256 = vsel %vm2175, %v2235, %v2104
        %v2259 = vsel %vm2175, %v2237, %v2106
        %v2262 = vsel %vm2175, %v2239, %v2108
        %v2264 = vld [vmem:[%s4] sm:$0xf]
        %v2265 = vld [vmem:[%s4 + $0x4] sm:$0xf]
        %v2266 = vld [vmem:[%s4 + $0x8] sm:$0xf]
        %v2267 = vld [vmem:[%s4 + $0xc] sm:$0xf]
        %v2268 = vld [vmem:[%s4 + $0x10] sm:$0xf]
        %v2269 = vld [vmem:[%s4 + $0x14] sm:$0xf]
        %v2270 = vld [vmem:[%s4 + $0x18] sm:$0xf]
        %v2271 = vld [vmem:[%s4 + $0x1c] sm:$0xf]
        %v2272 = vld [vmem:[%s4 + $0x20] sm:$0xf]
        %v2273 = vld [vmem:[%s4 + $0x24] sm:$0xf]
        %v2274 = vld [vmem:[%s4 + $0x28] sm:$0xf]
        %v2275 = vld [vmem:[%s4 + $0x2c] sm:$0xf]
        %v2276 = vld [vmem:[%s4 + $0x30] sm:$0xf]
        %v2277 = vld [vmem:[%s4 + $0x34] sm:$0xf]
        %v2278 = vld [vmem:[%s4 + $0x38] sm:$0xf]
        %v2279 = vld [vmem:[%s4 + $0x3c] sm:$0xf]
        %v2280 = vld [vmem:[%s4 + $0x40] sm:$0xf]
        %v2281 = vld [vmem:[%s4 + $0x44] sm:$0xf]
        %v2282 = vld [vmem:[%s4 + $0x48] sm:$0xf]
        %v2283 = vld [vmem:[%s4 + $0x4c] sm:$0xf]
        %v2284 = vld [vmem:[%s4 + $0x50] sm:$0xf]
        %v2285 = vld [vmem:[%s4 + $0x54] sm:$0xf]
        %v2286 = vld [vmem:[%s4 + $0x58] sm:$0xf]
        %v2287 = vld [vmem:[%s4 + $0x5c] sm:$0xf]
        %v2288 = vld [vmem:[%s4 + $0x60] sm:$0xf]
        %v2289 = vld [vmem:[%s4 + $0x64] sm:$0xf]
        %v2290 = vld [vmem:[%s4 + $0x68] sm:$0xf]
        %v2291 = vld [vmem:[%s4 + $0x6c] sm:$0xf]
        %v2292 = vld [vmem:[%s4 + $0x70] sm:$0xf]
        %v2293 = vld [vmem:[%s4 + $0x74] sm:$0xf]
        %v2294 = vld [vmem:[%s4 + $0x78] sm:$0xf]
        %v2295 = vld [vmem:[%s4 + $0x7c] sm:$0xf]
        %v2296 = vld [vmem:[%s4 + $0x80] sm:$0xf]
        %v2297 = vld [vmem:[%s4 + $0x84] sm:$0xf]
        %v2298 = vld [vmem:[%s4 + $0x88] sm:$0xf]
        %v2299 = vld [vmem:[%s4 + $0x8c] sm:$0xf]
        %v2300 = vld [vmem:[%s5] sm:$0x1]
        %v2302 = vlaneseq
        %v2303 = vshrl.u32 %v2302, 7
        %v2304 = vsub.s32 0, %v2303
        %v2305 = vrot.slane %v2300, %v2304
        %v2343 = vunpack.c.l.b16 %v2264
        %v2344 = vunpack.c.l.b16 %v2265
        %v2345 = vunpack.c.l.b16 %v2266
        %v2346 = vunpack.c.l.b16 %v2267
        %v2347 = vunpack.c.l.b16 %v2268
        %v2348 = vunpack.c.l.b16 %v2269
        %v2349 = vunpack.c.l.b16 %v2270
        %v2350 = vunpack.c.l.b16 %v2271
        %v2351 = vunpack.c.l.b16 %v2272
        %v2352 = vunpack.c.l.b16 %v2273
        %v2353 = vunpack.c.l.b16 %v2274
        %v2354 = vunpack.c.l.b16 %v2275
        %v2355 = vunpack.c.l.b16 %v2276
        %v2356 = vunpack.c.l.b16 %v2277
        %v2357 = vunpack.c.l.b16 %v2278
        %v2358 = vunpack.c.l.b16 %v2279
        %v2359 = vunpack.c.l.b16 %v2280
        %v2360 = vunpack.c.l.b16 %v2281
        %v2361 = vunpack.c.l.b16 %v2282
        %v2362 = vunpack.c.l.b16 %v2283
        %v2363 = vunpack.c.l.b16 %v2284
        %v2364 = vunpack.c.l.b16 %v2285
        %v2365 = vunpack.c.l.b16 %v2286
        %v2366 = vunpack.c.l.b16 %v2287
        %v2367 = vunpack.c.l.b16 %v2288
        %v2368 = vunpack.c.l.b16 %v2289
        %v2369 = vunpack.c.l.b16 %v2290
        %v2370 = vunpack.c.l.b16 %v2291
        %v2371 = vunpack.c.l.b16 %v2292
        %v2372 = vunpack.c.l.b16 %v2293
        %v2373 = vunpack.c.l.b16 %v2294
        %v2374 = vunpack.c.l.b16 %v2295
        %v2375 = vunpack.c.l.b16 %v2296
        %v2376 = vunpack.c.l.b16 %v2297
        %v2377 = vunpack.c.l.b16 %v2298
        %v2378 = vunpack.c.l.b16 %v2299
        %v2379 = vpack.c.b16 %v2344, %v2343
        %v2380 = vpack.c.b16 %v2346, %v2345
        %v2381 = vpack.c.b16 %v2348, %v2347
        %v2382 = vpack.c.b16 %v2350, %v2349
        %v2383 = vpack.c.b16 %v2352, %v2351
        %v2384 = vpack.c.b16 %v2354, %v2353
        %v2385 = vpack.c.b16 %v2356, %v2355
        %v2386 = vpack.c.b16 %v2358, %v2357
        %v2387 = vpack.c.b16 %v2360, %v2359
        %v2388 = vpack.c.b16 %v2362, %v2361
        %v2389 = vpack.c.b16 %v2364, %v2363
        %v2390 = vpack.c.b16 %v2366, %v2365
        %v2391 = vpack.c.b16 %v2368, %v2367
        %v2392 = vpack.c.b16 %v2370, %v2369
        %v2393 = vpack.c.b16 %v2372, %v2371
        %v2394 = vpack.c.b16 %v2374, %v2373
        %v2395 = vpack.c.b16 %v2376, %v2375
        %v2396 = vpack.c.b16 %v2378, %v2377
        %v2416 = vsel %vm2133, %v2125, 0
        %v2419 = vsel %vm2133, %v2126, 0
        %v2422 = vsel %vm2133, %v2127, 0
        %v2425 = vsel %vm2133, %v2128, 0
        %v2428 = vsel %vm2133, %v2129, 0
        %v2431 = vsel %vm2133, %v2130, 0
        %v2434 = vsel %vm2133, %v2131, 0
        %v2437 = vsel %vm2133, %v2132, 0
        %2439 = vmatprep.subr.bf16.mxu0 0
        %2440 = vmatpush1.bf16.msra.mxu0 %v2386
        %2441 = vmatprep.subr.bf16.mxu0 0
        %2442 = vmatpush1.bf16.msra.mxu0 %v2385
        %2443 = vmatprep.subr.bf16.mxu0 0
        %2444 = vmatpush1.bf16.msra.mxu0 %v2384
        %2445 = vmatprep.subr.bf16.mxu0 0
        %2446 = vmatpush1.bf16.msra.mxu0 %v2383
        %2447 = vmatprep.subr.bf16.mxu0 0
        %2448 = vmatpush1.bf16.msra.mxu0 %v2382
        %2449 = vmatprep.subr.bf16.mxu0 0
        %2450 = vmatpush1.bf16.msra.mxu0 %v2381
        %2451 = vmatprep.subr.bf16.mxu0 0
        %2452 = vmatpush1.bf16.msra.mxu0 %v2380
        %2453 = vmatprep.subr.bf16.mxu0 0
        %2454 = vmatpush1.bf16.msra.mxu0 %v2379
        %2455 = vmatprep.subr.bf16.mxu0 0
        %2456 = vmatpush2.bf16.msra.mxu0 %v2394
        %2457 = vmatprep.subr.bf16.mxu0 0
        %2458 = vmatpush2.bf16.msra.mxu0 %v2393
        %2459 = vmatprep.subr.bf16.mxu0 0
        %2460 = vmatpush2.bf16.msra.mxu0 %v2392
        %2461 = vmatprep.subr.bf16.mxu0 0
        %2462 = vmatpush2.bf16.msra.mxu0 %v2391
        %2463 = vmatprep.subr.bf16.mxu0 0
        %2464 = vmatpush2.bf16.msra.mxu0 %v2390
        %2465 = vmatprep.subr.bf16.mxu0 0
        %2466 = vmatpush2.bf16.msra.mxu0 %v2389
        %2467 = vmatprep.subr.bf16.mxu0 0
        %2468 = vmatpush2.bf16.msra.mxu0 %v2388
        %2469 = vmatprep.subr.bf16.mxu0 0
        %2470 = vmatpush2.bf16.msra.mxu0 %v2387
        %2471 = vmatprep.mubr.bf16.mxu0 %v2241
        %2472 = vmatmul.mubr.bf16.gmra.mxu0 %v2177
        %v2473 = vpop.f32.mrf.mxu0
        %v2474 = vadd.f32 %v2305, %v2473
        %v2475 = vpop.f32.mrf.mxu0
        %v2476 = vpop.f32.mrf.mxu0
        %v2477 = vadd.f32 %v2305, %v2476
        %v2478 = vpop.f32.mrf.mxu0
        %2479 = vmatprep.mubr.bf16.mxu0 %v2244
        %2480 = vmatmul.mubr.bf16.gmra.mxu0 %v2180
        %v2481 = vpop.f32.mrf.mxu0
        %v2482 = vadd.f32 %v2305, %v2481
        %v2483 = vpop.f32.mrf.mxu0
        %v2484 = vpop.f32.mrf.mxu0
        %v2485 = vadd.f32 %v2305, %v2484
        %v2486 = vpop.f32.mrf.mxu0
        %2487 = vmatprep.mubr.bf16.mxu0 %v2247
        %2488 = vmatmul.mubr.bf16.gmra.mxu0 %v2183
        %v2489 = vpop.f32.mrf.mxu0
        %v2490 = vadd.f32 %v2305, %v2489
        %v2491 = vpop.f32.mrf.mxu0
        %v2492 = vpop.f32.mrf.mxu0
        %v2493 = vadd.f32 %v2305, %v2492
        %v2494 = vpop.f32.mrf.mxu0
        %2495 = vmatprep.mubr.bf16.mxu0 %v2250
        %2496 = vmatmul.mubr.bf16.gmra.mxu0 %v2186
        %v2497 = vpop.f32.mrf.mxu0
        %v2498 = vadd.f32 %v2305, %v2497
        %v2499 = vpop.f32.mrf.mxu0
        %v2500 = vpop.f32.mrf.mxu0
        %v2501 = vadd.f32 %v2305, %v2500
        %v2502 = vpop.f32.mrf.mxu0
        %2503 = vmatprep.mubr.bf16.mxu0 %v2253
        %2504 = vmatmul.mubr.bf16.gmra.mxu0 %v2189
        %v2505 = vpop.f32.mrf.mxu0
        %v2506 = vadd.f32 %v2305, %v2505
        %v2507 = vpop.f32.mrf.mxu0
        %v2508 = vpop.f32.mrf.mxu0
        %v2509 = vadd.f32 %v2305, %v2508
        %v2510 = vpop.f32.mrf.mxu0
        %2511 = vmatprep.mubr.bf16.mxu0 %v2256
        %2512 = vmatmul.mubr.bf16.gmra.mxu0 %v2192
        %v2513 = vpop.f32.mrf.mxu0
        %v2514 = vadd.f32 %v2305, %v2513
        %v2515 = vpop.f32.mrf.mxu0
        %v2516 = vpop.f32.mrf.mxu0
        %v2517 = vadd.f32 %v2305, %v2516
        %v2518 = vpop.f32.mrf.mxu0
        %2519 = vmatprep.mubr.bf16.mxu0 %v2259
        %2520 = vmatmul.mubr.bf16.gmra.mxu0 %v2195
        %v2521 = vpop.f32.mrf.mxu0
        %v2522 = vadd.f32 %v2305, %v2521
        %v2523 = vpop.f32.mrf.mxu0
        %v2524 = vpop.f32.mrf.mxu0
        %v2525 = vadd.f32 %v2305, %v2524
        %v2526 = vpop.f32.mrf.mxu0
        %2527 = vmatprep.mubr.bf16.mxu0 %v2262
        %2528 = vmatmul.mubr.bf16.gmra.mxu0 %v2198
        %v2529 = vpop.f32.mrf.mxu0
        %v2530 = vadd.f32 %v2305, %v2529
        %v2531 = vpop.f32.mrf.mxu0
        %v2532 = vpop.f32.mrf.mxu0
        %v2533 = vadd.f32 %v2305, %v2532
        %v2534 = vpop.f32.mrf.mxu0
        %2535 = vdwg.mxu0
        %2536 = vmatprep.subr.bf16.mxu0 0
        %2537 = vmatpush1.bf16.msra.mxu0 0
        %2538 = vmatprep.subr.bf16.mxu0 0
        %2539 = vmatpush1.bf16.msra.mxu0 0
        %2540 = vmatprep.subr.bf16.mxu0 0
        %2541 = vmatpush1.bf16.msra.mxu0 0
        %2542 = vmatprep.subr.bf16.mxu0 0
        %2543 = vmatpush1.bf16.msra.mxu0 0
        %2544 = vmatprep.subr.bf16.mxu0 0
        %2545 = vmatpush1.bf16.msra.mxu0 0
        %2546 = vmatprep.subr.bf16.mxu0 0
        %2547 = vmatpush1.bf16.msra.mxu0 0
        %2548 = vmatprep.subr.bf16.mxu0 0
        %2549 = vmatpush1.bf16.msra.mxu0 %v2396
        %2550 = vmatprep.subr.bf16.mxu0 0
        %2551 = vmatpush1.bf16.msra.mxu0 %v2395
        %2552 = vmatprep.subr.bf16.mxu0 0
        %2553 = vmatpush2.bf16.msra.mxu0 0
        %2554 = vmatprep.subr.bf16.mxu0 0
        %2555 = vmatpush2.bf16.msra.mxu0 0
        %2556 = vmatprep.subr.bf16.mxu0 0
        %2557 = vmatpush2.bf16.msra.mxu0 0
        %2558 = vmatprep.subr.bf16.mxu0 0
        %2559 = vmatpush2.bf16.msra.mxu0 0
        %2560 = vmatprep.subr.bf16.mxu0 0
        %2561 = vmatpush2.bf16.msra.mxu0 0
        %2562 = vmatprep.subr.bf16.mxu0 0
        %2563 = vmatpush2.bf16.msra.mxu0 0
        %2564 = vmatprep.subr.bf16.mxu0 0
        %2565 = vmatpush2.bf16.msra.mxu0 0
        %2566 = vmatprep.subr.bf16.mxu0 0
        %2567 = vmatpush2.bf16.msra.mxu0 0
        %2568 = vmatprep.mubr.bf16.mxu0 0
        %2569 = vmatmul.mubr.bf16.gmra.mxu0 %v2416
        %v2570 = vpop.f32.mrf.mxu0
        %v2571 = vadd.f32 %v2474, %v2570
        %v2572 = vpop.f32.mrf.mxu0
        %v2573 = vpop.f32.mrf.mxu0
        %v2574 = vadd.f32 %v2477, %v2573
        %v2575 = vpop.f32.mrf.mxu0
        %2576 = vmatprep.mubr.bf16.mxu0 0
        %2577 = vmatmul.mubr.bf16.gmra.mxu0 %v2419
        %v2578 = vpop.f32.mrf.mxu0
        %v2579 = vadd.f32 %v2482, %v2578
        %v2580 = vpop.f32.mrf.mxu0
        %v2581 = vpop.f32.mrf.mxu0
        %v2582 = vadd.f32 %v2485, %v2581
        %v2583 = vpop.f32.mrf.mxu0
        %2584 = vmatprep.mubr.bf16.mxu0 0
        %2585 = vmatmul.mubr.bf16.gmra.mxu0 %v2422
        %v2586 = vpop.f32.mrf.mxu0
        %v2587 = vadd.f32 %v2490, %v2586
        %v2588 = vpop.f32.mrf.mxu0
        %v2589 = vpop.f32.mrf.mxu0
        %v2590 = vadd.f32 %v2493, %v2589
        %v2591 = vpop.f32.mrf.mxu0
        %2592 = vmatprep.mubr.bf16.mxu0 0
        %2593 = vmatmul.mubr.bf16.gmra.mxu0 %v2425
        %v2594 = vpop.f32.mrf.mxu0
        %v2595 = vadd.f32 %v2498, %v2594
        %v2596 = vpop.f32.mrf.mxu0
        %v2597 = vpop.f32.mrf.mxu0
        %v2598 = vadd.f32 %v2501, %v2597
        %v2599 = vpop.f32.mrf.mxu0
        %2600 = vmatprep.mubr.bf16.mxu0 0
        %2601 = vmatmul.mubr.bf16.gmra.mxu0 %v2428
        %v2602 = vpop.f32.mrf.mxu0
        %v2603 = vadd.f32 %v2506, %v2602
        %v2604 = vpop.f32.mrf.mxu0
        %v2605 = vpop.f32.mrf.mxu0
        %v2606 = vadd.f32 %v2509, %v2605
        %v2607 = vpop.f32.mrf.mxu0
        %2608 = vmatprep.mubr.bf16.mxu0 0
        %2609 = vmatmul.mubr.bf16.gmra.mxu0 %v2431
        %v2610 = vpop.f32.mrf.mxu0
        %v2611 = vadd.f32 %v2514, %v2610
        %v2612 = vpop.f32.mrf.mxu0
        %v2613 = vpop.f32.mrf.mxu0
        %v2614 = vadd.f32 %v2517, %v2613
        %v2615 = vpop.f32.mrf.mxu0
        %2616 = vmatprep.mubr.bf16.mxu0 0
        %2617 = vmatmul.mubr.bf16.gmra.mxu0 %v2434
        %v2618 = vpop.f32.mrf.mxu0
        %v2619 = vadd.f32 %v2522, %v2618
        %v2620 = vpop.f32.mrf.mxu0
        %v2621 = vpop.f32.mrf.mxu0
        %v2622 = vadd.f32 %v2525, %v2621
        %v2623 = vpop.f32.mrf.mxu0
        %2624 = vmatprep.mubr.bf16.mxu0 0
        %2625 = vmatmul.mubr.bf16.gmra.mxu0 %v2437
        %v2626 = vpop.f32.mrf.mxu0
        %v2627 = vadd.f32 %v2530, %v2626
        %v2628 = vpop.f32.mrf.mxu0
        %v2629 = vpop.f32.mrf.mxu0
        %v2630 = vadd.f32 %v2533, %v2629
        %v2631 = vpop.f32.mrf.mxu0
        %2632 = vdwg.mxu0
        %v2633 = vmax.f32 %v2571, 0.0
        %v2634 = vmax.f32 %v2574, 0.0
        %v2635 = vmax.f32 %v2579, 0.0
        %v2636 = vmax.f32 %v2582, 0.0
        %v2637 = vmax.f32 %v2587, 0.0
        %v2638 = vmax.f32 %v2590, 0.0
        %v2639 = vmax.f32 %v2595, 0.0
        %v2640 = vmax.f32 %v2598, 0.0
        %v2641 = vmax.f32 %v2603, 0.0
        %v2642 = vmax.f32 %v2606, 0.0
        %v2643 = vmax.f32 %v2611, 0.0
        %v2644 = vmax.f32 %v2614, 0.0
        %v2645 = vmax.f32 %v2619, 0.0
        %v2646 = vmax.f32 %v2622, 0.0
        %v2647 = vmax.f32 %v2627, 0.0
        %v2648 = vmax.f32 %v2630, 0.0
        %v2649 = vpack.c.bf16 %v2634, %v2633
        %v2650 = vpack.c.bf16 %v2636, %v2635
        %v2651 = vpack.c.bf16 %v2638, %v2637
        %v2652 = vpack.c.bf16 %v2640, %v2639
        %v2653 = vpack.c.bf16 %v2642, %v2641
        %v2654 = vpack.c.bf16 %v2644, %v2643
        %v2655 = vpack.c.bf16 %v2646, %v2645
        %v2656 = vpack.c.bf16 %v2648, %v2647
        %v2657 = vld [vmem:[%s6] sm:$0xf]
        %v2658 = vld [vmem:[%s6 + $0x4] sm:$0xf]
        %v2659 = vld [vmem:[%s6 + $0x8] sm:$0xf]
        %v2660 = vld [vmem:[%s6 + $0xc] sm:$0xf]
        %v2661 = vld [vmem:[%s7] sm:$0x1]
        %v2663 = vlaneseq
        %v2664 = vshrl.u32 %v2663, 7
        %v2665 = vsub.s32 0, %v2664
        %v2666 = vrot.slane %v2661, %v2665
        %v2672 = vunpack.c.l.b16 %v2657
        %v2673 = vunpack.c.l.b16 %v2658
        %v2674 = vunpack.c.l.b16 %v2659
        %v2675 = vunpack.c.l.b16 %v2660
        %v2676 = vpack.c.b16 %v2673, %v2672
        %v2677 = vpack.c.b16 %v2675, %v2674
        %v2681 = vsel %vm2133, %v2649, 0
        %v2684 = vsel %vm2133, %v2650, 0
        %v2687 = vsel %vm2133, %v2651, 0
        %v2690 = vsel %vm2133, %v2652, 0
        %v2693 = vsel %vm2133, %v2653, 0
        %v2696 = vsel %vm2133, %v2654, 0
        %v2699 = vsel %vm2133, %v2655, 0
        %v2702 = vsel %vm2133, %v2656, 0
        %2704 = vmatprep.subr.bf16.mxu0 0
        %2705 = vmatpush1.bf16.msra.mxu0 0
        %2706 = vmatprep.subr.bf16.mxu0 0
        %2707 = vmatpush1.bf16.msra.mxu0 0
        %2708 = vmatprep.subr.bf16.mxu0 0
        %2709 = vmatpush1.bf16.msra.mxu0 0
        %2710 = vmatprep.subr.bf16.mxu0 0
        %2711 = vmatpush1.bf16.msra.mxu0 0
        %2712 = vmatprep.subr.bf16.mxu0 0
        %2713 = vmatpush1.bf16.msra.mxu0 0
        %2714 = vmatprep.subr.bf16.mxu0 0
        %2715 = vmatpush1.bf16.msra.mxu0 0
        %2716 = vmatprep.subr.bf16.mxu0 0
        %2717 = vmatpush1.bf16.msra.mxu0 %v2677
        %2718 = vmatprep.subr.bf16.mxu0 0
        %2719 = vmatpush1.bf16.msra.mxu0 %v2676
        %2720 = vmatprep.subr.bf16.mxu0 0
        %2721 = vmatpush2.bf16.msra.mxu0 0
        %2722 = vmatprep.subr.bf16.mxu0 0
        %2723 = vmatpush2.bf16.msra.mxu0 0
        %2724 = vmatprep.subr.bf16.mxu0 0
        %2725 = vmatpush2.bf16.msra.mxu0 0
        %2726 = vmatprep.subr.bf16.mxu0 0
        %2727 = vmatpush2.bf16.msra.mxu0 0
        %2728 = vmatprep.subr.bf16.mxu0 0
        %2729 = vmatpush2.bf16.msra.mxu0 0
        %2730 = vmatprep.subr.bf16.mxu0 0
        %2731 = vmatpush2.bf16.msra.mxu0 0
        %2732 = vmatprep.subr.bf16.mxu0 0
        %2733 = vmatpush2.bf16.msra.mxu0 0
        %2734 = vmatprep.subr.bf16.mxu0 0
        %2735 = vmatpush2.bf16.msra.mxu0 0
        %2736 = vmatprep.mubr.bf16.mxu0 0
        %2737 = vmatmul.mubr.bf16.gmra.mxu0 %v2681
        %v2738 = vpop.f32.mrf.mxu0
        %v2739 = vadd.f32 %v2666, %v2738
        %v2740 = vpop.f32.mrf.mxu0
        %v2741 = vpop.f32.mrf.mxu0
        %v2742 = vadd.f32 %v2666, %v2741
        %v2743 = vpop.f32.mrf.mxu0
        %2744 = vmatprep.mubr.bf16.mxu0 0
        %2745 = vmatmul.mubr.bf16.gmra.mxu0 %v2684
        %v2746 = vpop.f32.mrf.mxu0
        %v2747 = vadd.f32 %v2666, %v2746
        %v2748 = vpop.f32.mrf.mxu0
        %v2749 = vpop.f32.mrf.mxu0
        %v2750 = vadd.f32 %v2666, %v2749
        %v2751 = vpop.f32.mrf.mxu0
        %2752 = vmatprep.mubr.bf16.mxu0 0
        %2753 = vmatmul.mubr.bf16.gmra.mxu0 %v2687
        %v2754 = vpop.f32.mrf.mxu0
        %v2755 = vadd.f32 %v2666, %v2754
        %v2756 = vpop.f32.mrf.mxu0
        %v2757 = vpop.f32.mrf.mxu0
        %v2758 = vadd.f32 %v2666, %v2757
        %v2759 = vpop.f32.mrf.mxu0
        %2760 = vmatprep.mubr.bf16.mxu0 0
        %2761 = vmatmul.mubr.bf16.gmra.mxu0 %v2690
        %v2762 = vpop.f32.mrf.mxu0
        %v2763 = vadd.f32 %v2666, %v2762
        %v2764 = vpop.f32.mrf.mxu0
        %v2765 = vpop.f32.mrf.mxu0
        %v2766 = vadd.f32 %v2666, %v2765
        %v2767 = vpop.f32.mrf.mxu0
        %2768 = vmatprep.mubr.bf16.mxu0 0
        %2769 = vmatmul.mubr.bf16.gmra.mxu0 %v2693
        %v2770 = vpop.f32.mrf.mxu0
        %v2771 = vadd.f32 %v2666, %v2770
        %v2772 = vpop.f32.mrf.mxu0
        %v2773 = vpop.f32.mrf.mxu0
        %v2774 = vadd.f32 %v2666, %v2773
        %v2775 = vpop.f32.mrf.mxu0
        %2776 = vmatprep.mubr.bf16.mxu0 0
        %2777 = vmatmul.mubr.bf16.gmra.mxu0 %v2696
        %v2778 = vpop.f32.mrf.mxu0
        %v2779 = vadd.f32 %v2666, %v2778
        %v2780 = vpop.f32.mrf.mxu0
        %v2781 = vpop.f32.mrf.mxu0
        %v2782 = vadd.f32 %v2666, %v2781
        %v2783 = vpop.f32.mrf.mxu0
        %2784 = vmatprep.mubr.bf16.mxu0 0
        %2785 = vmatmul.mubr.bf16.gmra.mxu0 %v2699
        %v2786 = vpop.f32.mrf.mxu0
        %v2787 = vadd.f32 %v2666, %v2786
        %v2788 = vpop.f32.mrf.mxu0
        %v2789 = vpop.f32.mrf.mxu0
        %v2790 = vadd.f32 %v2666, %v2789
        %v2791 = vpop.f32.mrf.mxu0
        %2792 = vmatprep.mubr.bf16.mxu0 0
        %2793 = vmatmul.mubr.bf16.gmra.mxu0 %v2702
        %v2794 = vpop.f32.mrf.mxu0
        %v2795 = vadd.f32 %v2666, %v2794
        %v2796 = vpop.f32.mrf.mxu0
        %v2797 = vpop.f32.mrf.mxu0
        %v2798 = vadd.f32 %v2666, %v2797
        %v2799 = vpop.f32.mrf.mxu0
        %2800 = vdwg.mxu0
        %v2801 = vld [vmem:[%s326] sm:$0xff]
        %v2802 = vld [vmem:[%s326 + $0x8] sm:$0xff]
        %v2803 = vld [vmem:[%s326 + $0x10] sm:$0xff]
        %v2804 = vld [vmem:[%s326 + $0x18] sm:$0xff]
        %v2805 = vld [vmem:[%s326 + $0x20] sm:$0xff]
        %v2806 = vld [vmem:[%s326 + $0x28] sm:$0xff]
        %v2807 = vld [vmem:[%s326 + $0x30] sm:$0xff]
        %v2808 = vld [vmem:[%s326 + $0x38] sm:$0xff]
        %v2809 = vld [vmem:[%s326 + $0x40] sm:$0xff]
        %v2810 = vld [vmem:[%s326 + $0x48] sm:$0xff]
        %v2811 = vld [vmem:[%s326 + $0x50] sm:$0xff]
        %v2812 = vld [vmem:[%s326 + $0x58] sm:$0xff]
        %v2813 = vld [vmem:[%s326 + $0x60] sm:$0xff]
        %v2814 = vld [vmem:[%s326 + $0x68] sm:$0xff]
        %v2815 = vld [vmem:[%s326 + $0x70] sm:$0xff]
        %v2816 = vld [vmem:[%s326 + $0x78] sm:$0xff]
        %v2817 = vadd.f32 %v2739, %v2801
        %v2818 = vadd.f32 %v2742, %v2802
        %v2819 = vadd.f32 %v2747, %v2803
        %v2820 = vadd.f32 %v2750, %v2804
        %v2821 = vadd.f32 %v2755, %v2805
        %v2822 = vadd.f32 %v2758, %v2806
        %v2823 = vadd.f32 %v2763, %v2807
        %v2824 = vadd.f32 %v2766, %v2808
        %v2825 = vadd.f32 %v2771, %v2809
        %v2826 = vadd.f32 %v2774, %v2810
        %v2827 = vadd.f32 %v2779, %v2811
        %v2828 = vadd.f32 %v2782, %v2812
        %v2829 = vadd.f32 %v2787, %v2813
        %v2830 = vadd.f32 %v2790, %v2814
        %v2831 = vadd.f32 %v2795, %v2815
        %v2832 = vadd.f32 %v2798, %v2816
        %v2833 = vmax.f32 %v2817, 0.0
        %v2834 = vmax.f32 %v2818, 0.0
        %v2835 = vmax.f32 %v2819, 0.0
        %v2836 = vmax.f32 %v2820, 0.0
        %v2837 = vmax.f32 %v2821, 0.0
        %v2838 = vmax.f32 %v2822, 0.0
        %v2839 = vmax.f32 %v2823, 0.0
        %v2840 = vmax.f32 %v2824, 0.0
        %v2841 = vmax.f32 %v2825, 0.0
        %v2842 = vmax.f32 %v2826, 0.0
        %v2843 = vmax.f32 %v2827, 0.0
        %v2844 = vmax.f32 %v2828, 0.0
        %v2845 = vmax.f32 %v2829, 0.0
        %v2846 = vmax.f32 %v2830, 0.0
        %v2847 = vmax.f32 %v2831, 0.0
        %v2848 = vmax.f32 %v2832, 0.0
        %2849 = vst [vmem:[%s367] sm:$0xff] %v2833
        %2850 = vst [vmem:[%s367 + $0x8] sm:$0xff] %v2834
        %2851 = vst [vmem:[%s367 + $0x10] sm:$0xff] %v2835
        %2852 = vst [vmem:[%s367 + $0x18] sm:$0xff] %v2836
        %2853 = vst [vmem:[%s367 + $0x20] sm:$0xff] %v2837
        %2854 = vst [vmem:[%s367 + $0x28] sm:$0xff] %v2838
        %2855 = vst [vmem:[%s367 + $0x30] sm:$0xff] %v2839
        %2856 = vst [vmem:[%s367 + $0x38] sm:$0xff] %v2840
        %2857 = vst [vmem:[%s367 + $0x40] sm:$0xff] %v2841
        %2858 = vst [vmem:[%s367 + $0x48] sm:$0xff] %v2842
        %2859 = vst [vmem:[%s367 + $0x50] sm:$0xff] %v2843
        %2860 = vst [vmem:[%s367 + $0x58] sm:$0xff] %v2844
        %2861 = vst [vmem:[%s367 + $0x60] sm:$0xff] %v2845
        %2862 = vst [vmem:[%s367 + $0x68] sm:$0xff] %v2846
        %2863 = vst [vmem:[%s367 + $0x70] sm:$0xff] %v2847
        %2864 = vst [vmem:[%s367 + $0x78] sm:$0xff] %v2848
        %s2865 = sand.u32 %s229, 1
        %s2866 = scalar_lea.sflag [#allocation5], %s2865
        %s2867 = sand.u32 %s229, 1
        %s2868 = smul.addr %s2867, 128
        %s2869 = scalar_lea.vmem [#allocation6], %s2868
        // Predicated region
        $region65: #{tpu_custom_call.1} parent=51 // pred_check
          %p2870 = pneg %p239
        $region66: #{tpu_custom_call.1} parent=51 // pred_check_branch
          %2872 = sbr.rel (%p2870) target = $region68
        $region67: #{tpu_custom_call.1} parent=51 // pred_region
          %s2873 = smul.u32 8, %s30
          %s2875 = ssub.s32 2048, 2048
          %2876 = vsyncadd %s2866, %s2875
          %s2877 = smul.addr %s2873, 2
          %s2878 = smul.addr %s29, 32
          %s2879 = sadd.s32 %s2877, %s2878
          %s2880 = smul.addr %s2879, 128
          %s2881 = scalar_lea.hbm %s8, %s2880
          %s2882 = sshll.u32 %s2869, 4
          %s2883 = int_to_ptr.vmem [resolvable:$true] %s2882
          %2888 = dma.vmem_to_hbm [thread:$0]  %s2883, 2048, %s2881, %s2866, 128, 128, 8
        $region68: #{tpu_custom_call.1} parent=51 // pred_fallthru
          _
      $region52: #{tpu_custom_call.1} parent=5 // pred_fallthru
        _
      %p2889 = scmp.le.s32.totalorder 2, %s20
      // Predicated region
      $region69: #{tpu_custom_call.1} parent=5 // pred_check
        %p2890 = pneg %p2889
      $region70: #{tpu_custom_call.1} parent=5 // pred_check_branch
        %2892 = sbr.rel (%p2890) target = $region72
      $region71: #{tpu_custom_call.1} parent=5 // pred_region
        %s2893 = ssub.s32 %s20, 2
        // Predicated region
        $region73: #{tpu_custom_call.1} parent=71 // pred_check
          %p2894 = pneg %p245
        $region74: #{tpu_custom_call.1} parent=71 // pred_check_branch
          %2896 = sbr.rel (%p2894) target = $region76
        $region75: #{tpu_custom_call.1} parent=71 // pred_region
          %s2897 = sand.u32 %s230, 1
          %s2898 = scalar_lea.sflag [#allocation5], %s2897
          %s2899 = sand.u32 %s230, 1
          %s2900 = smul.addr %s2899, 128
          %s2901 = scalar_lea.vmem [#allocation6], %s2900
          %2902 = dma.done %s2898, 2048
        $region76: #{tpu_custom_call.1} parent=71 // pred_fallthru
          _
      $region72: #{tpu_custom_call.1} parent=5 // pred_fallthru
        _
    $region6: #{tpu_custom_call.1} parent=1 // loop_footer
      %s24 = sadd.s32 1, %s20
    $region7: #{tpu_custom_call.1} parent=1 // loop_footer_branch
      %19 = sbr.rel target = $region3
    $region8: #{tpu_custom_call.1} parent=1 // loop_exit
      _
    %2903 = vsyncpa [#allocation4], 1
    %s2904 = scalar_lea.sflag [#allocation4], 1
    %2905 = vsyncpa %s2904, 1
    %2906 = vsyncpa [#allocation5], 1
    %s2907 = scalar_lea.sflag [#allocation5], 1
    %2908 = vsyncpa %s2907, 1

</llo_original>
